<compile_context>
chip_gen: v7x
topology: tpu7x:2x2x1
jax: 0.10.0
libtpu: 0.0.40
codegen_flags: <defaults>
</compile_context>

<pallas_src>
import math

import jax
import jax.numpy as jnp
from jax.experimental import pallas as pl
from jax.experimental.pallas import tpu as pltpu

# ---- scaled-down hyperparameters (same structure as the PyTorch module) ----
BATCH       = 2                                # independent sequences per call
SEQ_LEN     = 8
BERT_HIDDEN = 20                               # stands in for 768
POS_DIM     = 4
UMLS_DIM    = 4
GAZ_DIM     = 4
D_MODEL     = BERT_HIDDEN + POS_DIM + UMLS_DIM + 3 * GAZ_DIM   # 40 (module: 1100)
NUM_HEADS   = 10                               # matches module
HEAD_DIM    = D_MODEL // NUM_HEADS             # 4 (module: 110)
D_FF        = 64                               # stands in for default 2048
NUM_LAYERS  = 6                                # matches module
NUM_CLASS   = 3                                # matches module
CLASS_PAD   = 128                              # lane-dense padded classifier width
VOCAB       = 100
POS_VOCAB   = 20
UMLS_VOCAB  = 50
LN_EPS      = 1e-5

VEC_W    = max(3 * D_MODEL, D_FF)              # 120: packed small-param row width
VEC_ROWS = 8                                   # bqkv, bf1, bo, g1, be1, bf2, g2, be2


def _layer_norm(x, gamma, beta):
    mu = jnp.mean(x, axis=-1, keepdims=True)
    var = jnp.mean((x - mu) ** 2, axis=-1, keepdims=True)
    return (x - mu) * jax.lax.rsqrt(var + LN_EPS) * gamma + beta


# ----------------------------- fused kernel ---------------------------------

def encoder_stack_kernel(x_ref, pe_ref,
                         wqkv_ref, wo_ref, w1_ref, w2_ref, vec_ref,
                         wc_ref, bc_ref,
                         o_ref,
                         x_sc, attn_sc):
    """One grid step = one (batch, layer) pair of the post-norm encoder stack."""
    l = pl.program_id(1)

    # layer 0: positional-encoding add (dropout = identity in eval mode)
    @pl.when(l == 0)
    def _():
        x_sc[...] = x_ref[...] + pe_ref[...]

    x = x_sc[...]                                            # (S, D) f32

    # packed per-layer small params: (8, VEC_W) f32
    vecs = vec_ref[...]
    bqkv = vecs[0:1, :3 * D_MODEL]
    bf1  = vecs[1:2, :D_FF]
    bo   = vecs[2:3, :D_MODEL]
    g1   = vecs[3:4, :D_MODEL]
    be1  = vecs[4:5, :D_MODEL]
    bf2  = vecs[5:6, :D_MODEL]
    g2   = vecs[6:7, :D_MODEL]
    be2  = vecs[7:8, :D_MODEL]

    # fused QKV projection (1/sqrt(head_dim) folded into W_q/b_q at init)
    qkv = jnp.dot(x.astype(jnp.bfloat16), wqkv_ref[...],
                  preferred_element_type=jnp.float32) + bqkv     # (S, 3D) f32

    # per-head 2-D attention; context written into lane slices of VMEM scratch
    for h in range(NUM_HEADS):
        c0, c1 = h * HEAD_DIM, (h + 1) * HEAD_DIM
        q_h = qkv[:, c0:c1]                                      # (S, Hd)
        k_h = qkv[:, D_MODEL + c0:D_MODEL + c1]                  # (S, Hd)
        v_h = qkv[:, 2 * D_MODEL + c0:2 * D_MODEL + c1]          # (S, Hd)

        # s_h[i, j] = <q_i, k_j>  (contract last dims; no explicit transpose)
        s_h = jax.lax.dot_general(q_h, k_h, (((1,), (1,)), ((), ())),
                                  preferred_element_type=jnp.float32)
        s_h = s_h - jnp.max(s_h, axis=-1, keepdims=True)
        p_h = jnp.exp(s_h)
        p_h = p_h * pl.reciprocal(jnp.sum(p_h, axis=-1, keepdims=True),
                                  approx=True)
        attn_sc[:, c0:c1] = jnp.dot(p_h, v_h,
                                    preferred_element_type=jnp.float32)

    # out-projection
    attn = jnp.dot(attn_sc[...].astype(jnp.bfloat16), wo_ref[...],
                   preferred_element_type=jnp.float32) + bo

    # residual + LayerNorm 1 (norm_first=False -> post-norm)
    y = _layer_norm(x + attn, g1, be1)

    # feed-forward: Linear -> ReLU -> Linear
    ff = jnp.dot(y.astype(jnp.bfloat16), w1_ref[...],
                 preferred_element_type=jnp.float32) + bf1
    ff = jnp.maximum(ff, 0.0)
    ff = jnp.dot(ff.astype(jnp.bfloat16), w2_ref[...],
                 preferred_element_type=jnp.float32) + bf2

    # residual + LayerNorm 2; carry activation to next layer step
    x_new = _layer_norm(y + ff, g2, be2)
    x_sc[...] = x_new

    # classifier on the last layer step (lane-dense padded output)
    @pl.when(l == NUM_LAYERS - 1)
    def _():
        o_ref[...] = (jnp.dot(x_new.astype(jnp.bfloat16), wc_ref[...],
                              preferred_element_type=jnp.float32)
                      + bc_ref[...]).astype(o_ref.dtype)


def fused_forward(x, pe, params):
    """x: (B, S, D_MODEL) f32 -> logits (B, S, NUM_CLASS) f32."""
    B = x.shape[0]

    def layer_spec(shape):          # per-layer weight slab, block index = layer
        return pl.BlockSpec((None,) + shape, lambda b, l: (l, 0, 0))

    def const_spec(shape):          # fetched once, resident for the whole grid
        return pl.BlockSpec(shape, lambda b, l: (0,) * len(shape))

    out = pl.pallas_call(
        encoder_stack_kernel,
        out_shape=jax.ShapeDtypeStruct((B, SEQ_LEN, CLASS_PAD), jnp.float32),
        grid=(B, NUM_LAYERS),
        in_specs=[
            pl.BlockSpec((None, SEQ_LEN, D_MODEL), lambda b, l: (b, 0, 0)),  # x
            const_spec((SEQ_LEN, D_MODEL)),                                  # pe
            layer_spec((D_MODEL, 3 * D_MODEL)),                              # wqkv
            layer_spec((D_MODEL, D_MODEL)),                                  # wo
            layer_spec((D_MODEL, D_FF)),                                     # w1
            layer_spec((D_FF, D_MODEL)),                                     # w2
            layer_spec((VEC_ROWS, VEC_W)),                                   # vec
            const_spec((D_MODEL, CLASS_PAD)),                                # wc
            const_spec((1, CLASS_PAD)),                                      # bc
        ],
        out_specs=pl.BlockSpec((None, SEQ_LEN, CLASS_PAD),
                               lambda b, l: (b, 0, 0)),
        scratch_shapes=[
            pltpu.VMEM((SEQ_LEN, D_MODEL), jnp.float32),   # activation carry
            pltpu.VMEM((SEQ_LEN, D_MODEL), jnp.float32),   # merged head context
        ],
        compiler_params=pltpu.CompilerParams(
            dimension_semantics=("parallel", "arbitrary")),
    )(x, pe,
      params["wqkv"], params["wo"], params["w1"], params["w2"], params["vec"],
      params["wc"], params["bc"])
    return out[:, :, :NUM_CLASS]


# ------------------------ parameter initialization --------------------------

def _linear(key, d_in, d_out):
    # weights stored in (in, out) layout so the kernel does x @ W directly
    kw, kb = jax.random.split(key)
    bound = 1.0 / math.sqrt(d_in)
    w = jax.random.uniform(kw, (d_in, d_out), jnp.float32, -bound, bound)
    b = jax.random.uniform(kb, (1, d_out), jnp.float32, -bound, bound)
    return w, b


def _pad_row(row):
    return jnp.zeros((1, VEC_W), jnp.float32).at[:, :row.shape[1]].set(row)


def init_params(key):
    keys = jax.random.split(key, 4 + NUM_LAYERS)
    params = {}

    # TODO(synk): pretrained BERT / UMLS / POS embeddings replaced by random
    # in-script tables (no checkpoint loading, no network).
    params["bert_emb"] = jax.random.normal(keys[0], (VOCAB, BERT_HIDDEN),
                                           jnp.float32) * 0.02
    params["pos_emb"] = jax.random.normal(keys[1], (POS_VOCAB, POS_DIM),
                                          jnp.float32) * 0.02
    params["umls_emb"] = jax.random.normal(keys[2], (UMLS_VOCAB, UMLS_DIM),
                                           jnp.float32) * 0.02

    # classifier, zero-padded to a lane-dense width (weights bf16, bias f32)
    wc, bc = _linear(keys[3], D_MODEL, NUM_CLASS)
    wc_pad = jnp.zeros((D_MODEL, CLASS_PAD), jnp.float32).at[:, :NUM_CLASS].set(wc)
    params["wc"] = wc_pad.astype(jnp.bfloat16)
    params["bc"] = jnp.zeros((1, CLASS_PAD), jnp.float32).at[:, :NUM_CLASS].set(bc)

    scale = 1.0 / math.sqrt(HEAD_DIM)
    ones_d = jnp.ones((1, D_MODEL), jnp.float32)
    zeros_d = jnp.zeros((1, D_MODEL), jnp.float32)

    wqkv_l, wo_l, w1_l, w2_l, vec_l = [], [], [], [], []
    for l in range(NUM_LAYERS):
        lk = jax.random.split(keys[4 + l], 6)
        wq, bq = _linear(lk[0], D_MODEL, D_MODEL)
        wk, bk = _linear(lk[1], D_MODEL, D_MODEL)
        wv, bv = _linear(lk[2], D_MODEL, D_MODEL)
        wo, bo = _linear(lk[3], D_MODEL, D_MODEL)
        w1, bf1 = _linear(lk[4], D_MODEL, D_FF)
        w2, bf2 = _linear(lk[5], D_FF, D_MODEL)

        # fold attention scale into W_q / b_q (exact, done once at init)
        wq = wq * scale
        bq = bq * scale

        wqkv_l.append(jnp.concatenate([wq, wk, wv], axis=1))    # (D, 3D)
        wo_l.append(wo)
        w1_l.append(w1)
        w2_l.append(w2)
        vec_l.append(jnp.concatenate([
            _pad_row(jnp.concatenate([bq, bk, bv], axis=1)),    # row 0: bqkv
            _pad_row(bf1),                                      # row 1: FFN bias 1
            _pad_row(bo),                                       # row 2: out-proj bias
            _pad_row(ones_d),                                   # row 3: gamma1
            _pad_row(zeros_d),                                  # row 4: beta1
            _pad_row(bf2),                                      # row 5: FFN bias 2
            _pad_row(ones_d),                                   # row 6: gamma2
            _pad_row(zeros_d),                                  # row 7: beta2
        ], axis=0))                                             # (8, VEC_W)

    params["wqkv"] = jnp.stack(wqkv_l).astype(jnp.bfloat16)     # (L, D, 3D)
    params["wo"]   = jnp.stack(wo_l).astype(jnp.bfloat16)       # (L, D, D)
    params["w1"]   = jnp.stack(w1_l).astype(jnp.bfloat16)       # (L, D, D_FF)
    params["w2"]   = jnp.stack(w2_l).astype(jnp.bfloat16)       # (L, D_FF, D)
    params["vec"]  = jnp.stack(vec_l)                           # (L, 8, VEC_W) f32
    return params


def make_pos_encoding_table(max_len, d_model):
    pos = jnp.arange(max_len, dtype=jnp.float32)[:, None]
    div = jnp.exp(jnp.arange(0, d_model, 2, dtype=jnp.float32)
                  * (-math.log(10000.0) / d_model))
    pe = jnp.zeros((max_len, d_model), jnp.float32)
    pe = pe.at[:, 0::2].set(jnp.sin(pos * div))
    pe = pe.at[:, 1::2].set(jnp.cos(pos * div))
    return pe


# ------------------------------ forward pass --------------------------------

def forward(params, pe_table, input_ids, pos_indices, umls_indices,
            dis_gaz, umls_dis_gaz, silver_gaz):
    """Batched forward: each of the B sequences follows the module's forward."""
    # bert_embeddings = bert_model(input_ids)['last_hidden_state']
    bert_embeddings = params["bert_emb"][input_ids]          # (B, S, BERT_HIDDEN)
    pos_embeddings = params["pos_emb"][pos_indices]          # (B, S, POS_DIM)
    umls_embeddings = params["umls_emb"][umls_indices]       # (B, S, UMLS_DIM)

    x = jnp.concatenate(
        [bert_embeddings, pos_embeddings, umls_embeddings,
         dis_gaz, umls_dis_gaz, silver_gaz], axis=-1)        # (B, S, D_MODEL)

    # single fused Pallas kernel: PE add + 6 encoder layers + classifier
    return fused_forward(x, pe_table[:x.shape[1]], params)   # (B, S, NUM_CLASS)


if __name__ == "__main__":
    root = jax.random.PRNGKey(0)
    k_par, k_ids, k_pos, k_umls, k_d, k_ud, k_s = jax.random.split(root, 7)

    params = init_params(k_par)
    pe_table = make_pos_encoding_table(64, D_MODEL)

    input_ids    = jax.random.randint(k_ids,  (BATCH, SEQ_LEN), 0, VOCAB)
    pos_indices  = jax.random.randint(k_pos,  (BATCH, SEQ_LEN), 0, POS_VOCAB)
    umls_indices = jax.random.randint(k_umls, (BATCH, SEQ_LEN), 0, UMLS_VOCAB)
    dis_gaz      = jax.random.normal(k_d,  (BATCH, SEQ_LEN, GAZ_DIM), jnp.float32)
    umls_dis_gaz = jax.random.normal(k_ud, (BATCH, SEQ_LEN, GAZ_DIM), jnp.float32)
    silver_gaz   = jax.random.normal(k_s,  (BATCH, SEQ_LEN, GAZ_DIM), jnp.float32)

    out = forward(params, pe_table, input_ids, pos_indices, umls_indices,
                  dis_gaz, umls_dis_gaz, silver_gaz)
    out = jax.block_until_ready(out)
    assert out.shape == (BATCH, SEQ_LEN, NUM_CLASS) and out.dtype == jnp.float32
    print("KERNEL_OK")
</pallas_src>

<mosaic_0001>
module attributes {stable_mosaic.version = 11 : i64} {
  func.func @encoder_stack_kernel(%arg0: i32, %arg1: i32, %arg2: memref<1x8x40xf32, #tpu.memory_space<vmem>>, %arg3: memref<8x40xf32, #tpu.memory_space<vmem>>, %arg4: memref<1x40x120xbf16, #tpu.memory_space<vmem>>, %arg5: memref<1x40x40xbf16, #tpu.memory_space<vmem>>, %arg6: memref<1x40x64xbf16, #tpu.memory_space<vmem>>, %arg7: memref<1x64x40xbf16, #tpu.memory_space<vmem>>, %arg8: memref<1x8x120xf32, #tpu.memory_space<vmem>>, %arg9: memref<40x128xbf16, #tpu.memory_space<vmem>>, %arg10: memref<1x128xf32, #tpu.memory_space<vmem>>, %arg11: memref<1x8x128xf32, #tpu.memory_space<vmem>>, %arg12: memref<8x40xf32, #tpu.memory_space<vmem>>, %arg13: memref<8x40xf32, #tpu.memory_space<vmem>>) attributes {dimension_semantics = [#tpu.dimension_semantics<parallel>, #tpu.dimension_semantics<arbitrary>], iteration_bounds = array<i64: 2, 6>, scalar_prefetch = 0 : i64, scratch_operands = 2 : i64, tpu.core_type = #tpu.core_type<tc>, window_params = [{transform_indices = @transform_0, window_bounds = array<i64: 1, 8, 40>}, {pipeline_mode = #tpu.pipeline_mode<synchronous>, transform_indices = @transform_1, window_bounds = array<i64: 8, 40>}, {transform_indices = @transform_2, window_bounds = array<i64: 1, 40, 120>}, {transform_indices = @transform_3, window_bounds = array<i64: 1, 40, 40>}, {transform_indices = @transform_4, window_bounds = array<i64: 1, 40, 64>}, {transform_indices = @transform_5, window_bounds = array<i64: 1, 64, 40>}, {transform_indices = @transform_6, window_bounds = array<i64: 1, 8, 120>}, {pipeline_mode = #tpu.pipeline_mode<synchronous>, transform_indices = @transform_7, window_bounds = array<i64: 40, 128>}, {pipeline_mode = #tpu.pipeline_mode<synchronous>, transform_indices = @transform_8, window_bounds = array<i64: 1, 128>}, {transform_indices = @transform_9, window_bounds = array<i64: 1, 8, 128>}]} {
    %c0_i32 = arith.constant 0 : i32
    %0 = arith.cmpi eq, %arg1, %c0_i32 : i32
    %1 = arith.extui %0 : i1 to i32
    %c0_i32_0 = arith.constant 0 : i32
    %2 = arith.cmpi ne, %1, %c0_i32_0 : i32
    scf.if %2 {
      %c0_87 = arith.constant 0 : index
      %c0_88 = arith.constant 0 : index
      %c0_89 = arith.constant 0 : index
      %251 = vector.load %arg2[%c0_87, %c0_88, %c0_89] : memref<1x8x40xf32, #tpu.memory_space<vmem>>, vector<1x8x40xf32>
      %252 = vector.shape_cast %251 : vector<1x8x40xf32> to vector<8x40xf32>
      %c0_90 = arith.constant 0 : index
      %c0_91 = arith.constant 0 : index
      %253 = vector.load %arg3[%c0_90, %c0_91] : memref<8x40xf32, #tpu.memory_space<vmem>>, vector<8x40xf32>
      %254 = arith.addf %252, %253 : vector<8x40xf32>
      %c0_92 = arith.constant 0 : index
      %c0_93 = arith.constant 0 : index
      %255 = vector.load %arg12[%c0_92, %c0_93] : memref<8x40xf32, #tpu.memory_space<vmem>>, vector<8x40xf32>
      tpu.vector_store %arg12[%c0_92, %c0_93], %254 {strides = array<i32>} : memref<8x40xf32, #tpu.memory_space<vmem>>, vector<8x40xf32>,
    } else {
    }
    %c0 = arith.constant 0 : index
    %c0_1 = arith.constant 0 : index
    %3 = vector.load %arg12[%c0, %c0_1] : memref<8x40xf32, #tpu.memory_space<vmem>>, vector<8x40xf32>
    %c0_2 = arith.constant 0 : index
    %c0_3 = arith.constant 0 : index
    %c0_4 = arith.constant 0 : index
    %4 = vector.load %arg8[%c0_2, %c0_3, %c0_4] : memref<1x8x120xf32, #tpu.memory_space<vmem>>, vector<1x8x120xf32>
    %5 = vector.shape_cast %4 : vector<1x8x120xf32> to vector<8x120xf32>
    %6 = vector.extract_strided_slice %5 {offsets = [0, 0], sizes = [1, 120], strides = [1, 1]} : vector<8x120xf32> to vector<1x120xf32>
    %7 = vector.extract_strided_slice %5 {offsets = [1, 0], sizes = [1, 64], strides = [1, 1]} : vector<8x120xf32> to vector<1x64xf32>
    %8 = vector.extract_strided_slice %5 {offsets = [2, 0], sizes = [1, 40], strides = [1, 1]} : vector<8x120xf32> to vector<1x40xf32>
    %9 = vector.extract_strided_slice %5 {offsets = [3, 0], sizes = [1, 40], strides = [1, 1]} : vector<8x120xf32> to vector<1x40xf32>
    %10 = vector.extract_strided_slice %5 {offsets = [4, 0], sizes = [1, 40], strides = [1, 1]} : vector<8x120xf32> to vector<1x40xf32>
    %11 = vector.extract_strided_slice %5 {offsets = [5, 0], sizes = [1, 40], strides = [1, 1]} : vector<8x120xf32> to vector<1x40xf32>
    %12 = vector.extract_strided_slice %5 {offsets = [6, 0], sizes = [1, 40], strides = [1, 1]} : vector<8x120xf32> to vector<1x40xf32>
    %13 = vector.extract_strided_slice %5 {offsets = [7, 0], sizes = [1, 40], strides = [1, 1]} : vector<8x120xf32> to vector<1x40xf32>
    %14 = arith.truncf %3 : vector<8x40xf32> to vector<8x40xbf16>
    %c0_5 = arith.constant 0 : index
    %c0_6 = arith.constant 0 : index
    %c0_7 = arith.constant 0 : index
    %15 = vector.load %arg4[%c0_5, %c0_6, %c0_7] : memref<1x40x120xbf16, #tpu.memory_space<vmem>>, vector<1x40x120xbf16>
    %16 = vector.shape_cast %15 : vector<1x40x120xbf16> to vector<40x120xbf16>
    %cst = arith.constant dense<0.000000e+00> : vector<8x120xf32>
    %17 = tpu.matmul %14, %16, %cst {dimension_numbers = #tpu.dot_dimension_numbers<[1], [0], [0], [1], [0, 0, 1, 1], [], []>} : vector<8x40xbf16>, vector<40x120xbf16>, vector<8x120xf32> -> vector<8x120xf32>
    %18 = vector.broadcast %6 : vector<1x120xf32> to vector<8x120xf32>
    %19 = arith.addf %17, %18 : vector<8x120xf32>
    %20 = vector.extract_strided_slice %19 {offsets = [0, 0], sizes = [8, 4], strides = [1, 1]} : vector<8x120xf32> to vector<8x4xf32>
    %21 = vector.extract_strided_slice %19 {offsets = [0, 40], sizes = [8, 4], strides = [1, 1]} : vector<8x120xf32> to vector<8x4xf32>
    %22 = vector.extract_strided_slice %19 {offsets = [0, 80], sizes = [8, 4], strides = [1, 1]} : vector<8x120xf32> to vector<8x4xf32>
    %cst_8 = arith.constant dense<0.000000e+00> : vector<8x8xf32>
    %23 = tpu.matmul %20, %21, %cst_8 {dimension_numbers = #tpu.dot_dimension_numbers<[1], [1], [0], [0], [0, 0, 1, 0], [], []>} : vector<8x4xf32>, vector<8x4xf32>, vector<8x8xf32> -> vector<8x8xf32>
    %cst_9 = arith.constant dense<0xFF800000> : vector<8xf32>
    %24 = vector.multi_reduction <maximumf>, %23, %cst_9 [1] : vector<8x8xf32> to vector<8xf32>
    %25 = vector.shape_cast %24 : vector<8xf32> to vector<8x1xf32>
    %26 = vector.broadcast %25 : vector<8x1xf32> to vector<8x8xf32>
    %27 = arith.subf %23, %26 : vector<8x8xf32>
    %28 = math.exp %27 : vector<8x8xf32>
    %cst_10 = arith.constant dense<0.000000e+00> : vector<8xf32>
    %29 = vector.multi_reduction <add>, %28, %cst_10 [1] : vector<8x8xf32> to vector<8xf32>
    %30 = vector.shape_cast %29 : vector<8xf32> to vector<8x1xf32>
    %31 = tpu.reciprocal %30 {approx = true} : vector<8x1xf32> -> vector<8x1xf32>
    %32 = vector.broadcast %31 : vector<8x1xf32> to vector<8x8xf32>
    %33 = arith.mulf %28, %32 : vector<8x8xf32>
    %cst_11 = arith.constant dense<0.000000e+00> : vector<8x4xf32>
    %34 = tpu.matmul %33, %22, %cst_11 {dimension_numbers = #tpu.dot_dimension_numbers<[1], [0], [0], [1], [0, 0, 1, 1], [], []>} : vector<8x8xf32>, vector<8x4xf32>, vector<8x4xf32> -> vector<8x4xf32>
    %c0_12 = arith.constant 0 : index
    %c0_13 = arith.constant 0 : index
    %35 = vector.load %arg13[%c0_12, %c0_13] : memref<8x40xf32, #tpu.memory_space<vmem>>, vector<8x4xf32>
    tpu.vector_store %arg13[%c0_12, %c0_13], %34 {strides = array<i32>} : memref<8x40xf32, #tpu.memory_space<vmem>>, vector<8x4xf32>,
    %36 = vector.extract_strided_slice %19 {offsets = [0, 4], sizes = [8, 4], strides = [1, 1]} : vector<8x120xf32> to vector<8x4xf32>
    %37 = vector.extract_strided_slice %19 {offsets = [0, 44], sizes = [8, 4], strides = [1, 1]} : vector<8x120xf32> to vector<8x4xf32>
    %38 = vector.extract_strided_slice %19 {offsets = [0, 84], sizes = [8, 4], strides = [1, 1]} : vector<8x120xf32> to vector<8x4xf32>
    %cst_14 = arith.constant dense<0.000000e+00> : vector<8x8xf32>
    %39 = tpu.matmul %36, %37, %cst_14 {dimension_numbers = #tpu.dot_dimension_numbers<[1], [1], [0], [0], [0, 0, 1, 0], [], []>} : vector<8x4xf32>, vector<8x4xf32>, vector<8x8xf32> -> vector<8x8xf32>
    %cst_15 = arith.constant dense<0xFF800000> : vector<8xf32>
    %40 = vector.multi_reduction <maximumf>, %39, %cst_15 [1] : vector<8x8xf32> to vector<8xf32>
    %41 = vector.shape_cast %40 : vector<8xf32> to vector<8x1xf32>
    %42 = vector.broadcast %41 : vector<8x1xf32> to vector<8x8xf32>
    %43 = arith.subf %39, %42 : vector<8x8xf32>
    %44 = math.exp %43 : vector<8x8xf32>
    %cst_16 = arith.constant dense<0.000000e+00> : vector<8xf32>
    %45 = vector.multi_reduction <add>, %44, %cst_16 [1] : vector<8x8xf32> to vector<8xf32>
    %46 = vector.shape_cast %45 : vector<8xf32> to vector<8x1xf32>
    %47 = tpu.reciprocal %46 {approx = true} : vector<8x1xf32> -> vector<8x1xf32>
    %48 = vector.broadcast %47 : vector<8x1xf32> to vector<8x8xf32>
    %49 = arith.mulf %44, %48 : vector<8x8xf32>
    %cst_17 = arith.constant dense<0.000000e+00> : vector<8x4xf32>
    %50 = tpu.matmul %49, %38, %cst_17 {dimension_numbers = #tpu.dot_dimension_numbers<[1], [0], [0], [1], [0, 0, 1, 1], [], []>} : vector<8x8xf32>, vector<8x4xf32>, vector<8x4xf32> -> vector<8x4xf32>
    %c0_18 = arith.constant 0 : index
    %c4 = arith.constant 4 : index
    %51 = vector.load %arg13[%c0_18, %c4] : memref<8x40xf32, #tpu.memory_space<vmem>>, vector<8x4xf32>
    tpu.vector_store %arg13[%c0_18, %c4], %50 {strides = array<i32>} : memref<8x40xf32, #tpu.memory_space<vmem>>, vector<8x4xf32>,
    %52 = vector.extract_strided_slice %19 {offsets = [0, 8], sizes = [8, 4], strides = [1, 1]} : vector<8x120xf32> to vector<8x4xf32>
    %53 = vector.extract_strided_slice %19 {offsets = [0, 48], sizes = [8, 4], strides = [1, 1]} : vector<8x120xf32> to vector<8x4xf32>
    %54 = vector.extract_strided_slice %19 {offsets = [0, 88], sizes = [8, 4], strides = [1, 1]} : vector<8x120xf32> to vector<8x4xf32>
    %cst_19 = arith.constant dense<0.000000e+00> : vector<8x8xf32>
    %55 = tpu.matmul %52, %53, %cst_19 {dimension_numbers = #tpu.dot_dimension_numbers<[1], [1], [0], [0], [0, 0, 1, 0], [], []>} : vector<8x4xf32>, vector<8x4xf32>, vector<8x8xf32> -> vector<8x8xf32>
    %cst_20 = arith.constant dense<0xFF800000> : vector<8xf32>
    %56 = vector.multi_reduction <maximumf>, %55, %cst_20 [1] : vector<8x8xf32> to vector<8xf32>
    %57 = vector.shape_cast %56 : vector<8xf32> to vector<8x1xf32>
    %58 = vector.broadcast %57 : vector<8x1xf32> to vector<8x8xf32>
    %59 = arith.subf %55, %58 : vector<8x8xf32>
    %60 = math.exp %59 : vector<8x8xf32>
    %cst_21 = arith.constant dense<0.000000e+00> : vector<8xf32>
    %61 = vector.multi_reduction <add>, %60, %cst_21 [1] : vector<8x8xf32> to vector<8xf32>
    %62 = vector.shape_cast %61 : vector<8xf32> to vector<8x1xf32>
    %63 = tpu.reciprocal %62 {approx = true} : vector<8x1xf32> -> vector<8x1xf32>
    %64 = vector.broadcast %63 : vector<8x1xf32> to vector<8x8xf32>
    %65 = arith.mulf %60, %64 : vector<8x8xf32>
    %cst_22 = arith.constant dense<0.000000e+00> : vector<8x4xf32>
    %66 = tpu.matmul %65, %54, %cst_22 {dimension_numbers = #tpu.dot_dimension_numbers<[1], [0], [0], [1], [0, 0, 1, 1], [], []>} : vector<8x8xf32>, vector<8x4xf32>, vector<8x4xf32> -> vector<8x4xf32>
    %c0_23 = arith.constant 0 : index
    %c8 = arith.constant 8 : index
    %67 = vector.load %arg13[%c0_23, %c8] : memref<8x40xf32, #tpu.memory_space<vmem>>, vector<8x4xf32>
    tpu.vector_store %arg13[%c0_23, %c8], %66 {strides = array<i32>} : memref<8x40xf32, #tpu.memory_space<vmem>>, vector<8x4xf32>,
    %68 = vector.extract_strided_slice %19 {offsets = [0, 12], sizes = [8, 4], strides = [1, 1]} : vector<8x120xf32> to vector<8x4xf32>
    %69 = vector.extract_strided_slice %19 {offsets = [0, 52], sizes = [8, 4], strides = [1, 1]} : vector<8x120xf32> to vector<8x4xf32>
    %70 = vector.extract_strided_slice %19 {offsets = [0, 92], sizes = [8, 4], strides = [1, 1]} : vector<8x120xf32> to vector<8x4xf32>
    %cst_24 = arith.constant dense<0.000000e+00> : vector<8x8xf32>
    %71 = tpu.matmul %68, %69, %cst_24 {dimension_numbers = #tpu.dot_dimension_numbers<[1], [1], [0], [0], [0, 0, 1, 0], [], []>} : vector<8x4xf32>, vector<8x4xf32>, vector<8x8xf32> -> vector<8x8xf32>
    %cst_25 = arith.constant dense<0xFF800000> : vector<8xf32>
    %72 = vector.multi_reduction <maximumf>, %71, %cst_25 [1] : vector<8x8xf32> to vector<8xf32>
    %73 = vector.shape_cast %72 : vector<8xf32> to vector<8x1xf32>
    %74 = vector.broadcast %73 : vector<8x1xf32> to vector<8x8xf32>
    %75 = arith.subf %71, %74 : vector<8x8xf32>
    %76 = math.exp %75 : vector<8x8xf32>
    %cst_26 = arith.constant dense<0.000000e+00> : vector<8xf32>
    %77 = vector.multi_reduction <add>, %76, %cst_26 [1] : vector<8x8xf32> to vector<8xf32>
    %78 = vector.shape_cast %77 : vector<8xf32> to vector<8x1xf32>
    %79 = tpu.reciprocal %78 {approx = true} : vector<8x1xf32> -> vector<8x1xf32>
    %80 = vector.broadcast %79 : vector<8x1xf32> to vector<8x8xf32>
    %81 = arith.mulf %76, %80 : vector<8x8xf32>
    %cst_27 = arith.constant dense<0.000000e+00> : vector<8x4xf32>
    %82 = tpu.matmul %81, %70, %cst_27 {dimension_numbers = #tpu.dot_dimension_numbers<[1], [0], [0], [1], [0, 0, 1, 1], [], []>} : vector<8x8xf32>, vector<8x4xf32>, vector<8x4xf32> -> vector<8x4xf32>
    %c0_28 = arith.constant 0 : index
    %c12 = arith.constant 12 : index
    %83 = vector.load %arg13[%c0_28, %c12] : memref<8x40xf32, #tpu.memory_space<vmem>>, vector<8x4xf32>
    tpu.vector_store %arg13[%c0_28, %c12], %82 {strides = array<i32>} : memref<8x40xf32, #tpu.memory_space<vmem>>, vector<8x4xf32>,
    %84 = vector.extract_strided_slice %19 {offsets = [0, 16], sizes = [8, 4], strides = [1, 1]} : vector<8x120xf32> to vector<8x4xf32>
    %85 = vector.extract_strided_slice %19 {offsets = [0, 56], sizes = [8, 4], strides = [1, 1]} : vector<8x120xf32> to vector<8x4xf32>
    %86 = vector.extract_strided_slice %19 {offsets = [0, 96], sizes = [8, 4], strides = [1, 1]} : vector<8x120xf32> to vector<8x4xf32>
    %cst_29 = arith.constant dense<0.000000e+00> : vector<8x8xf32>
    %87 = tpu.matmul %84, %85, %cst_29 {dimension_numbers = #tpu.dot_dimension_numbers<[1], [1], [0], [0], [0, 0, 1, 0], [], []>} : vector<8x4xf32>, vector<8x4xf32>, vector<8x8xf32> -> vector<8x8xf32>
    %cst_30 = arith.constant dense<0xFF800000> : vector<8xf32>
    %88 = vector.multi_reduction <maximumf>, %87, %cst_30 [1] : vector<8x8xf32> to vector<8xf32>
    %89 = vector.shape_cast %88 : vector<8xf32> to vector<8x1xf32>
    %90 = vector.broadcast %89 : vector<8x1xf32> to vector<8x8xf32>
    %91 = arith.subf %87, %90 : vector<8x8xf32>
    %92 = math.exp %91 : vector<8x8xf32>
    %cst_31 = arith.constant dense<0.000000e+00> : vector<8xf32>
    %93 = vector.multi_reduction <add>, %92, %cst_31 [1] : vector<8x8xf32> to vector<8xf32>
    %94 = vector.shape_cast %93 : vector<8xf32> to vector<8x1xf32>
    %95 = tpu.reciprocal %94 {approx = true} : vector<8x1xf32> -> vector<8x1xf32>
    %96 = vector.broadcast %95 : vector<8x1xf32> to vector<8x8xf32>
    %97 = arith.mulf %92, %96 : vector<8x8xf32>
    %cst_32 = arith.constant dense<0.000000e+00> : vector<8x4xf32>
    %98 = tpu.matmul %97, %86, %cst_32 {dimension_numbers = #tpu.dot_dimension_numbers<[1], [0], [0], [1], [0, 0, 1, 1], [], []>} : vector<8x8xf32>, vector<8x4xf32>, vector<8x4xf32> -> vector<8x4xf32>
    %c0_33 = arith.constant 0 : index
    %c16 = arith.constant 16 : index
    %99 = vector.load %arg13[%c0_33, %c16] : memref<8x40xf32, #tpu.memory_space<vmem>>, vector<8x4xf32>
    tpu.vector_store %arg13[%c0_33, %c16], %98 {strides = array<i32>} : memref<8x40xf32, #tpu.memory_space<vmem>>, vector<8x4xf32>,
    %100 = vector.extract_strided_slice %19 {offsets = [0, 20], sizes = [8, 4], strides = [1, 1]} : vector<8x120xf32> to vector<8x4xf32>
    %101 = vector.extract_strided_slice %19 {offsets = [0, 60], sizes = [8, 4], strides = [1, 1]} : vector<8x120xf32> to vector<8x4xf32>
    %102 = vector.extract_strided_slice %19 {offsets = [0, 100], sizes = [8, 4], strides = [1, 1]} : vector<8x120xf32> to vector<8x4xf32>
    %cst_34 = arith.constant dense<0.000000e+00> : vector<8x8xf32>
    %103 = tpu.matmul %100, %101, %cst_34 {dimension_numbers = #tpu.dot_dimension_numbers<[1], [1], [0], [0], [0, 0, 1, 0], [], []>} : vector<8x4xf32>, vector<8x4xf32>, vector<8x8xf32> -> vector<8x8xf32>
    %cst_35 = arith.constant dense<0xFF800000> : vector<8xf32>
    %104 = vector.multi_reduction <maximumf>, %103, %cst_35 [1] : vector<8x8xf32> to vector<8xf32>
    %105 = vector.shape_cast %104 : vector<8xf32> to vector<8x1xf32>
    %106 = vector.broadcast %105 : vector<8x1xf32> to vector<8x8xf32>
    %107 = arith.subf %103, %106 : vector<8x8xf32>
    %108 = math.exp %107 : vector<8x8xf32>
    %cst_36 = arith.constant dense<0.000000e+00> : vector<8xf32>
    %109 = vector.multi_reduction <add>, %108, %cst_36 [1] : vector<8x8xf32> to vector<8xf32>
    %110 = vector.shape_cast %109 : vector<8xf32> to vector<8x1xf32>
    %111 = tpu.reciprocal %110 {approx = true} : vector<8x1xf32> -> vector<8x1xf32>
    %112 = vector.broadcast %111 : vector<8x1xf32> to vector<8x8xf32>
    %113 = arith.mulf %108, %112 : vector<8x8xf32>
    %cst_37 = arith.constant dense<0.000000e+00> : vector<8x4xf32>
    %114 = tpu.matmul %113, %102, %cst_37 {dimension_numbers = #tpu.dot_dimension_numbers<[1], [0], [0], [1], [0, 0, 1, 1], [], []>} : vector<8x8xf32>, vector<8x4xf32>, vector<8x4xf32> -> vector<8x4xf32>
    %c0_38 = arith.constant 0 : index
    %c20 = arith.constant 20 : index
    %115 = vector.load %arg13[%c0_38, %c20] : memref<8x40xf32, #tpu.memory_space<vmem>>, vector<8x4xf32>
    tpu.vector_store %arg13[%c0_38, %c20], %114 {strides = array<i32>} : memref<8x40xf32, #tpu.memory_space<vmem>>, vector<8x4xf32>,
    %116 = vector.extract_strided_slice %19 {offsets = [0, 24], sizes = [8, 4], strides = [1, 1]} : vector<8x120xf32> to vector<8x4xf32>
    %117 = vector.extract_strided_slice %19 {offsets = [0, 64], sizes = [8, 4], strides = [1, 1]} : vector<8x120xf32> to vector<8x4xf32>
    %118 = vector.extract_strided_slice %19 {offsets = [0, 104], sizes = [8, 4], strides = [1, 1]} : vector<8x120xf32> to vector<8x4xf32>
    %cst_39 = arith.constant dense<0.000000e+00> : vector<8x8xf32>
    %119 = tpu.matmul %116, %117, %cst_39 {dimension_numbers = #tpu.dot_dimension_numbers<[1], [1], [0], [0], [0, 0, 1, 0], [], []>} : vector<8x4xf32>, vector<8x4xf32>, vector<8x8xf32> -> vector<8x8xf32>
    %cst_40 = arith.constant dense<0xFF800000> : vector<8xf32>
    %120 = vector.multi_reduction <maximumf>, %119, %cst_40 [1] : vector<8x8xf32> to vector<8xf32>
    %121 = vector.shape_cast %120 : vector<8xf32> to vector<8x1xf32>
    %122 = vector.broadcast %121 : vector<8x1xf32> to vector<8x8xf32>
    %123 = arith.subf %119, %122 : vector<8x8xf32>
    %124 = math.exp %123 : vector<8x8xf32>
    %cst_41 = arith.constant dense<0.000000e+00> : vector<8xf32>
    %125 = vector.multi_reduction <add>, %124, %cst_41 [1] : vector<8x8xf32> to vector<8xf32>
    %126 = vector.shape_cast %125 : vector<8xf32> to vector<8x1xf32>
    %127 = tpu.reciprocal %126 {approx = true} : vector<8x1xf32> -> vector<8x1xf32>
    %128 = vector.broadcast %127 : vector<8x1xf32> to vector<8x8xf32>
    %129 = arith.mulf %124, %128 : vector<8x8xf32>
    %cst_42 = arith.constant dense<0.000000e+00> : vector<8x4xf32>
    %130 = tpu.matmul %129, %118, %cst_42 {dimension_numbers = #tpu.dot_dimension_numbers<[1], [0], [0], [1], [0, 0, 1, 1], [], []>} : vector<8x8xf32>, vector<8x4xf32>, vector<8x4xf32> -> vector<8x4xf32>
    %c0_43 = arith.constant 0 : index
    %c24 = arith.constant 24 : index
    %131 = vector.load %arg13[%c0_43, %c24] : memref<8x40xf32, #tpu.memory_space<vmem>>, vector<8x4xf32>
    tpu.vector_store %arg13[%c0_43, %c24], %130 {strides = array<i32>} : memref<8x40xf32, #tpu.memory_space<vmem>>, vector<8x4xf32>,
    %132 = vector.extract_strided_slice %19 {offsets = [0, 28], sizes = [8, 4], strides = [1, 1]} : vector<8x120xf32> to vector<8x4xf32>
    %133 = vector.extract_strided_slice %19 {offsets = [0, 68], sizes = [8, 4], strides = [1, 1]} : vector<8x120xf32> to vector<8x4xf32>
    %134 = vector.extract_strided_slice %19 {offsets = [0, 108], sizes = [8, 4], strides = [1, 1]} : vector<8x120xf32> to vector<8x4xf32>
    %cst_44 = arith.constant dense<0.000000e+00> : vector<8x8xf32>
    %135 = tpu.matmul %132, %133, %cst_44 {dimension_numbers = #tpu.dot_dimension_numbers<[1], [1], [0], [0], [0, 0, 1, 0], [], []>} : vector<8x4xf32>, vector<8x4xf32>, vector<8x8xf32> -> vector<8x8xf32>
    %cst_45 = arith.constant dense<0xFF800000> : vector<8xf32>
    %136 = vector.multi_reduction <maximumf>, %135, %cst_45 [1] : vector<8x8xf32> to vector<8xf32>
    %137 = vector.shape_cast %136 : vector<8xf32> to vector<8x1xf32>
    %138 = vector.broadcast %137 : vector<8x1xf32> to vector<8x8xf32>
    %139 = arith.subf %135, %138 : vector<8x8xf32>
    %140 = math.exp %139 : vector<8x8xf32>
    %cst_46 = arith.constant dense<0.000000e+00> : vector<8xf32>
    %141 = vector.multi_reduction <add>, %140, %cst_46 [1] : vector<8x8xf32> to vector<8xf32>
    %142 = vector.shape_cast %141 : vector<8xf32> to vector<8x1xf32>
    %143 = tpu.reciprocal %142 {approx = true} : vector<8x1xf32> -> vector<8x1xf32>
    %144 = vector.broadcast %143 : vector<8x1xf32> to vector<8x8xf32>
    %145 = arith.mulf %140, %144 : vector<8x8xf32>
    %cst_47 = arith.constant dense<0.000000e+00> : vector<8x4xf32>
    %146 = tpu.matmul %145, %134, %cst_47 {dimension_numbers = #tpu.dot_dimension_numbers<[1], [0], [0], [1], [0, 0, 1, 1], [], []>} : vector<8x8xf32>, vector<8x4xf32>, vector<8x4xf32> -> vector<8x4xf32>
    %c0_48 = arith.constant 0 : index
    %c28 = arith.constant 28 : index
    %147 = vector.load %arg13[%c0_48, %c28] : memref<8x40xf32, #tpu.memory_space<vmem>>, vector<8x4xf32>
    tpu.vector_store %arg13[%c0_48, %c28], %146 {strides = array<i32>} : memref<8x40xf32, #tpu.memory_space<vmem>>, vector<8x4xf32>,
    %148 = vector.extract_strided_slice %19 {offsets = [0, 32], sizes = [8, 4], strides = [1, 1]} : vector<8x120xf32> to vector<8x4xf32>
    %149 = vector.extract_strided_slice %19 {offsets = [0, 72], sizes = [8, 4], strides = [1, 1]} : vector<8x120xf32> to vector<8x4xf32>
    %150 = vector.extract_strided_slice %19 {offsets = [0, 112], sizes = [8, 4], strides = [1, 1]} : vector<8x120xf32> to vector<8x4xf32>
    %cst_49 = arith.constant dense<0.000000e+00> : vector<8x8xf32>
    %151 = tpu.matmul %148, %149, %cst_49 {dimension_numbers = #tpu.dot_dimension_numbers<[1], [1], [0], [0], [0, 0, 1, 0], [], []>} : vector<8x4xf32>, vector<8x4xf32>, vector<8x8xf32> -> vector<8x8xf32>
    %cst_50 = arith.constant dense<0xFF800000> : vector<8xf32>
    %152 = vector.multi_reduction <maximumf>, %151, %cst_50 [1] : vector<8x8xf32> to vector<8xf32>
    %153 = vector.shape_cast %152 : vector<8xf32> to vector<8x1xf32>
    %154 = vector.broadcast %153 : vector<8x1xf32> to vector<8x8xf32>
    %155 = arith.subf %151, %154 : vector<8x8xf32>
    %156 = math.exp %155 : vector<8x8xf32>
    %cst_51 = arith.constant dense<0.000000e+00> : vector<8xf32>
    %157 = vector.multi_reduction <add>, %156, %cst_51 [1] : vector<8x8xf32> to vector<8xf32>
    %158 = vector.shape_cast %157 : vector<8xf32> to vector<8x1xf32>
    %159 = tpu.reciprocal %158 {approx = true} : vector<8x1xf32> -> vector<8x1xf32>
    %160 = vector.broadcast %159 : vector<8x1xf32> to vector<8x8xf32>
    %161 = arith.mulf %156, %160 : vector<8x8xf32>
    %cst_52 = arith.constant dense<0.000000e+00> : vector<8x4xf32>
    %162 = tpu.matmul %161, %150, %cst_52 {dimension_numbers = #tpu.dot_dimension_numbers<[1], [0], [0], [1], [0, 0, 1, 1], [], []>} : vector<8x8xf32>, vector<8x4xf32>, vector<8x4xf32> -> vector<8x4xf32>
    %c0_53 = arith.constant 0 : index
    %c32 = arith.constant 32 : index
    %163 = vector.load %arg13[%c0_53, %c32] : memref<8x40xf32, #tpu.memory_space<vmem>>, vector<8x4xf32>
    tpu.vector_store %arg13[%c0_53, %c32], %162 {strides = array<i32>} : memref<8x40xf32, #tpu.memory_space<vmem>>, vector<8x4xf32>,
    %164 = vector.extract_strided_slice %19 {offsets = [0, 36], sizes = [8, 4], strides = [1, 1]} : vector<8x120xf32> to vector<8x4xf32>
    %165 = vector.extract_strided_slice %19 {offsets = [0, 76], sizes = [8, 4], strides = [1, 1]} : vector<8x120xf32> to vector<8x4xf32>
    %166 = vector.extract_strided_slice %19 {offsets = [0, 116], sizes = [8, 4], strides = [1, 1]} : vector<8x120xf32> to vector<8x4xf32>
    %cst_54 = arith.constant dense<0.000000e+00> : vector<8x8xf32>
    %167 = tpu.matmul %164, %165, %cst_54 {dimension_numbers = #tpu.dot_dimension_numbers<[1], [1], [0], [0], [0, 0, 1, 0], [], []>} : vector<8x4xf32>, vector<8x4xf32>, vector<8x8xf32> -> vector<8x8xf32>
    %cst_55 = arith.constant dense<0xFF800000> : vector<8xf32>
    %168 = vector.multi_reduction <maximumf>, %167, %cst_55 [1] : vector<8x8xf32> to vector<8xf32>
    %169 = vector.shape_cast %168 : vector<8xf32> to vector<8x1xf32>
    %170 = vector.broadcast %169 : vector<8x1xf32> to vector<8x8xf32>
    %171 = arith.subf %167, %170 : vector<8x8xf32>
    %172 = math.exp %171 : vector<8x8xf32>
    %cst_56 = arith.constant dense<0.000000e+00> : vector<8xf32>
    %173 = vector.multi_reduction <add>, %172, %cst_56 [1] : vector<8x8xf32> to vector<8xf32>
    %174 = vector.shape_cast %173 : vector<8xf32> to vector<8x1xf32>
    %175 = tpu.reciprocal %174 {approx = true} : vector<8x1xf32> -> vector<8x1xf32>
    %176 = vector.broadcast %175 : vector<8x1xf32> to vector<8x8xf32>
    %177 = arith.mulf %172, %176 : vector<8x8xf32>
    %cst_57 = arith.constant dense<0.000000e+00> : vector<8x4xf32>
    %178 = tpu.matmul %177, %166, %cst_57 {dimension_numbers = #tpu.dot_dimension_numbers<[1], [0], [0], [1], [0, 0, 1, 1], [], []>} : vector<8x8xf32>, vector<8x4xf32>, vector<8x4xf32> -> vector<8x4xf32>
    %c0_58 = arith.constant 0 : index
    %c36 = arith.constant 36 : index
    %179 = vector.load %arg13[%c0_58, %c36] : memref<8x40xf32, #tpu.memory_space<vmem>>, vector<8x4xf32>
    tpu.vector_store %arg13[%c0_58, %c36], %178 {strides = array<i32>} : memref<8x40xf32, #tpu.memory_space<vmem>>, vector<8x4xf32>,
    %c0_59 = arith.constant 0 : index
    %c0_60 = arith.constant 0 : index
    %180 = vector.load %arg13[%c0_59, %c0_60] : memref<8x40xf32, #tpu.memory_space<vmem>>, vector<8x40xf32>
    %181 = arith.truncf %180 : vector<8x40xf32> to vector<8x40xbf16>
    %c0_61 = arith.constant 0 : index
    %c0_62 = arith.constant 0 : index
    %c0_63 = arith.constant 0 : index
    %182 = vector.load %arg5[%c0_61, %c0_62, %c0_63] : memref<1x40x40xbf16, #tpu.memory_space<vmem>>, vector<1x40x40xbf16>
    %183 = vector.shape_cast %182 : vector<1x40x40xbf16> to vector<40x40xbf16>
    %cst_64 = arith.constant dense<0.000000e+00> : vector<8x40xf32>
    %184 = tpu.matmul %181, %183, %cst_64 {dimension_numbers = #tpu.dot_dimension_numbers<[1], [0], [0], [1], [0, 0, 1, 1], [], []>} : vector<8x40xbf16>, vector<40x40xbf16>, vector<8x40xf32> -> vector<8x40xf32>
    %185 = vector.broadcast %8 : vector<1x40xf32> to vector<8x40xf32>
    %186 = arith.addf %184, %185 : vector<8x40xf32>
    %187 = arith.addf %3, %186 : vector<8x40xf32>
    %cst_65 = arith.constant dense<0.000000e+00> : vector<8xf32>
    %188 = vector.multi_reduction <add>, %187, %cst_65 [1] : vector<8x40xf32> to vector<8xf32>
    %189 = vector.shape_cast %188 : vector<8xf32> to vector<8x1xf32>
    %cst_66 = arith.constant 4.000000e+01 : f32
    %190 = vector.broadcast %cst_66 : f32 to vector<8x1xf32>
    %191 = arith.divf %189, %190 : vector<8x1xf32>
    %192 = vector.broadcast %191 : vector<8x1xf32> to vector<8x40xf32>
    %193 = arith.subf %187, %192 : vector<8x40xf32>
    %194 = arith.mulf %193, %193 : vector<8x40xf32>
    %cst_67 = arith.constant dense<0.000000e+00> : vector<8xf32>
    %195 = vector.multi_reduction <add>, %194, %cst_67 [1] : vector<8x40xf32> to vector<8xf32>
    %196 = vector.shape_cast %195 : vector<8xf32> to vector<8x1xf32>
    %cst_68 = arith.constant 4.000000e+01 : f32
    %197 = vector.broadcast %cst_68 : f32 to vector<8x1xf32>
    %198 = arith.divf %196, %197 : vector<8x1xf32>
    %199 = vector.broadcast %191 : vector<8x1xf32> to vector<8x40xf32>
    %200 = arith.subf %187, %199 : vector<8x40xf32>
    %cst_69 = arith.constant 9.99999974E-6 : f32
    %201 = vector.broadcast %cst_69 : f32 to vector<8x1xf32>
    %202 = arith.addf %198, %201 : vector<8x1xf32>
    %203 = math.rsqrt %202 : vector<8x1xf32>
    %204 = vector.broadcast %203 : vector<8x1xf32> to vector<8x40xf32>
    %205 = arith.mulf %200, %204 : vector<8x40xf32>
    %206 = vector.broadcast %9 : vector<1x40xf32> to vector<8x40xf32>
    %207 = arith.mulf %205, %206 : vector<8x40xf32>
    %208 = vector.broadcast %10 : vector<1x40xf32> to vector<8x40xf32>
    %209 = arith.addf %207, %208 : vector<8x40xf32>
    %210 = arith.truncf %209 : vector<8x40xf32> to vector<8x40xbf16>
    %c0_70 = arith.constant 0 : index
    %c0_71 = arith.constant 0 : index
    %c0_72 = arith.constant 0 : index
    %211 = vector.load %arg6[%c0_70, %c0_71, %c0_72] : memref<1x40x64xbf16, #tpu.memory_space<vmem>>, vector<1x40x64xbf16>
    %212 = vector.shape_cast %211 : vector<1x40x64xbf16> to vector<40x64xbf16>
    %cst_73 = arith.constant dense<0.000000e+00> : vector<8x64xf32>
    %213 = tpu.matmul %210, %212, %cst_73 {dimension_numbers = #tpu.dot_dimension_numbers<[1], [0], [0], [1], [0, 0, 1, 1], [], []>} : vector<8x40xbf16>, vector<40x64xbf16>, vector<8x64xf32> -> vector<8x64xf32>
    %214 = vector.broadcast %7 : vector<1x64xf32> to vector<8x64xf32>
    %215 = arith.addf %213, %214 : vector<8x64xf32>
    %cst_74 = arith.constant 0.000000e+00 : f32
    %216 = vector.broadcast %cst_74 : f32 to vector<8x64xf32>
    %217 = arith.maximumf %215, %216 : vector<8x64xf32>
    %218 = arith.truncf %217 : vector<8x64xf32> to vector<8x64xbf16>
    %c0_75 = arith.constant 0 : index
    %c0_76 = arith.constant 0 : index
    %c0_77 = arith.constant 0 : index
    %219 = vector.load %arg7[%c0_75, %c0_76, %c0_77] : memref<1x64x40xbf16, #tpu.memory_space<vmem>>, vector<1x64x40xbf16>
    %220 = vector.shape_cast %219 : vector<1x64x40xbf16> to vector<64x40xbf16>
    %cst_78 = arith.constant dense<0.000000e+00> : vector<8x40xf32>
    %221 = tpu.matmul %218, %220, %cst_78 {dimension_numbers = #tpu.dot_dimension_numbers<[1], [0], [0], [1], [0, 0, 1, 1], [], []>} : vector<8x64xbf16>, vector<64x40xbf16>, vector<8x40xf32> -> vector<8x40xf32>
    %222 = vector.broadcast %11 : vector<1x40xf32> to vector<8x40xf32>
    %223 = arith.addf %221, %222 : vector<8x40xf32>
    %224 = arith.addf %209, %223 : vector<8x40xf32>
    %cst_79 = arith.constant dense<0.000000e+00> : vector<8xf32>
    %225 = vector.multi_reduction <add>, %224, %cst_79 [1] : vector<8x40xf32> to vector<8xf32>
    %226 = vector.shape_cast %225 : vector<8xf32> to vector<8x1xf32>
    %cst_80 = arith.constant 4.000000e+01 : f32
    %227 = vector.broadcast %cst_80 : f32 to vector<8x1xf32>
    %228 = arith.divf %226, %227 : vector<8x1xf32>
    %229 = vector.broadcast %228 : vector<8x1xf32> to vector<8x40xf32>
    %230 = arith.subf %224, %229 : vector<8x40xf32>
    %231 = arith.mulf %230, %230 : vector<8x40xf32>
    %cst_81 = arith.constant dense<0.000000e+00> : vector<8xf32>
    %232 = vector.multi_reduction <add>, %231, %cst_81 [1] : vector<8x40xf32> to vector<8xf32>
    %233 = vector.shape_cast %232 : vector<8xf32> to vector<8x1xf32>
    %cst_82 = arith.constant 4.000000e+01 : f32
    %234 = vector.broadcast %cst_82 : f32 to vector<8x1xf32>
    %235 = arith.divf %233, %234 : vector<8x1xf32>
    %236 = vector.broadcast %228 : vector<8x1xf32> to vector<8x40xf32>
    %237 = arith.subf %224, %236 : vector<8x40xf32>
    %cst_83 = arith.constant 9.99999974E-6 : f32
    %238 = vector.broadcast %cst_83 : f32 to vector<8x1xf32>
    %239 = arith.addf %235, %238 : vector<8x1xf32>
    %240 = math.rsqrt %239 : vector<8x1xf32>
    %241 = vector.broadcast %240 : vector<8x1xf32> to vector<8x40xf32>
    %242 = arith.mulf %237, %241 : vector<8x40xf32>
    %243 = vector.broadcast %12 : vector<1x40xf32> to vector<8x40xf32>
    %244 = arith.mulf %242, %243 : vector<8x40xf32>
    %245 = vector.broadcast %13 : vector<1x40xf32> to vector<8x40xf32>
    %246 = arith.addf %244, %245 : vector<8x40xf32>
    %c0_84 = arith.constant 0 : index
    %c0_85 = arith.constant 0 : index
    %247 = vector.load %arg12[%c0_84, %c0_85] : memref<8x40xf32, #tpu.memory_space<vmem>>, vector<8x40xf32>
    tpu.vector_store %arg12[%c0_84, %c0_85], %246 {strides = array<i32>} : memref<8x40xf32, #tpu.memory_space<vmem>>, vector<8x40xf32>,
    %c5_i32 = arith.constant 5 : i32
    %248 = arith.cmpi eq, %arg1, %c5_i32 : i32
    %249 = arith.extui %248 : i1 to i32
    %c0_i32_86 = arith.constant 0 : i32
    %250 = arith.cmpi ne, %249, %c0_i32_86 : i32
    scf.if %250 {
      %251 = arith.truncf %246 : vector<8x40xf32> to vector<8x40xbf16>
      %c0_87 = arith.constant 0 : index
      %c0_88 = arith.constant 0 : index
      %252 = vector.load %arg9[%c0_87, %c0_88] : memref<40x128xbf16, #tpu.memory_space<vmem>>, vector<40x128xbf16>
      %cst_89 = arith.constant dense<0.000000e+00> : vector<8x128xf32>
      %253 = tpu.matmul %251, %252, %cst_89 {dimension_numbers = #tpu.dot_dimension_numbers<[1], [0], [0], [1], [0, 0, 1, 1], [], []>} : vector<8x40xbf16>, vector<40x128xbf16>, vector<8x128xf32> -> vector<8x128xf32>
      %c0_90 = arith.constant 0 : index
      %c0_91 = arith.constant 0 : index
      %254 = vector.load %arg10[%c0_90, %c0_91] : memref<1x128xf32, #tpu.memory_space<vmem>>, vector<1x128xf32>
      %255 = vector.broadcast %254 : vector<1x128xf32> to vector<8x128xf32>
      %256 = arith.addf %253, %255 : vector<8x128xf32>
      %c0_92 = arith.constant 0 : index
      %c0_93 = arith.constant 0 : index
      %c0_94 = arith.constant 0 : index
      %257 = vector.load %arg11[%c0_92, %c0_93, %c0_94] : memref<1x8x128xf32, #tpu.memory_space<vmem>>, vector<1x8x128xf32>
      %258 = vector.shape_cast %257 : vector<1x8x128xf32> to vector<8x128xf32>
      %259 = vector.shape_cast %256 : vector<8x128xf32> to vector<1x8x128xf32>
      tpu.vector_store %arg11[%c0_92, %c0_93, %c0_94], %259 {strides = array<i32>} : memref<1x8x128xf32, #tpu.memory_space<vmem>>, vector<1x8x128xf32>,
    } else {
    }
    return
  }
  func.func @transform_0(%arg0: i32, %arg1: i32) -> (i32, i32, i32) {
    %c0_i32 = arith.constant 0 : i32
    %c0_i32_0 = arith.constant 0 : i32
    %c0_i32_1 = arith.constant 0 : i32
    return %arg0, %c0_i32, %c0_i32_0 : i32, i32, i32
  }
  func.func @transform_1(%arg0: i32, %arg1: i32) -> (i32, i32) {
    %c0_i32 = arith.constant 0 : i32
    %c0_i32_0 = arith.constant 0 : i32
    %c0_i32_1 = arith.constant 0 : i32
    return %c0_i32, %c0_i32_0 : i32, i32
  }
  func.func @transform_2(%arg0: i32, %arg1: i32) -> (i32, i32, i32) {
    %c0_i32 = arith.constant 0 : i32
    %c0_i32_0 = arith.constant 0 : i32
    %c0_i32_1 = arith.constant 0 : i32
    return %arg1, %c0_i32, %c0_i32_0 : i32, i32, i32
  }
  func.func @transform_3(%arg0: i32, %arg1: i32) -> (i32, i32, i32) {
    %c0_i32 = arith.constant 0 : i32
    %c0_i32_0 = arith.constant 0 : i32
    %c0_i32_1 = arith.constant 0 : i32
    return %arg1, %c0_i32, %c0_i32_0 : i32, i32, i32
  }
  func.func @transform_4(%arg0: i32, %arg1: i32) -> (i32, i32, i32) {
    %c0_i32 = arith.constant 0 : i32
    %c0_i32_0 = arith.constant 0 : i32
    %c0_i32_1 = arith.constant 0 : i32
    return %arg1, %c0_i32, %c0_i32_0 : i32, i32, i32
  }
  func.func @transform_5(%arg0: i32, %arg1: i32) -> (i32, i32, i32) {
    %c0_i32 = arith.constant 0 : i32
    %c0_i32_0 = arith.constant 0 : i32
    %c0_i32_1 = arith.constant 0 : i32
    return %arg1, %c0_i32, %c0_i32_0 : i32, i32, i32
  }
  func.func @transform_6(%arg0: i32, %arg1: i32) -> (i32, i32, i32) {
    %c0_i32 = arith.constant 0 : i32
    %c0_i32_0 = arith.constant 0 : i32
    %c0_i32_1 = arith.constant 0 : i32
    return %arg1, %c0_i32, %c0_i32_0 : i32, i32, i32
  }
  func.func @transform_7(%arg0: i32, %arg1: i32) -> (i32, i32) {
    %c0_i32 = arith.constant 0 : i32
    %c0_i32_0 = arith.constant 0 : i32
    %c0_i32_1 = arith.constant 0 : i32
    return %c0_i32, %c0_i32_0 : i32, i32
  }
  func.func @transform_8(%arg0: i32, %arg1: i32) -> (i32, i32) {
    %c0_i32 = arith.constant 0 : i32
    %c0_i32_0 = arith.constant 0 : i32
    %c0_i32_1 = arith.constant 0 : i32
    return %c0_i32, %c0_i32_0 : i32, i32
  }
  func.func @transform_9(%arg0: i32, %arg1: i32) -> (i32, i32, i32) {
    %c0_i32 = arith.constant 0 : i32
    %c0_i32_0 = arith.constant 0 : i32
    %c0_i32_1 = arith.constant 0 : i32
    return %arg0, %c0_i32, %c0_i32_0 : i32, i32, i32
  }
}

</mosaic_0001>

<llo_original>
// kernel: tpu_custom_call.1
$region0: #{tpu_custom_call.1}
  #allocation0 [shape = 'u32[]', space=smem, size = 0x4, offset = 0x4, fixed_abs, tag = 'smem constant byte address 0x4 - core index']
  #allocation1 [shape = 'u32[144,128]{1,0:T(1,128)}', space=vmem, size = 0x12000, scoped, tag = 'internal scratch']
  #allocation2 [shape = 'f32[8,40]{1,0:T(8,128)}', space=vmem, size = 0x1000, scoped, tag = 'scratch operand']
  #allocation3 [shape = 'f32[8,40]{1,0:T(8,128)}', space=vmem, size = 0x1000, scoped, tag = 'scratch operand']
  %s0 = inlined_call_operand.hbm [shape: f32[2,8,40], index: 0, kind: input, shape index: {}]
  %s1 = inlined_call_operand.hbm [shape: f32[8,40], index: 1, kind: input, shape index: {}]
  %s2 = inlined_call_operand.vmem [shape: bf16[6,40,120], index: 2, kind: input, shape index: {}]
  %s3 = inlined_call_operand.vmem [shape: bf16[6,40,40], index: 3, kind: input, shape index: {}]
  %s4 = inlined_call_operand.hbm [shape: bf16[6,40,64], index: 4, kind: input, shape index: {}]
  %s5 = inlined_call_operand.vmem [shape: bf16[6,64,40], index: 5, kind: input, shape index: {}]
  %s6 = inlined_call_operand.vmem [shape: f32[6,8,120], index: 6, kind: input, shape index: {}]
  %s7 = inlined_call_operand.vmem [shape: bf16[40,128], index: 7, kind: input, shape index: {}]
  %s8 = inlined_call_operand.vmem [shape: f32[1,128], index: 8, kind: input, shape index: {}]
  %s9 = inlined_call_operand.hbm [shape: f32[2,8,128], index: 9, kind: output, shape index: {}]
  %s10 = sld [smem:[#allocation0]]
  $region89: #{tpu_custom_call.1} parent=0
    _
  %s12 = ssub.s32 1, %s10
  %s13 = scalar_select 0, %s12, %s10
  $region1: #{tpu_custom_call.1} parent=0
    #allocation4 [shape = 'u8[8192]{0}', space=vmem, size = 0x2000, scoped, tag = 'input window, operand 0']
    #allocation5 [shape = 's32[2]{0}', space=sflag, size = 0x8, scoped, tag = 'scoped memory for tpu_custom_call.1']
    #allocation6 [shape = 's32[2]{0}', space=sflag, size = 0x8, scoped, tag = 'scoped memory for tpu_custom_call.1']
    #allocation7 [shape = 'u8[4096]{0}', space=vmem, size = 0x1000, scoped, tag = 'input window, operand 1, single buffered']
    #allocation8 [shape = 's32[1]{0}', space=sflag, size = 0x4, scoped, tag = 'scoped memory for tpu_custom_call.1']
    #allocation9 [shape = 'u8[20480]{0}', space=vmem, size = 0x5000, scoped, tag = 'input window, operand 4']
    #allocation10 [shape = 'u8[8192]{0}', space=vmem, size = 0x2000, scoped, tag = 'output window, operand 0']
    %14 = vsyncpa [#allocation5], 0
    %s15 = scalar_lea.sflag [#allocation5], 1
    %16 = vsyncpa %s15, 0
    %17 = vsyncpa [#allocation8], 0
    %18 = vsyncpa [#allocation6], 0
    %s19 = scalar_lea.sflag [#allocation6], 1
    %20 = vsyncpa %s19, 0
    loop: start=0, step=1, limit=14
    $region2: #{tpu_custom_call.1} parent=1 // loop_pre_header
      _
    $region3: #{tpu_custom_call.1} parent=1 // loop_header
      %s22 = sphi 0, %s26
      %p23 = scmp.ge.s32.totalorder %s22, 14
      %s29 = sphi 0, %s41
      %s30 = sphi 0, %s37
      %s31 = sphi 0, %s29
      %s32 = sphi 0, %s30
      %s33 = sphi 0, %s31
      %s34 = sphi 0, %s32
      %s44 = sphi 0, %s46
      %s47 = sphi 0, %s44
      %s48 = sphi 0, %s47
      %s64 = sphi 0, %s48
      %s68 = sphi 0, %s68
      %s70 = sphi 0, %s68
      %s71 = sphi 0, %s70
      %s85 = sphi 0, %s71
      %s91 = sphi 0, %s93
      %s94 = sphi 0, %s91
      %s95 = sphi 0, %s94
      %s111 = sphi 0, %s95
      %s117 = sphi 0, %s119
      %s120 = sphi 0, %s117
      %s121 = sphi 0, %s120
      %s137 = sphi 0, %s121
      %s143 = sphi 0, %s145
      %s146 = sphi 0, %s143
      %s147 = sphi 0, %s146
      %s163 = sphi 0, %s147
      %s169 = sphi 0, %s171
      %s172 = sphi 0, %s169
      %s173 = sphi 0, %s172
      %s189 = sphi 0, %s173
      %s195 = sphi 0, %s197
      %s198 = sphi 0, %s195
      %s199 = sphi 0, %s198
      %s215 = sphi 0, %s199
      %s219 = sphi 0, %s219
      %s221 = sphi 0, %s219
      %s222 = sphi 0, %s221
      %s236 = sphi 0, %s222
      %s240 = sphi 0, %s240
      %s242 = sphi 0, %s240
      %s243 = sphi 0, %s242
      %s257 = sphi 0, %s243
      %s263 = sphi 0, %s265
      %s266 = sphi 0, %s263
      %s267 = sphi 0, %s266
      %s283 = sphi 0, %s267
    $region4: #{tpu_custom_call.1} parent=1 // loop_header_branch
      %25 = sbr.rel (%p23) target = $region8
    $region5: #{tpu_custom_call.1} parent=1 // loop_body
      %s27 = ssub.s32 %s22, 1
      %s28 = ssub.s32 %s22, 2
      %s35 = sadd.s32 1, %s30
      %p36 = scmp.ge.s32.totalorder %s35, 6
      %s37 = scalar_select %p36, 0, %s35
      %s38 = sadd.s32 1, %s29
      %s39 = scalar_select %p36, %s38, %s29
      %p40 = scmp.ge.s32.totalorder %s39, 2
      %s41 = scalar_select %p40, 0, %s39
      %s42 = ssub.s32 %s29, %s41
      %p43 = scmp.eq.s32.totalorder %s42, 0
      %s45 = sadd.s32 %s44, 1
      %s46 = scalar_select %p43, %s44, %s45
      %p49 = pneg %p43
      %p50 = scmp.eq.s32.totalorder %s22, 11
      %p51 = por %p49, %p50
      %p52 = scmp.ne.s32.totalorder %s44, %s47
      %p53 = scmp.eq.s32.totalorder %s22, 0
      %p54 = por %p52, %p53
      %p55 = scmp.ne.s32.totalorder %s44, %s47
      %p56 = scmp.eq.s32.totalorder %s27, 11
      %p57 = por %p55, %p56
      %p58 = scmp.ne.s32.totalorder %s47, %s48
      %p59 = scmp.eq.s32.totalorder %s27, 0
      %p60 = por %p58, %p59
      %p61 = scmp.ne.s32.totalorder %s47, %s48
      %p62 = scmp.eq.s32.totalorder %s28, 11
      %p63 = por %p61, %p62
      %p65 = scmp.ne.s32.totalorder %s48, %s64
      %p66 = scmp.eq.s32.totalorder %s28, 0
      %p67 = por %p65, %p66
      %s69 = sadd.s32 %s68, 1
      %p72 = scmp.eq.s32.totalorder %s22, 11
      %p73 = scmp.ne.s32.totalorder %s68, %s70
      %p74 = scmp.eq.s32.totalorder %s22, 0
      %p75 = por %p73, %p74
      %p76 = scmp.ne.s32.totalorder %s68, %s70
      %p77 = scmp.eq.s32.totalorder %s27, 11
      %p78 = por %p76, %p77
      %p79 = scmp.ne.s32.totalorder %s70, %s71
      %p80 = scmp.eq.s32.totalorder %s27, 0
      %p81 = por %p79, %p80
      %p82 = scmp.ne.s32.totalorder %s70, %s71
      %p83 = scmp.eq.s32.totalorder %s28, 11
      %p84 = por %p82, %p83
      %p86 = scmp.ne.s32.totalorder %s71, %s85
      %p87 = scmp.eq.s32.totalorder %s28, 0
      %p88 = por %p86, %p87
      %s89 = ssub.s32 %s30, %s37
      %p90 = scmp.eq.s32.totalorder %s89, 0
      %s92 = sadd.s32 %s91, 1
      %s93 = scalar_select %p90, %s91, %s92
      %p96 = pneg %p90
      %p97 = scmp.eq.s32.totalorder %s22, 11
      %p98 = por %p96, %p97
      %p99 = scmp.ne.s32.totalorder %s91, %s94
      %p100 = scmp.eq.s32.totalorder %s22, 0
      %p101 = por %p99, %p100
      %p102 = scmp.ne.s32.totalorder %s91, %s94
      %p103 = scmp.eq.s32.totalorder %s27, 11
      %p104 = por %p102, %p103
      %p105 = scmp.ne.s32.totalorder %s94, %s95
      %p106 = scmp.eq.s32.totalorder %s27, 0
      %p107 = por %p105, %p106
      %p108 = scmp.ne.s32.totalorder %s94, %s95
      %p109 = scmp.eq.s32.totalorder %s28, 11
      %p110 = por %p108, %p109
      %p112 = scmp.ne.s32.totalorder %s95, %s111
      %p113 = scmp.eq.s32.totalorder %s28, 0
      %p114 = por %p112, %p113
      %s115 = ssub.s32 %s30, %s37
      %p116 = scmp.eq.s32.totalorder %s115, 0
      %s118 = sadd.s32 %s117, 1
      %s119 = scalar_select %p116, %s117, %s118
      %p122 = pneg %p116
      %p123 = scmp.eq.s32.totalorder %s22, 11
      %p124 = por %p122, %p123
      %p125 = scmp.ne.s32.totalorder %s117, %s120
      %p126 = scmp.eq.s32.totalorder %s22, 0
      %p127 = por %p125, %p126
      %p128 = scmp.ne.s32.totalorder %s117, %s120
      %p129 = scmp.eq.s32.totalorder %s27, 11
      %p130 = por %p128, %p129
      %p131 = scmp.ne.s32.totalorder %s120, %s121
      %p132 = scmp.eq.s32.totalorder %s27, 0
      %p133 = por %p131, %p132
      %p134 = scmp.ne.s32.totalorder %s120, %s121
      %p135 = scmp.eq.s32.totalorder %s28, 11
      %p136 = por %p134, %p135
      %p138 = scmp.ne.s32.totalorder %s121, %s137
      %p139 = scmp.eq.s32.totalorder %s28, 0
      %p140 = por %p138, %p139
      %s141 = ssub.s32 %s30, %s37
      %p142 = scmp.eq.s32.totalorder %s141, 0
      %s144 = sadd.s32 %s143, 1
      %s145 = scalar_select %p142, %s143, %s144
      %p148 = pneg %p142
      %p149 = scmp.eq.s32.totalorder %s22, 11
      %p150 = por %p148, %p149
      %p151 = scmp.ne.s32.totalorder %s143, %s146
      %p152 = scmp.eq.s32.totalorder %s22, 0
      %p153 = por %p151, %p152
      %p154 = scmp.ne.s32.totalorder %s143, %s146
      %p155 = scmp.eq.s32.totalorder %s27, 11
      %p156 = por %p154, %p155
      %p157 = scmp.ne.s32.totalorder %s146, %s147
      %p158 = scmp.eq.s32.totalorder %s27, 0
      %p159 = por %p157, %p158
      %p160 = scmp.ne.s32.totalorder %s146, %s147
      %p161 = scmp.eq.s32.totalorder %s28, 11
      %p162 = por %p160, %p161
      %p164 = scmp.ne.s32.totalorder %s147, %s163
      %p165 = scmp.eq.s32.totalorder %s28, 0
      %p166 = por %p164, %p165
      %s167 = ssub.s32 %s30, %s37
      %p168 = scmp.eq.s32.totalorder %s167, 0
      %s170 = sadd.s32 %s169, 1
      %s171 = scalar_select %p168, %s169, %s170
      %p174 = pneg %p168
      %p175 = scmp.eq.s32.totalorder %s22, 11
      %p176 = por %p174, %p175
      %p177 = scmp.ne.s32.totalorder %s169, %s172
      %p178 = scmp.eq.s32.totalorder %s22, 0
      %p179 = por %p177, %p178
      %p180 = scmp.ne.s32.totalorder %s169, %s172
      %p181 = scmp.eq.s32.totalorder %s27, 11
      %p182 = por %p180, %p181
      %p183 = scmp.ne.s32.totalorder %s172, %s173
      %p184 = scmp.eq.s32.totalorder %s27, 0
      %p185 = por %p183, %p184
      %p186 = scmp.ne.s32.totalorder %s172, %s173
      %p187 = scmp.eq.s32.totalorder %s28, 11
      %p188 = por %p186, %p187
      %p190 = scmp.ne.s32.totalorder %s173, %s189
      %p191 = scmp.eq.s32.totalorder %s28, 0
      %p192 = por %p190, %p191
      %s193 = ssub.s32 %s30, %s37
      %p194 = scmp.eq.s32.totalorder %s193, 0
      %s196 = sadd.s32 %s195, 1
      %s197 = scalar_select %p194, %s195, %s196
      %p200 = pneg %p194
      %p201 = scmp.eq.s32.totalorder %s22, 11
      %p202 = por %p200, %p201
      %p203 = scmp.ne.s32.totalorder %s195, %s198
      %p204 = scmp.eq.s32.totalorder %s22, 0
      %p205 = por %p203, %p204
      %p206 = scmp.ne.s32.totalorder %s195, %s198
      %p207 = scmp.eq.s32.totalorder %s27, 11
      %p208 = por %p206, %p207
      %p209 = scmp.ne.s32.totalorder %s198, %s199
      %p210 = scmp.eq.s32.totalorder %s27, 0
      %p211 = por %p209, %p210
      %p212 = scmp.ne.s32.totalorder %s198, %s199
      %p213 = scmp.eq.s32.totalorder %s28, 11
      %p214 = por %p212, %p213
      %p216 = scmp.ne.s32.totalorder %s199, %s215
      %p217 = scmp.eq.s32.totalorder %s28, 0
      %p218 = por %p216, %p217
      %s220 = sadd.s32 %s219, 1
      %p223 = scmp.eq.s32.totalorder %s22, 11
      %p224 = scmp.ne.s32.totalorder %s219, %s221
      %p225 = scmp.eq.s32.totalorder %s22, 0
      %p226 = por %p224, %p225
      %p227 = scmp.ne.s32.totalorder %s219, %s221
      %p228 = scmp.eq.s32.totalorder %s27, 11
      %p229 = por %p227, %p228
      %p230 = scmp.ne.s32.totalorder %s221, %s222
      %p231 = scmp.eq.s32.totalorder %s27, 0
      %p232 = por %p230, %p231
      %p233 = scmp.ne.s32.totalorder %s221, %s222
      %p234 = scmp.eq.s32.totalorder %s28, 11
      %p235 = por %p233, %p234
      %p237 = scmp.ne.s32.totalorder %s222, %s236
      %p238 = scmp.eq.s32.totalorder %s28, 0
      %p239 = por %p237, %p238
      %s241 = sadd.s32 %s240, 1
      %p244 = scmp.eq.s32.totalorder %s22, 11
      %p245 = scmp.ne.s32.totalorder %s240, %s242
      %p246 = scmp.eq.s32.totalorder %s22, 0
      %p247 = por %p245, %p246
      %p248 = scmp.ne.s32.totalorder %s240, %s242
      %p249 = scmp.eq.s32.totalorder %s27, 11
      %p250 = por %p248, %p249
      %p251 = scmp.ne.s32.totalorder %s242, %s243
      %p252 = scmp.eq.s32.totalorder %s27, 0
      %p253 = por %p251, %p252
      %p254 = scmp.ne.s32.totalorder %s242, %s243
      %p255 = scmp.eq.s32.totalorder %s28, 11
      %p256 = por %p254, %p255
      %p258 = scmp.ne.s32.totalorder %s243, %s257
      %p259 = scmp.eq.s32.totalorder %s28, 0
      %p260 = por %p258, %p259
      %s261 = ssub.s32 %s29, %s41
      %p262 = scmp.eq.s32.totalorder %s261, 0
      %s264 = sadd.s32 %s263, 1
      %s265 = scalar_select %p262, %s263, %s264
      %p268 = pneg %p262
      %p269 = scmp.eq.s32.totalorder %s22, 11
      %p270 = por %p268, %p269
      %p271 = scmp.ne.s32.totalorder %s263, %s266
      %p272 = scmp.eq.s32.totalorder %s22, 0
      %p273 = por %p271, %p272
      %p274 = scmp.ne.s32.totalorder %s263, %s266
      %p275 = scmp.eq.s32.totalorder %s27, 11
      %p276 = por %p274, %p275
      %p277 = scmp.ne.s32.totalorder %s266, %s267
      %p278 = scmp.eq.s32.totalorder %s27, 0
      %p279 = por %p277, %p278
      %p280 = scmp.ne.s32.totalorder %s266, %s267
      %p281 = scmp.eq.s32.totalorder %s28, 11
      %p282 = por %p280, %p281
      %p284 = scmp.ne.s32.totalorder %s267, %s283
      %p285 = scmp.eq.s32.totalorder %s28, 0
      %p286 = por %p284, %p285
      %p287 = scmp.le.s32.totalorder 1, %s22
      %p288 = scmp.lt.s32.totalorder %s22, 13
      %p289 = pnand %p287, %p288
      %p290 = pneg %p289
      // Predicated region
      $region9: #{tpu_custom_call.1} parent=5 // pred_check
        _
      $region10: #{tpu_custom_call.1} parent=5 // pred_check_branch
        %292 = sbr.rel (%p289) target = $region12
      $region11: #{tpu_custom_call.1} parent=5 // pred_region
        %s293 = ssub.s32 %s22, 1
        // Predicated region
        $region13: #{tpu_custom_call.1} parent=11 // pred_check
          %p294 = pneg %p81
        $region14: #{tpu_custom_call.1} parent=11 // pred_check_branch
          %296 = sbr.rel (%p294) target = $region16
        $region15: #{tpu_custom_call.1} parent=11 // pred_region
          %s298 = ssub.s32 128, 128
          %299 = vsyncadd [#allocation8], %s298
          %s301 = sshll.u32 [#allocation7], 4
          %s302 = int_to_ptr.vmem [resolvable:$true] %s301
          %304 = dma.hbm_to_vmem [thread:$0]  %s1, 128, %s302, [#allocation8]
        $region16: #{tpu_custom_call.1} parent=11 // pred_fallthru
          _
        // Predicated region
        $region17: #{tpu_custom_call.1} parent=11 // pred_check
          %p305 = pneg %p232
        $region18: #{tpu_custom_call.1} parent=11 // pred_check_branch
          %307 = sbr.rel (%p305) target = $region20
        $region19: #{tpu_custom_call.1} parent=11 // pred_region
          _
        $region20: #{tpu_custom_call.1} parent=11 // pred_fallthru
          _
        // Predicated region
        $region21: #{tpu_custom_call.1} parent=11 // pred_check
          %p308 = pneg %p253
        $region22: #{tpu_custom_call.1} parent=11 // pred_check_branch
          %310 = sbr.rel (%p308) target = $region24
        $region23: #{tpu_custom_call.1} parent=11 // pred_region
          _
        $region24: #{tpu_custom_call.1} parent=11 // pred_fallthru
          _
      $region12: #{tpu_custom_call.1} parent=5 // pred_fallthru
        _
      %p311 = scmp.lt.s32.totalorder %s22, 12
      // Predicated region
      $region25: #{tpu_custom_call.1} parent=5 // pred_check
        %p312 = pneg %p311
      $region26: #{tpu_custom_call.1} parent=5 // pred_check_branch
        %314 = sbr.rel (%p312) target = $region28
      $region27: #{tpu_custom_call.1} parent=5 // pred_region
        // Predicated region
        $region29: #{tpu_custom_call.1} parent=27 // pred_check
          %p315 = pneg %p54
        $region30: #{tpu_custom_call.1} parent=27 // pred_check_branch
          %317 = sbr.rel (%p315) target = $region32
        $region31: #{tpu_custom_call.1} parent=27 // pred_region
          %s318 = sand.u32 %s22, 1
          %s319 = scalar_lea.sflag [#allocation5], %s318
          %s320 = sand.u32 %s44, 1
          %s321 = smul.addr %s320, 8
          %s322 = scalar_lea.vmem [#allocation4], %s321
          %s324 = ssub.s32 128, 128
          %325 = vsyncadd %s319, %s324
          %s326 = smul.addr %s29, 128
          %s327 = scalar_lea.hbm %s0, %s326
          %s329 = sshll.u32 %s322, 4
          %s330 = int_to_ptr.vmem [resolvable:$true] %s329
          %332 = dma.hbm_to_vmem [thread:$0]  %s327, 128, %s330, %s319
        $region32: #{tpu_custom_call.1} parent=27 // pred_fallthru
          _
        // Predicated region
        $region33: #{tpu_custom_call.1} parent=27 // pred_check
          %p333 = pneg %p101
        $region34: #{tpu_custom_call.1} parent=27 // pred_check_branch
          %335 = sbr.rel (%p333) target = $region36
        $region35: #{tpu_custom_call.1} parent=27 // pred_region
          %p336 = scmp.lt.s32.totalorder %s30, 5
          %s337 = scalar_select %p336, %s30, 5
          %s338 = smul.addr %s337, 5
          %s339 = smul.addr %s338, 4
          %s340 = scalar_lea.vmem %s2, %s339
        $region36: #{tpu_custom_call.1} parent=27 // pred_fallthru
          _
        // Predicated region
        $region37: #{tpu_custom_call.1} parent=27 // pred_check
          %p341 = pneg %p127
        $region38: #{tpu_custom_call.1} parent=27 // pred_check_branch
          %343 = sbr.rel (%p341) target = $region40
        $region39: #{tpu_custom_call.1} parent=27 // pred_region
          %p344 = scmp.lt.s32.totalorder %s30, 5
          %s345 = scalar_select %p344, %s30, 5
          %s346 = smul.addr %s345, 5
          %s347 = smul.addr %s346, 4
          %s348 = scalar_lea.vmem %s3, %s347
        $region40: #{tpu_custom_call.1} parent=27 // pred_fallthru
          _
        // Predicated region
        $region41: #{tpu_custom_call.1} parent=27 // pred_check
          %p349 = pneg %p153
        $region42: #{tpu_custom_call.1} parent=27 // pred_check_branch
          %351 = sbr.rel (%p349) target = $region44
        $region43: #{tpu_custom_call.1} parent=27 // pred_region
          %s352 = sand.u32 %s22, 1
          %s353 = scalar_lea.sflag [#allocation5], %s352
          %s354 = sand.u32 %s143, 1
          %s355 = smul.addr %s354, 20
          %s356 = scalar_lea.vmem [#allocation9], %s355
          %s358 = ssub.s32 320, 320
          %359 = vsyncadd %s353, %s358
          %s360 = smul.addr %s30, 5
          %s361 = smul.addr %s360, 64
          %s362 = scalar_lea.hbm %s4, %s361
          %s363 = sshll.u32 %s356, 4
          %s364 = int_to_ptr.vmem [resolvable:$true] %s363
          %369 = dma.hbm_to_vmem [thread:$0]  %s362, 320, %s364, %s353, 64, 64, 4
        $region44: #{tpu_custom_call.1} parent=27 // pred_fallthru
          _
        // Predicated region
        $region45: #{tpu_custom_call.1} parent=27 // pred_check
          %p370 = pneg %p179
        $region46: #{tpu_custom_call.1} parent=27 // pred_check_branch
          %372 = sbr.rel (%p370) target = $region48
        $region47: #{tpu_custom_call.1} parent=27 // pred_region
          %p373 = scmp.lt.s32.totalorder %s30, 5
          %s374 = scalar_select %p373, %s30, 5
          %s375 = smul.addr %s374, 8
          %s376 = smul.addr %s375, 4
          %s377 = scalar_lea.vmem %s5, %s376
        $region48: #{tpu_custom_call.1} parent=27 // pred_fallthru
          _
        // Predicated region
        $region49: #{tpu_custom_call.1} parent=27 // pred_check
          %p378 = pneg %p205
        $region50: #{tpu_custom_call.1} parent=27 // pred_check_branch
          %380 = sbr.rel (%p378) target = $region52
        $region51: #{tpu_custom_call.1} parent=27 // pred_region
          %p381 = scmp.lt.s32.totalorder %s30, 5
          %s382 = scalar_select %p381, %s30, 5
          %s383 = smul.addr %s382, 8
          %s384 = scalar_lea.vmem %s6, %s383
        $region52: #{tpu_custom_call.1} parent=27 // pred_fallthru
          _
      $region28: #{tpu_custom_call.1} parent=5 // pred_fallthru
        _
      %p385 = scmp.le.s32.totalorder 1, %s22
      %p386 = scmp.lt.s32.totalorder %s22, 13
      %p387 = pnand %p385, %p386
      %p388 = pneg %p387
      // Predicated region
      $region53: #{tpu_custom_call.1} parent=5 // pred_check
        _
      $region54: #{tpu_custom_call.1} parent=5 // pred_check_branch
        %390 = sbr.rel (%p387) target = $region56
      $region55: #{tpu_custom_call.1} parent=5 // pred_region
        %s391 = ssub.s32 %s22, 1
        %s392 = sand.u32 %s27, 1
        %s393 = scalar_lea.sflag [#allocation5], %s392
        %s394 = sand.u32 %s47, 1
        %s395 = smul.addr %s394, 8
        %s396 = scalar_lea.vmem [#allocation4], %s395
        // Predicated region
        $region57: #{tpu_custom_call.1} parent=55 // pred_check
          %p397 = pneg %p60
        $region58: #{tpu_custom_call.1} parent=55 // pred_check_branch
          %399 = sbr.rel (%p397) target = $region60
        $region59: #{tpu_custom_call.1} parent=55 // pred_region
          %400 = dma.done %s393, 128
        $region60: #{tpu_custom_call.1} parent=55 // pred_fallthru
          _
        // Predicated region
        $region61: #{tpu_custom_call.1} parent=55 // pred_check
          %p401 = pneg %p81
        $region62: #{tpu_custom_call.1} parent=55 // pred_check_branch
          %403 = sbr.rel (%p401) target = $region64
        $region63: #{tpu_custom_call.1} parent=55 // pred_region
          %404 = dma.done [#allocation8], 128
        $region64: #{tpu_custom_call.1} parent=55 // pred_fallthru
          _
        %s405 = sand.u32 %s27, 1
        %s406 = scalar_lea.sflag [#allocation5], %s405
        %s407 = sand.u32 %s146, 1
        %s408 = smul.addr %s407, 20
        %s409 = scalar_lea.vmem [#allocation9], %s408
        // Predicated region
        $region65: #{tpu_custom_call.1} parent=55 // pred_check
          %p410 = pneg %p159
        $region66: #{tpu_custom_call.1} parent=55 // pred_check_branch
          %412 = sbr.rel (%p410) target = $region68
        $region67: #{tpu_custom_call.1} parent=55 // pred_region
          %413 = dma.done %s406, 320
        $region68: #{tpu_custom_call.1} parent=55 // pred_fallthru
          _
        %s414 = sand.u32 %s27, 1
        %s415 = scalar_lea.sflag [#allocation5], %s414
        %s416 = sand.u32 %s47, 1
        %s417 = smul.addr %s416, 8
        %s418 = scalar_lea.vmem [#allocation4], %s417
        %p419 = pneg %p60
        %p420 = pneg %p57
        %p421 = pneg %p81
        %p422 = pneg %p78
        %p423 = scmp.lt.s32.totalorder %s32, 5
        %s424 = scalar_select %p423, %s32, 5
        %s425 = smul.addr %s424, 5
        %s426 = smul.addr %s425, 4
        %s427 = scalar_lea.vmem %s2, %s426
        %p428 = pneg %p107
        %p429 = pneg %p104
        %p430 = scmp.lt.s32.totalorder %s32, 5
        %s431 = scalar_select %p430, %s32, 5
        %s432 = smul.addr %s431, 5
        %s433 = smul.addr %s432, 4
        %s434 = scalar_lea.vmem %s3, %s433
        %p435 = pneg %p133
        %p436 = pneg %p130
        %s437 = sand.u32 %s27, 1
        %s438 = scalar_lea.sflag [#allocation5], %s437
        %s439 = sand.u32 %s146, 1
        %s440 = smul.addr %s439, 20
        %s441 = scalar_lea.vmem [#allocation9], %s440
        %p442 = pneg %p159
        %p443 = pneg %p156
        %p444 = scmp.lt.s32.totalorder %s32, 5
        %s445 = scalar_select %p444, %s32, 5
        %s446 = smul.addr %s445, 8
        %s447 = smul.addr %s446, 4
        %s448 = scalar_lea.vmem %s5, %s447
        %p449 = pneg %p185
        %p450 = pneg %p182
        %p451 = scmp.lt.s32.totalorder %s32, 5
        %s452 = scalar_select %p451, %s32, 5
        %s453 = smul.addr %s452, 8
        %s454 = scalar_lea.vmem %s6, %s453
        %p455 = pneg %p211
        %p456 = pneg %p208
        %p457 = pneg %p232
        %p458 = pneg %p229
        %p459 = pneg %p253
        %p460 = pneg %p250
        %p461 = pneg %p279
        %p462 = pneg %p276
        %s463 = sand.u32 %s266, 1
        %s464 = scalar_lea.sflag [#allocation6], %s463
        %s465 = sand.u32 %s266, 1
        %s466 = smul.addr %s465, 8
        %s467 = scalar_lea.vmem [#allocation10], %s466
        %p468 = scmp.lt.s32.totalorder %s32, 5
        %s469 = scalar_select %p468, %s32, 5
        %s470 = smul.addr %s469, 5
        %s471 = smul.addr %s470, 4
        %s472 = scalar_lea.vmem %s2, %s471
        %p473 = scmp.lt.s32.totalorder %s32, 5
        %s474 = scalar_select %p473, %s32, 5
        %s475 = smul.addr %s474, 5
        %s476 = smul.addr %s475, 4
        %s477 = scalar_lea.vmem %s3, %s476
        %p478 = scmp.lt.s32.totalorder %s32, 5
        %s479 = scalar_select %p478, %s32, 5
        %s480 = smul.addr %s479, 8
        %s481 = smul.addr %s480, 4
        %s482 = scalar_lea.vmem %s5, %s481
        %p483 = scmp.lt.s32.totalorder %s32, 5
        %s484 = scalar_select %p483, %s32, 5
        %s485 = smul.addr %s484, 8
        %s486 = scalar_lea.vmem %s6, %s485
        %p488 = scmp.eq.s32.totalorder %s32, 0
        // Predicated region
        $region69: #{tpu_custom_call.1} parent=55 // pred_check
          %p489 = pneg %p488
        $region70: #{tpu_custom_call.1} parent=55 // pred_check_branch
          %491 = sbr.rel (%p489) target = $region72
        $region71: #{tpu_custom_call.1} parent=55 // pred_region
          %v492 = vld [vmem:[%s396] sm:$0xff]
          %v493 = vld [vmem:[#allocation7] sm:$0xff]
          %v494 = vadd.f32 %v492, %v493
          %vm495 = vcmask 326656
          %496 = vst.msk [vmem:[#allocation2] sm:$0xff] %vm495, %v494
        $region72: #{tpu_custom_call.1} parent=55 // pred_fallthru
          _
        %v497 = vld [vmem:[#allocation2] sm:$0xff]
        %v498 = vld [vmem:[%s486] sm:$0xff]
        %v499 = vpack.c.bf16 %v497, %v497
        %v500 = vld [vmem:[%s472] sm:$0xf]
        %v501 = vld [vmem:[%s472 + $0x4] sm:$0xf]
        %v502 = vld [vmem:[%s472 + $0x8] sm:$0xf]
        %v503 = vld [vmem:[%s472 + $0xc] sm:$0xf]
        %v504 = vld [vmem:[%s472 + $0x10] sm:$0xf]
        %v505 = vlaneseq
        %v506 = vshrl.u32 %v505, 7
        %v507 = vsub.s32 0, %v506
        %v508 = vrot.slane %v498, %v507
        %v514 = vunpack.c.l.b16 %v500
        %v515 = vunpack.c.l.b16 %v501
        %v516 = vunpack.c.l.b16 %v502
        %v517 = vunpack.c.l.b16 %v503
        %v518 = vunpack.c.l.b16 %v504
        %v519 = vpack.c.b16 %v515, %v514
        %v520 = vpack.c.b16 %v517, %v516
        %v521 = vpack.c.b16 %v518, %v518
        %vm524 = vcmask 326656
        %v526 = vsel %vm524, %v499, 0
        %vm528 = vcmask 1043456
        %v530 = vsel %vm528, %v521, 0
        %532 = vmatprep.subr.bf16.mxu0 0
        %533 = vmatpush1.bf16.msra.mxu0 %v519
        %534 = vmatprep.subr.bf16.mxu0 0
        %535 = vmatpush1.bf16.msra.mxu0 %v520
        %536 = vmatprep.subr.bf16.mxu0 0
        %537 = vmatpush1.bf16.msra.mxu0 %v530
        %538 = vmatprep.subr.bf16.mxu0 0
        %539 = vmatpush1.bf16.msra.mxu0 0
        %540 = vmatprep.subr.bf16.mxu0 0
        %541 = vmatpush1.bf16.msra.mxu0 0
        %542 = vmatprep.subr.bf16.mxu0 0
        %543 = vmatpush1.bf16.msra.mxu0 0
        %544 = vmatprep.subr.bf16.mxu0 0
        %545 = vmatpush1.bf16.msra.mxu0 0
        %546 = vmatprep.subr.bf16.mxu0 0
        %547 = vmatpush1.bf16.msra.mxu0 0
        %548 = vmatprep.subr.bf16.mxu0 0
        %549 = vmatpush1.bf16.msra.mxu0 0
        %550 = vmatprep.subr.bf16.mxu0 0
        %551 = vmatpush1.bf16.msra.mxu0 0
        %552 = vmatprep.subr.bf16.mxu0 0
        %553 = vmatpush1.bf16.msra.mxu0 0
        %554 = vmatprep.subr.bf16.mxu0 0
        %555 = vmatpush1.bf16.msra.mxu0 0
        %556 = vmatprep.subr.bf16.mxu0 0
        %557 = vmatpush1.bf16.msra.mxu0 0
        %558 = vmatprep.subr.bf16.mxu0 0
        %559 = vmatpush1.bf16.msra.mxu0 0
        %560 = vmatprep.subr.bf16.mxu0 0
        %561 = vmatpush1.bf16.msra.mxu0 0
        %562 = vmatprep.subr.bf16.mxu0 0
        %563 = vmatpush1.bf16.msra.mxu0 0
        %564 = vmatprep.mubr.bf16.mxu0 0
        %565 = vmatmul.mubr.bf16.gmra.mrb[0].mxu0 %v526
        %v566 = vpop.f32.mrb[0].mxu0
        %v567 = vadd.f32 %v508, %v566
        %v568 = vpop.f32.mrb[0].mxu0
        %v569 = vpop.f32.mrb[0].mxu0
        %v570 = vpop.f32.mrb[0].mxu0
        %571 = vdwg.mxu0
        %573 = vrot.lane.b32.xlu0 %v567, 88
        %v574 = vpop.permute.xlu0 %573
        %vm575 = vcmask 31744
        %v576 = vsel %vm575, %v567, 0
        %v578 = vsel %vm575, %v574, 0
        %580 = vmatprep.subr.mxu0 0.0
        %581 = vmatpush1.xpose.msra.mxu0 %v578
        %582 = vmatprep.subr.mxu0 0.0
        %583 = vmatpush1.xpose.msra.mxu0 0.0
        %584 = vmatprep.subr.mxu0 0.0
        %585 = vmatpush1.xpose.msra.mxu0 0.0
        %586 = vmatprep.subr.mxu0 0.0
        %587 = vmatpush1.xpose.msra.mxu0 0.0
        %588 = vmatprep.subr.mxu0 0.0
        %589 = vmatpush1.xpose.msra.mxu0 0.0
        %590 = vmatprep.subr.mxu0 0.0
        %591 = vmatpush1.xpose.msra.mxu0 0.0
        %592 = vmatprep.subr.mxu0 0.0
        %593 = vmatpush1.xpose.msra.mxu0 0.0
        %594 = vmatprep.subr.mxu0 0.0
        %595 = vmatpush1.xpose.msra.mxu0 0.0
        %596 = vmatprep.subr.mxu0 0.0
        %597 = vmatpush1.xpose.msra.mxu0 0.0
        %598 = vmatprep.subr.mxu0 0.0
        %599 = vmatpush1.xpose.msra.mxu0 0.0
        %600 = vmatprep.subr.mxu0 0.0
        %601 = vmatpush1.xpose.msra.mxu0 0.0
        %602 = vmatprep.subr.mxu0 0.0
        %603 = vmatpush1.xpose.msra.mxu0 0.0
        %604 = vmatprep.subr.mxu0 0.0
        %605 = vmatpush1.xpose.msra.mxu0 0.0
        %606 = vmatprep.subr.mxu0 0.0
        %607 = vmatpush1.xpose.msra.mxu0 0.0
        %608 = vmatprep.subr.mxu0 0.0
        %609 = vmatpush1.xpose.msra.mxu0 0.0
        %610 = vmatprep.subr.mxu0 0.0
        %611 = vmatpush1.xpose.msra.mxu0 0.0
        %612 = vmatprep.subr.mxu0 0.0
        %613 = vmatpush1.xpose.msra.mxu0 0.0
        %614 = vmatprep.subr.mxu0 0.0
        %615 = vmatpush1.xpose.msra.mxu0 0.0
        %616 = vmatprep.subr.mxu0 0.0
        %617 = vmatpush1.xpose.msra.mxu0 0.0
        %618 = vmatprep.subr.mxu0 0.0
        %619 = vmatpush1.xpose.msra.mxu0 0.0
        %620 = vmatprep.subr.mxu0 0.0
        %621 = vmatpush1.xpose.msra.mxu0 0.0
        %622 = vmatprep.subr.mxu0 0.0
        %623 = vmatpush1.xpose.msra.mxu0 0.0
        %624 = vmatprep.subr.mxu0 0.0
        %625 = vmatpush1.xpose.msra.mxu0 0.0
        %626 = vmatprep.subr.mxu0 0.0
        %627 = vmatpush1.xpose.msra.mxu0 0.0
        %628 = vmatprep.subr.mxu0 0.0
        %629 = vmatpush1.xpose.msra.mxu0 0.0
        %630 = vmatprep.subr.mxu0 0.0
        %631 = vmatpush1.xpose.msra.mxu0 0.0
        %632 = vmatprep.subr.mxu0 0.0
        %633 = vmatpush1.xpose.msra.mxu0 0.0
        %634 = vmatprep.subr.mxu0 0.0
        %635 = vmatpush1.xpose.msra.mxu0 0.0
        %636 = vmatprep.subr.mxu0 0.0
        %637 = vmatpush1.xpose.msra.mxu0 0.0
        %638 = vmatprep.subr.mxu0 0.0
        %639 = vmatpush1.xpose.msra.mxu0 0.0
        %640 = vmatprep.subr.mxu0 0.0
        %641 = vmatpush1.xpose.msra.mxu0 0.0
        %642 = vmatprep.subr.mxu0 0.0
        %643 = vmatpush1.xpose.msra.mxu0 0.0
        %644 = vmatprep.mubr.f32.mxu0 0.0
        %645 = vmatmul.mubr.f32.gmra.mrb[0].mxu0 %v576
        %v646 = vpop.f32.mrb[0].mxu0
        %v647 = vadd.f32 0.0, %v646
        %v648 = vpop.f32.mrb[0].mxu0
        %649 = vdwg.mxu0
        %vm650 = vcmask 64512
        %v651 = vsel %vm650, %v647, -inf
        %652 = vmax.xlane.f32.xlu0 %v651
        %v653 = vpop.xlane.xlu0 %652
        %v654 = vsub.f32 %v647, %v653
        %v655 = vmul.f32 %v654, 1.442695
        %v656 = vpow.pop %v655
        %v657 = vsel %vm650, %v656, 0.0
        %658 = vadd.xlane.f32.xlu0 %v657
        %v659 = vpop.xlane.xlu0 %658
        %v660 = vrcp.pop %v659
        %v661 = vmul.f32 %v656, %v660
        %662 = vrot.lane.b32.xlu0 %v567, 48
        %v663 = vpop.permute.xlu0 %662
        %v666 = vsel %vm650, %v661, 0
        %668 = vmatprep.subr.mxu0 0.0
        %669 = vmatpush1.msra.mxu0 %v663
        %670 = vmatprep.subr.mxu0 0.0
        %671 = vmatpush1.msra.mxu0 0.0
        %672 = vmatprep.subr.mxu0 0.0
        %673 = vmatpush1.msra.mxu0 0.0
        %674 = vmatprep.subr.mxu0 0.0
        %675 = vmatpush1.msra.mxu0 0.0
        %676 = vmatprep.subr.mxu0 0.0
        %677 = vmatpush1.msra.mxu0 0.0
        %678 = vmatprep.subr.mxu0 0.0
        %679 = vmatpush1.msra.mxu0 0.0
        %680 = vmatprep.subr.mxu0 0.0
        %681 = vmatpush1.msra.mxu0 0.0
        %682 = vmatprep.subr.mxu0 0.0
        %683 = vmatpush1.msra.mxu0 0.0
        %684 = vmatprep.subr.mxu0 0.0
        %685 = vmatpush1.msra.mxu0 0.0
        %686 = vmatprep.subr.mxu0 0.0
        %687 = vmatpush1.msra.mxu0 0.0
        %688 = vmatprep.subr.mxu0 0.0
        %689 = vmatpush1.msra.mxu0 0.0
        %690 = vmatprep.subr.mxu0 0.0
        %691 = vmatpush1.msra.mxu0 0.0
        %692 = vmatprep.subr.mxu0 0.0
        %693 = vmatpush1.msra.mxu0 0.0
        %694 = vmatprep.subr.mxu0 0.0
        %695 = vmatpush1.msra.mxu0 0.0
        %696 = vmatprep.subr.mxu0 0.0
        %697 = vmatpush1.msra.mxu0 0.0
        %698 = vmatprep.subr.mxu0 0.0
        %699 = vmatpush1.msra.mxu0 0.0
        %700 = vmatprep.subr.mxu0 0.0
        %701 = vmatpush1.msra.mxu0 0.0
        %702 = vmatprep.subr.mxu0 0.0
        %703 = vmatpush1.msra.mxu0 0.0
        %704 = vmatprep.subr.mxu0 0.0
        %705 = vmatpush1.msra.mxu0 0.0
        %706 = vmatprep.subr.mxu0 0.0
        %707 = vmatpush1.msra.mxu0 0.0
        %708 = vmatprep.subr.mxu0 0.0
        %709 = vmatpush1.msra.mxu0 0.0
        %710 = vmatprep.subr.mxu0 0.0
        %711 = vmatpush1.msra.mxu0 0.0
        %712 = vmatprep.subr.mxu0 0.0
        %713 = vmatpush1.msra.mxu0 0.0
        %714 = vmatprep.subr.mxu0 0.0
        %715 = vmatpush1.msra.mxu0 0.0
        %716 = vmatprep.subr.mxu0 0.0
        %717 = vmatpush1.msra.mxu0 0.0
        %718 = vmatprep.subr.mxu0 0.0
        %719 = vmatpush1.msra.mxu0 0.0
        %720 = vmatprep.subr.mxu0 0.0
        %721 = vmatpush1.msra.mxu0 0.0
        %722 = vmatprep.subr.mxu0 0.0
        %723 = vmatpush1.msra.mxu0 0.0
        %724 = vmatprep.subr.mxu0 0.0
        %725 = vmatpush1.msra.mxu0 0.0
        %726 = vmatprep.subr.mxu0 0.0
        %727 = vmatpush1.msra.mxu0 0.0
        %728 = vmatprep.subr.mxu0 0.0
        %729 = vmatpush1.msra.mxu0 0.0
        %730 = vmatprep.subr.mxu0 0.0
        %731 = vmatpush1.msra.mxu0 0.0
        %732 = vmatprep.mubr.f32.mxu0 0.0
        %733 = vmatmul.mubr.f32.gmra.mrb[0].mxu0 %v666
        %v734 = vpop.f32.mrb[0].mxu0
        %v735 = vadd.f32 0.0, %v734
        %v736 = vpop.f32.mrb[0].mxu0
        %737 = vdwg.mxu0
        %738 = vst.msk [vmem:[#allocation3] sm:$0xff] %vm575, %v735
        %739 = vrot.lane.b32.xlu0 %v567, 124
        %v740 = vpop.permute.xlu0 %739
        %741 = vrot.lane.b32.xlu0 %v567, 84
        %v742 = vpop.permute.xlu0 %741
        %v743 = vsel %vm575, %v740, 0
        %v745 = vsel %vm575, %v742, 0
        %747 = vmatprep.subr.mxu0 0.0
        %748 = vmatpush1.xpose.msra.mxu0 %v745
        %749 = vmatprep.subr.mxu0 0.0
        %750 = vmatpush1.xpose.msra.mxu0 0.0
        %751 = vmatprep.subr.mxu0 0.0
        %752 = vmatpush1.xpose.msra.mxu0 0.0
        %753 = vmatprep.subr.mxu0 0.0
        %754 = vmatpush1.xpose.msra.mxu0 0.0
        %755 = vmatprep.subr.mxu0 0.0
        %756 = vmatpush1.xpose.msra.mxu0 0.0
        %757 = vmatprep.subr.mxu0 0.0
        %758 = vmatpush1.xpose.msra.mxu0 0.0
        %759 = vmatprep.subr.mxu0 0.0
        %760 = vmatpush1.xpose.msra.mxu0 0.0
        %761 = vmatprep.subr.mxu0 0.0
        %762 = vmatpush1.xpose.msra.mxu0 0.0
        %763 = vmatprep.subr.mxu0 0.0
        %764 = vmatpush1.xpose.msra.mxu0 0.0
        %765 = vmatprep.subr.mxu0 0.0
        %766 = vmatpush1.xpose.msra.mxu0 0.0
        %767 = vmatprep.subr.mxu0 0.0
        %768 = vmatpush1.xpose.msra.mxu0 0.0
        %769 = vmatprep.subr.mxu0 0.0
        %770 = vmatpush1.xpose.msra.mxu0 0.0
        %771 = vmatprep.subr.mxu0 0.0
        %772 = vmatpush1.xpose.msra.mxu0 0.0
        %773 = vmatprep.subr.mxu0 0.0
        %774 = vmatpush1.xpose.msra.mxu0 0.0
        %775 = vmatprep.subr.mxu0 0.0
        %776 = vmatpush1.xpose.msra.mxu0 0.0
        %777 = vmatprep.subr.mxu0 0.0
        %778 = vmatpush1.xpose.msra.mxu0 0.0
        %779 = vmatprep.subr.mxu0 0.0
        %780 = vmatpush1.xpose.msra.mxu0 0.0
        %781 = vmatprep.subr.mxu0 0.0
        %782 = vmatpush1.xpose.msra.mxu0 0.0
        %783 = vmatprep.subr.mxu0 0.0
        %784 = vmatpush1.xpose.msra.mxu0 0.0
        %785 = vmatprep.subr.mxu0 0.0
        %786 = vmatpush1.xpose.msra.mxu0 0.0
        %787 = vmatprep.subr.mxu0 0.0
        %788 = vmatpush1.xpose.msra.mxu0 0.0
        %789 = vmatprep.subr.mxu0 0.0
        %790 = vmatpush1.xpose.msra.mxu0 0.0
        %791 = vmatprep.subr.mxu0 0.0
        %792 = vmatpush1.xpose.msra.mxu0 0.0
        %793 = vmatprep.subr.mxu0 0.0
        %794 = vmatpush1.xpose.msra.mxu0 0.0
        %795 = vmatprep.subr.mxu0 0.0
        %796 = vmatpush1.xpose.msra.mxu0 0.0
        %797 = vmatprep.subr.mxu0 0.0
        %798 = vmatpush1.xpose.msra.mxu0 0.0
        %799 = vmatprep.subr.mxu0 0.0
        %800 = vmatpush1.xpose.msra.mxu0 0.0
        %801 = vmatprep.subr.mxu0 0.0
        %802 = vmatpush1.xpose.msra.mxu0 0.0
        %803 = vmatprep.subr.mxu0 0.0
        %804 = vmatpush1.xpose.msra.mxu0 0.0
        %805 = vmatprep.subr.mxu0 0.0
        %806 = vmatpush1.xpose.msra.mxu0 0.0
        %807 = vmatprep.subr.mxu0 0.0
        %808 = vmatpush1.xpose.msra.mxu0 0.0
        %809 = vmatprep.subr.mxu0 0.0
        %810 = vmatpush1.xpose.msra.mxu0 0.0
        %811 = vmatprep.mubr.f32.mxu0 0.0
        %812 = vmatmul.mubr.f32.gmra.mrb[0].mxu0 %v743
        %v813 = vpop.f32.mrb[0].mxu0
        %v814 = vadd.f32 0.0, %v813
        %v815 = vpop.f32.mrb[0].mxu0
        %816 = vdwg.mxu0
        %v817 = vsel %vm650, %v814, -inf
        %818 = vmax.xlane.f32.xlu0 %v817
        %v819 = vpop.xlane.xlu0 %818
        %v820 = vsub.f32 %v814, %v819
        %v821 = vmul.f32 %v820, 1.442695
        %v822 = vpow.pop %v821
        %v823 = vsel %vm650, %v822, 0.0
        %824 = vadd.xlane.f32.xlu0 %v823
        %v825 = vpop.xlane.xlu0 %824
        %v826 = vrcp.pop %v825
        %v827 = vmul.f32 %v822, %v826
        %828 = vrot.lane.b32.xlu0 %v567, 44
        %v829 = vpop.permute.xlu0 %828
        %v832 = vsel %vm650, %v827, 0
        %834 = vmatprep.subr.mxu0 0.0
        %835 = vmatpush1.msra.mxu0 %v829
        %836 = vmatprep.subr.mxu0 0.0
        %837 = vmatpush1.msra.mxu0 0.0
        %838 = vmatprep.subr.mxu0 0.0
        %839 = vmatpush1.msra.mxu0 0.0
        %840 = vmatprep.subr.mxu0 0.0
        %841 = vmatpush1.msra.mxu0 0.0
        %842 = vmatprep.subr.mxu0 0.0
        %843 = vmatpush1.msra.mxu0 0.0
        %844 = vmatprep.subr.mxu0 0.0
        %845 = vmatpush1.msra.mxu0 0.0
        %846 = vmatprep.subr.mxu0 0.0
        %847 = vmatpush1.msra.mxu0 0.0
        %848 = vmatprep.subr.mxu0 0.0
        %849 = vmatpush1.msra.mxu0 0.0
        %850 = vmatprep.subr.mxu0 0.0
        %851 = vmatpush1.msra.mxu0 0.0
        %852 = vmatprep.subr.mxu0 0.0
        %853 = vmatpush1.msra.mxu0 0.0
        %854 = vmatprep.subr.mxu0 0.0
        %855 = vmatpush1.msra.mxu0 0.0
        %856 = vmatprep.subr.mxu0 0.0
        %857 = vmatpush1.msra.mxu0 0.0
        %858 = vmatprep.subr.mxu0 0.0
        %859 = vmatpush1.msra.mxu0 0.0
        %860 = vmatprep.subr.mxu0 0.0
        %861 = vmatpush1.msra.mxu0 0.0
        %862 = vmatprep.subr.mxu0 0.0
        %863 = vmatpush1.msra.mxu0 0.0
        %864 = vmatprep.subr.mxu0 0.0
        %865 = vmatpush1.msra.mxu0 0.0
        %866 = vmatprep.subr.mxu0 0.0
        %867 = vmatpush1.msra.mxu0 0.0
        %868 = vmatprep.subr.mxu0 0.0
        %869 = vmatpush1.msra.mxu0 0.0
        %870 = vmatprep.subr.mxu0 0.0
        %871 = vmatpush1.msra.mxu0 0.0
        %872 = vmatprep.subr.mxu0 0.0
        %873 = vmatpush1.msra.mxu0 0.0
        %874 = vmatprep.subr.mxu0 0.0
        %875 = vmatpush1.msra.mxu0 0.0
        %876 = vmatprep.subr.mxu0 0.0
        %877 = vmatpush1.msra.mxu0 0.0
        %878 = vmatprep.subr.mxu0 0.0
        %879 = vmatpush1.msra.mxu0 0.0
        %880 = vmatprep.subr.mxu0 0.0
        %881 = vmatpush1.msra.mxu0 0.0
        %882 = vmatprep.subr.mxu0 0.0
        %883 = vmatpush1.msra.mxu0 0.0
        %884 = vmatprep.subr.mxu0 0.0
        %885 = vmatpush1.msra.mxu0 0.0
        %886 = vmatprep.subr.mxu0 0.0
        %887 = vmatpush1.msra.mxu0 0.0
        %888 = vmatprep.subr.mxu0 0.0
        %889 = vmatpush1.msra.mxu0 0.0
        %890 = vmatprep.subr.mxu0 0.0
        %891 = vmatpush1.msra.mxu0 0.0
        %892 = vmatprep.subr.mxu0 0.0
        %893 = vmatpush1.msra.mxu0 0.0
        %894 = vmatprep.subr.mxu0 0.0
        %895 = vmatpush1.msra.mxu0 0.0
        %896 = vmatprep.subr.mxu0 0.0
        %897 = vmatpush1.msra.mxu0 0.0
        %898 = vmatprep.mubr.f32.mxu0 0.0
        %899 = vmatmul.mubr.f32.gmra.mrb[0].mxu0 %v832
        %v900 = vpop.f32.mrb[0].mxu0
        %v901 = vadd.f32 0.0, %v900
        %v902 = vpop.f32.mrb[0].mxu0
        %903 = vdwg.mxu0
        %905 = vrot.lane.b32.xlu0 %v901, 4
        %v906 = vpop.permute.xlu0 %905
        %vm908 = vcmask 64544
        %909 = vst.msk [vmem:[#allocation3] sm:$0xff] %vm908, %v906
        %910 = vrot.lane.b32.xlu0 %v567, 120
        %v911 = vpop.permute.xlu0 %910
        %912 = vrot.lane.b32.xlu0 %v567, 80
        %v913 = vpop.permute.xlu0 %912
        %v914 = vsel %vm575, %v911, 0
        %v916 = vsel %vm575, %v913, 0
        %918 = vmatprep.subr.mxu0 0.0
        %919 = vmatpush1.xpose.msra.mxu0 %v916
        %920 = vmatprep.subr.mxu0 0.0
        %921 = vmatpush1.xpose.msra.mxu0 0.0
        %922 = vmatprep.subr.mxu0 0.0
        %923 = vmatpush1.xpose.msra.mxu0 0.0
        %924 = vmatprep.subr.mxu0 0.0
        %925 = vmatpush1.xpose.msra.mxu0 0.0
        %926 = vmatprep.subr.mxu0 0.0
        %927 = vmatpush1.xpose.msra.mxu0 0.0
        %928 = vmatprep.subr.mxu0 0.0
        %929 = vmatpush1.xpose.msra.mxu0 0.0
        %930 = vmatprep.subr.mxu0 0.0
        %931 = vmatpush1.xpose.msra.mxu0 0.0
        %932 = vmatprep.subr.mxu0 0.0
        %933 = vmatpush1.xpose.msra.mxu0 0.0
        %934 = vmatprep.subr.mxu0 0.0
        %935 = vmatpush1.xpose.msra.mxu0 0.0
        %936 = vmatprep.subr.mxu0 0.0
        %937 = vmatpush1.xpose.msra.mxu0 0.0
        %938 = vmatprep.subr.mxu0 0.0
        %939 = vmatpush1.xpose.msra.mxu0 0.0
        %940 = vmatprep.subr.mxu0 0.0
        %941 = vmatpush1.xpose.msra.mxu0 0.0
        %942 = vmatprep.subr.mxu0 0.0
        %943 = vmatpush1.xpose.msra.mxu0 0.0
        %944 = vmatprep.subr.mxu0 0.0
        %945 = vmatpush1.xpose.msra.mxu0 0.0
        %946 = vmatprep.subr.mxu0 0.0
        %947 = vmatpush1.xpose.msra.mxu0 0.0
        %948 = vmatprep.subr.mxu0 0.0
        %949 = vmatpush1.xpose.msra.mxu0 0.0
        %950 = vmatprep.subr.mxu0 0.0
        %951 = vmatpush1.xpose.msra.mxu0 0.0
        %952 = vmatprep.subr.mxu0 0.0
        %953 = vmatpush1.xpose.msra.mxu0 0.0
        %954 = vmatprep.subr.mxu0 0.0
        %955 = vmatpush1.xpose.msra.mxu0 0.0
        %956 = vmatprep.subr.mxu0 0.0
        %957 = vmatpush1.xpose.msra.mxu0 0.0
        %958 = vmatprep.subr.mxu0 0.0
        %959 = vmatpush1.xpose.msra.mxu0 0.0
        %960 = vmatprep.subr.mxu0 0.0
        %961 = vmatpush1.xpose.msra.mxu0 0.0
        %962 = vmatprep.subr.mxu0 0.0
        %963 = vmatpush1.xpose.msra.mxu0 0.0
        %964 = vmatprep.subr.mxu0 0.0
        %965 = vmatpush1.xpose.msra.mxu0 0.0
        %966 = vmatprep.subr.mxu0 0.0
        %967 = vmatpush1.xpose.msra.mxu0 0.0
        %968 = vmatprep.subr.mxu0 0.0
        %969 = vmatpush1.xpose.msra.mxu0 0.0
        %970 = vmatprep.subr.mxu0 0.0
        %971 = vmatpush1.xpose.msra.mxu0 0.0
        %972 = vmatprep.subr.mxu0 0.0
        %973 = vmatpush1.xpose.msra.mxu0 0.0
        %974 = vmatprep.subr.mxu0 0.0
        %975 = vmatpush1.xpose.msra.mxu0 0.0
        %976 = vmatprep.subr.mxu0 0.0
        %977 = vmatpush1.xpose.msra.mxu0 0.0
        %978 = vmatprep.subr.mxu0 0.0
        %979 = vmatpush1.xpose.msra.mxu0 0.0
        %980 = vmatprep.subr.mxu0 0.0
        %981 = vmatpush1.xpose.msra.mxu0 0.0
        %982 = vmatprep.mubr.f32.mxu0 0.0
        %983 = vmatmul.mubr.f32.gmra.mrb[0].mxu0 %v914
        %v984 = vpop.f32.mrb[0].mxu0
        %v985 = vadd.f32 0.0, %v984
        %v986 = vpop.f32.mrb[0].mxu0
        %987 = vdwg.mxu0
        %v988 = vsel %vm650, %v985, -inf
        %989 = vmax.xlane.f32.xlu0 %v988
        %v990 = vpop.xlane.xlu0 %989
        %v991 = vsub.f32 %v985, %v990
        %v992 = vmul.f32 %v991, 1.442695
        %v993 = vpow.pop %v992
        %v994 = vsel %vm650, %v993, 0.0
        %995 = vadd.xlane.f32.xlu0 %v994
        %v996 = vpop.xlane.xlu0 %995
        %v997 = vrcp.pop %v996
        %v998 = vmul.f32 %v993, %v997
        %999 = vrot.lane.b32.xlu0 %v567, 40
        %v1000 = vpop.permute.xlu0 %999
        %v1003 = vsel %vm650, %v998, 0
        %1005 = vmatprep.subr.mxu0 0.0
        %1006 = vmatpush1.msra.mxu0 %v1000
        %1007 = vmatprep.subr.mxu0 0.0
        %1008 = vmatpush1.msra.mxu0 0.0
        %1009 = vmatprep.subr.mxu0 0.0
        %1010 = vmatpush1.msra.mxu0 0.0
        %1011 = vmatprep.subr.mxu0 0.0
        %1012 = vmatpush1.msra.mxu0 0.0
        %1013 = vmatprep.subr.mxu0 0.0
        %1014 = vmatpush1.msra.mxu0 0.0
        %1015 = vmatprep.subr.mxu0 0.0
        %1016 = vmatpush1.msra.mxu0 0.0
        %1017 = vmatprep.subr.mxu0 0.0
        %1018 = vmatpush1.msra.mxu0 0.0
        %1019 = vmatprep.subr.mxu0 0.0
        %1020 = vmatpush1.msra.mxu0 0.0
        %1021 = vmatprep.subr.mxu0 0.0
        %1022 = vmatpush1.msra.mxu0 0.0
        %1023 = vmatprep.subr.mxu0 0.0
        %1024 = vmatpush1.msra.mxu0 0.0
        %1025 = vmatprep.subr.mxu0 0.0
        %1026 = vmatpush1.msra.mxu0 0.0
        %1027 = vmatprep.subr.mxu0 0.0
        %1028 = vmatpush1.msra.mxu0 0.0
        %1029 = vmatprep.subr.mxu0 0.0
        %1030 = vmatpush1.msra.mxu0 0.0
        %1031 = vmatprep.subr.mxu0 0.0
        %1032 = vmatpush1.msra.mxu0 0.0
        %1033 = vmatprep.subr.mxu0 0.0
        %1034 = vmatpush1.msra.mxu0 0.0
        %1035 = vmatprep.subr.mxu0 0.0
        %1036 = vmatpush1.msra.mxu0 0.0
        %1037 = vmatprep.subr.mxu0 0.0
        %1038 = vmatpush1.msra.mxu0 0.0
        %1039 = vmatprep.subr.mxu0 0.0
        %1040 = vmatpush1.msra.mxu0 0.0
        %1041 = vmatprep.subr.mxu0 0.0
        %1042 = vmatpush1.msra.mxu0 0.0
        %1043 = vmatprep.subr.mxu0 0.0
        %1044 = vmatpush1.msra.mxu0 0.0
        %1045 = vmatprep.subr.mxu0 0.0
        %1046 = vmatpush1.msra.mxu0 0.0
        %1047 = vmatprep.subr.mxu0 0.0
        %1048 = vmatpush1.msra.mxu0 0.0
        %1049 = vmatprep.subr.mxu0 0.0
        %1050 = vmatpush1.msra.mxu0 0.0
        %1051 = vmatprep.subr.mxu0 0.0
        %1052 = vmatpush1.msra.mxu0 0.0
        %1053 = vmatprep.subr.mxu0 0.0
        %1054 = vmatpush1.msra.mxu0 0.0
        %1055 = vmatprep.subr.mxu0 0.0
        %1056 = vmatpush1.msra.mxu0 0.0
        %1057 = vmatprep.subr.mxu0 0.0
        %1058 = vmatpush1.msra.mxu0 0.0
        %1059 = vmatprep.subr.mxu0 0.0
        %1060 = vmatpush1.msra.mxu0 0.0
        %1061 = vmatprep.subr.mxu0 0.0
        %1062 = vmatpush1.msra.mxu0 0.0
        %1063 = vmatprep.subr.mxu0 0.0
        %1064 = vmatpush1.msra.mxu0 0.0
        %1065 = vmatprep.subr.mxu0 0.0
        %1066 = vmatpush1.msra.mxu0 0.0
        %1067 = vmatprep.subr.mxu0 0.0
        %1068 = vmatpush1.msra.mxu0 0.0
        %1069 = vmatprep.mubr.f32.mxu0 0.0
        %1070 = vmatmul.mubr.f32.gmra.mrb[0].mxu0 %v1003
        %v1071 = vpop.f32.mrb[0].mxu0
        %v1072 = vadd.f32 0.0, %v1071
        %v1073 = vpop.f32.mrb[0].mxu0
        %1074 = vdwg.mxu0
        %1076 = vrot.lane.b32.xlu0 %v1072, 8
        %v1077 = vpop.permute.xlu0 %1076
        %vm1079 = vcmask 97344
        %1080 = vst.msk [vmem:[#allocation3] sm:$0xff] %vm1079, %v1077
        %1081 = vrot.lane.b32.xlu0 %v567, 116
        %v1082 = vpop.permute.xlu0 %1081
        %1083 = vrot.lane.b32.xlu0 %v567, 76
        %v1084 = vpop.permute.xlu0 %1083
        %v1085 = vsel %vm575, %v1082, 0
        %v1087 = vsel %vm575, %v1084, 0
        %1089 = vmatprep.subr.mxu0 0.0
        %1090 = vmatpush1.xpose.msra.mxu0 %v1087
        %1091 = vmatprep.subr.mxu0 0.0
        %1092 = vmatpush1.xpose.msra.mxu0 0.0
        %1093 = vmatprep.subr.mxu0 0.0
        %1094 = vmatpush1.xpose.msra.mxu0 0.0
        %1095 = vmatprep.subr.mxu0 0.0
        %1096 = vmatpush1.xpose.msra.mxu0 0.0
        %1097 = vmatprep.subr.mxu0 0.0
        %1098 = vmatpush1.xpose.msra.mxu0 0.0
        %1099 = vmatprep.subr.mxu0 0.0
        %1100 = vmatpush1.xpose.msra.mxu0 0.0
        %1101 = vmatprep.subr.mxu0 0.0
        %1102 = vmatpush1.xpose.msra.mxu0 0.0
        %1103 = vmatprep.subr.mxu0 0.0
        %1104 = vmatpush1.xpose.msra.mxu0 0.0
        %1105 = vmatprep.subr.mxu0 0.0
        %1106 = vmatpush1.xpose.msra.mxu0 0.0
        %1107 = vmatprep.subr.mxu0 0.0
        %1108 = vmatpush1.xpose.msra.mxu0 0.0
        %1109 = vmatprep.subr.mxu0 0.0
        %1110 = vmatpush1.xpose.msra.mxu0 0.0
        %1111 = vmatprep.subr.mxu0 0.0
        %1112 = vmatpush1.xpose.msra.mxu0 0.0
        %1113 = vmatprep.subr.mxu0 0.0
        %1114 = vmatpush1.xpose.msra.mxu0 0.0
        %1115 = vmatprep.subr.mxu0 0.0
        %1116 = vmatpush1.xpose.msra.mxu0 0.0
        %1117 = vmatprep.subr.mxu0 0.0
        %1118 = vmatpush1.xpose.msra.mxu0 0.0
        %1119 = vmatprep.subr.mxu0 0.0
        %1120 = vmatpush1.xpose.msra.mxu0 0.0
        %1121 = vmatprep.subr.mxu0 0.0
        %1122 = vmatpush1.xpose.msra.mxu0 0.0
        %1123 = vmatprep.subr.mxu0 0.0
        %1124 = vmatpush1.xpose.msra.mxu0 0.0
        %1125 = vmatprep.subr.mxu0 0.0
        %1126 = vmatpush1.xpose.msra.mxu0 0.0
        %1127 = vmatprep.subr.mxu0 0.0
        %1128 = vmatpush1.xpose.msra.mxu0 0.0
        %1129 = vmatprep.subr.mxu0 0.0
        %1130 = vmatpush1.xpose.msra.mxu0 0.0
        %1131 = vmatprep.subr.mxu0 0.0
        %1132 = vmatpush1.xpose.msra.mxu0 0.0
        %1133 = vmatprep.subr.mxu0 0.0
        %1134 = vmatpush1.xpose.msra.mxu0 0.0
        %1135 = vmatprep.subr.mxu0 0.0
        %1136 = vmatpush1.xpose.msra.mxu0 0.0
        %1137 = vmatprep.subr.mxu0 0.0
        %1138 = vmatpush1.xpose.msra.mxu0 0.0
        %1139 = vmatprep.subr.mxu0 0.0
        %1140 = vmatpush1.xpose.msra.mxu0 0.0
        %1141 = vmatprep.subr.mxu0 0.0
        %1142 = vmatpush1.xpose.msra.mxu0 0.0
        %1143 = vmatprep.subr.mxu0 0.0
        %1144 = vmatpush1.xpose.msra.mxu0 0.0
        %1145 = vmatprep.subr.mxu0 0.0
        %1146 = vmatpush1.xpose.msra.mxu0 0.0
        %1147 = vmatprep.subr.mxu0 0.0
        %1148 = vmatpush1.xpose.msra.mxu0 0.0
        %1149 = vmatprep.subr.mxu0 0.0
        %1150 = vmatpush1.xpose.msra.mxu0 0.0
        %1151 = vmatprep.subr.mxu0 0.0
        %1152 = vmatpush1.xpose.msra.mxu0 0.0
        %1153 = vmatprep.mubr.f32.mxu0 0.0
        %1154 = vmatmul.mubr.f32.gmra.mrb[0].mxu0 %v1085
        %v1155 = vpop.f32.mrb[0].mxu0
        %v1156 = vadd.f32 0.0, %v1155
        %v1157 = vpop.f32.mrb[0].mxu0
        %1158 = vdwg.mxu0
        %v1159 = vsel %vm650, %v1156, -inf
        %1160 = vmax.xlane.f32.xlu0 %v1159
        %v1161 = vpop.xlane.xlu0 %1160
        %v1162 = vsub.f32 %v1156, %v1161
        %v1163 = vmul.f32 %v1162, 1.442695
        %v1164 = vpow.pop %v1163
        %v1165 = vsel %vm650, %v1164, 0.0
        %1166 = vadd.xlane.f32.xlu0 %v1165
        %v1167 = vpop.xlane.xlu0 %1166
        %v1168 = vrcp.pop %v1167
        %v1169 = vmul.f32 %v1164, %v1168
        %1170 = vrot.lane.b32.xlu0 %v567, 36
        %v1171 = vpop.permute.xlu0 %1170
        %v1174 = vsel %vm650, %v1169, 0
        %1176 = vmatprep.subr.mxu0 0.0
        %1177 = vmatpush1.msra.mxu0 %v1171
        %1178 = vmatprep.subr.mxu0 0.0
        %1179 = vmatpush1.msra.mxu0 0.0
        %1180 = vmatprep.subr.mxu0 0.0
        %1181 = vmatpush1.msra.mxu0 0.0
        %1182 = vmatprep.subr.mxu0 0.0
        %1183 = vmatpush1.msra.mxu0 0.0
        %1184 = vmatprep.subr.mxu0 0.0
        %1185 = vmatpush1.msra.mxu0 0.0
        %1186 = vmatprep.subr.mxu0 0.0
        %1187 = vmatpush1.msra.mxu0 0.0
        %1188 = vmatprep.subr.mxu0 0.0
        %1189 = vmatpush1.msra.mxu0 0.0
        %1190 = vmatprep.subr.mxu0 0.0
        %1191 = vmatpush1.msra.mxu0 0.0
        %1192 = vmatprep.subr.mxu0 0.0
        %1193 = vmatpush1.msra.mxu0 0.0
        %1194 = vmatprep.subr.mxu0 0.0
        %1195 = vmatpush1.msra.mxu0 0.0
        %1196 = vmatprep.subr.mxu0 0.0
        %1197 = vmatpush1.msra.mxu0 0.0
        %1198 = vmatprep.subr.mxu0 0.0
        %1199 = vmatpush1.msra.mxu0 0.0
        %1200 = vmatprep.subr.mxu0 0.0
        %1201 = vmatpush1.msra.mxu0 0.0
        %1202 = vmatprep.subr.mxu0 0.0
        %1203 = vmatpush1.msra.mxu0 0.0
        %1204 = vmatprep.subr.mxu0 0.0
        %1205 = vmatpush1.msra.mxu0 0.0
        %1206 = vmatprep.subr.mxu0 0.0
        %1207 = vmatpush1.msra.mxu0 0.0
        %1208 = vmatprep.subr.mxu0 0.0
        %1209 = vmatpush1.msra.mxu0 0.0
        %1210 = vmatprep.subr.mxu0 0.0
        %1211 = vmatpush1.msra.mxu0 0.0
        %1212 = vmatprep.subr.mxu0 0.0
        %1213 = vmatpush1.msra.mxu0 0.0
        %1214 = vmatprep.subr.mxu0 0.0
        %1215 = vmatpush1.msra.mxu0 0.0
        %1216 = vmatprep.subr.mxu0 0.0
        %1217 = vmatpush1.msra.mxu0 0.0
        %1218 = vmatprep.subr.mxu0 0.0
        %1219 = vmatpush1.msra.mxu0 0.0
        %1220 = vmatprep.subr.mxu0 0.0
        %1221 = vmatpush1.msra.mxu0 0.0
        %1222 = vmatprep.subr.mxu0 0.0
        %1223 = vmatpush1.msra.mxu0 0.0
        %1224 = vmatprep.subr.mxu0 0.0
        %1225 = vmatpush1.msra.mxu0 0.0
        %1226 = vmatprep.subr.mxu0 0.0
        %1227 = vmatpush1.msra.mxu0 0.0
        %1228 = vmatprep.subr.mxu0 0.0
        %1229 = vmatpush1.msra.mxu0 0.0
        %1230 = vmatprep.subr.mxu0 0.0
        %1231 = vmatpush1.msra.mxu0 0.0
        %1232 = vmatprep.subr.mxu0 0.0
        %1233 = vmatpush1.msra.mxu0 0.0
        %1234 = vmatprep.subr.mxu0 0.0
        %1235 = vmatpush1.msra.mxu0 0.0
        %1236 = vmatprep.subr.mxu0 0.0
        %1237 = vmatpush1.msra.mxu0 0.0
        %1238 = vmatprep.subr.mxu0 0.0
        %1239 = vmatpush1.msra.mxu0 0.0
        %1240 = vmatprep.mubr.f32.mxu0 0.0
        %1241 = vmatmul.mubr.f32.gmra.mrb[0].mxu0 %v1174
        %v1242 = vpop.f32.mrb[0].mxu0
        %v1243 = vadd.f32 0.0, %v1242
        %v1244 = vpop.f32.mrb[0].mxu0
        %1245 = vdwg.mxu0
        %1247 = vrot.lane.b32.xlu0 %v1243, 12
        %v1248 = vpop.permute.xlu0 %1247
        %vm1250 = vcmask 130144
        %1251 = vst.msk [vmem:[#allocation3] sm:$0xff] %vm1250, %v1248
        %1252 = vrot.lane.b32.xlu0 %v567, 112
        %v1253 = vpop.permute.xlu0 %1252
        %1254 = vrot.lane.b32.xlu0 %v567, 72
        %v1255 = vpop.permute.xlu0 %1254
        %v1256 = vsel %vm575, %v1253, 0
        %v1258 = vsel %vm575, %v1255, 0
        %1260 = vmatprep.subr.mxu0 0.0
        %1261 = vmatpush1.xpose.msra.mxu0 %v1258
        %1262 = vmatprep.subr.mxu0 0.0
        %1263 = vmatpush1.xpose.msra.mxu0 0.0
        %1264 = vmatprep.subr.mxu0 0.0
        %1265 = vmatpush1.xpose.msra.mxu0 0.0
        %1266 = vmatprep.subr.mxu0 0.0
        %1267 = vmatpush1.xpose.msra.mxu0 0.0
        %1268 = vmatprep.subr.mxu0 0.0
        %1269 = vmatpush1.xpose.msra.mxu0 0.0
        %1270 = vmatprep.subr.mxu0 0.0
        %1271 = vmatpush1.xpose.msra.mxu0 0.0
        %1272 = vmatprep.subr.mxu0 0.0
        %1273 = vmatpush1.xpose.msra.mxu0 0.0
        %1274 = vmatprep.subr.mxu0 0.0
        %1275 = vmatpush1.xpose.msra.mxu0 0.0
        %1276 = vmatprep.subr.mxu0 0.0
        %1277 = vmatpush1.xpose.msra.mxu0 0.0
        %1278 = vmatprep.subr.mxu0 0.0
        %1279 = vmatpush1.xpose.msra.mxu0 0.0
        %1280 = vmatprep.subr.mxu0 0.0
        %1281 = vmatpush1.xpose.msra.mxu0 0.0
        %1282 = vmatprep.subr.mxu0 0.0
        %1283 = vmatpush1.xpose.msra.mxu0 0.0
        %1284 = vmatprep.subr.mxu0 0.0
        %1285 = vmatpush1.xpose.msra.mxu0 0.0
        %1286 = vmatprep.subr.mxu0 0.0
        %1287 = vmatpush1.xpose.msra.mxu0 0.0
        %1288 = vmatprep.subr.mxu0 0.0
        %1289 = vmatpush1.xpose.msra.mxu0 0.0
        %1290 = vmatprep.subr.mxu0 0.0
        %1291 = vmatpush1.xpose.msra.mxu0 0.0
        %1292 = vmatprep.subr.mxu0 0.0
        %1293 = vmatpush1.xpose.msra.mxu0 0.0
        %1294 = vmatprep.subr.mxu0 0.0
        %1295 = vmatpush1.xpose.msra.mxu0 0.0
        %1296 = vmatprep.subr.mxu0 0.0
        %1297 = vmatpush1.xpose.msra.mxu0 0.0
        %1298 = vmatprep.subr.mxu0 0.0
        %1299 = vmatpush1.xpose.msra.mxu0 0.0
        %1300 = vmatprep.subr.mxu0 0.0
        %1301 = vmatpush1.xpose.msra.mxu0 0.0
        %1302 = vmatprep.subr.mxu0 0.0
        %1303 = vmatpush1.xpose.msra.mxu0 0.0
        %1304 = vmatprep.subr.mxu0 0.0
        %1305 = vmatpush1.xpose.msra.mxu0 0.0
        %1306 = vmatprep.subr.mxu0 0.0
        %1307 = vmatpush1.xpose.msra.mxu0 0.0
        %1308 = vmatprep.subr.mxu0 0.0
        %1309 = vmatpush1.xpose.msra.mxu0 0.0
        %1310 = vmatprep.subr.mxu0 0.0
        %1311 = vmatpush1.xpose.msra.mxu0 0.0
        %1312 = vmatprep.subr.mxu0 0.0
        %1313 = vmatpush1.xpose.msra.mxu0 0.0
        %1314 = vmatprep.subr.mxu0 0.0
        %1315 = vmatpush1.xpose.msra.mxu0 0.0
        %1316 = vmatprep.subr.mxu0 0.0
        %1317 = vmatpush1.xpose.msra.mxu0 0.0
        %1318 = vmatprep.subr.mxu0 0.0
        %1319 = vmatpush1.xpose.msra.mxu0 0.0
        %1320 = vmatprep.subr.mxu0 0.0
        %1321 = vmatpush1.xpose.msra.mxu0 0.0
        %1322 = vmatprep.subr.mxu0 0.0
        %1323 = vmatpush1.xpose.msra.mxu0 0.0
        %1324 = vmatprep.mubr.f32.mxu0 0.0
        %1325 = vmatmul.mubr.f32.gmra.mrb[0].mxu0 %v1256
        %v1326 = vpop.f32.mrb[0].mxu0
        %v1327 = vadd.f32 0.0, %v1326
        %v1328 = vpop.f32.mrb[0].mxu0
        %1329 = vdwg.mxu0
        %v1330 = vsel %vm650, %v1327, -inf
        %1331 = vmax.xlane.f32.xlu0 %v1330
        %v1332 = vpop.xlane.xlu0 %1331
        %v1333 = vsub.f32 %v1327, %v1332
        %v1334 = vmul.f32 %v1333, 1.442695
        %v1335 = vpow.pop %v1334
        %v1336 = vsel %vm650, %v1335, 0.0
        %1337 = vadd.xlane.f32.xlu0 %v1336
        %v1338 = vpop.xlane.xlu0 %1337
        %v1339 = vrcp.pop %v1338
        %v1340 = vmul.f32 %v1335, %v1339
        %1341 = vrot.lane.b32.xlu0 %v567, 32
        %v1342 = vpop.permute.xlu0 %1341
        %v1345 = vsel %vm650, %v1340, 0
        %1347 = vmatprep.subr.mxu0 0.0
        %1348 = vmatpush1.msra.mxu0 %v1342
        %1349 = vmatprep.subr.mxu0 0.0
        %1350 = vmatpush1.msra.mxu0 0.0
        %1351 = vmatprep.subr.mxu0 0.0
        %1352 = vmatpush1.msra.mxu0 0.0
        %1353 = vmatprep.subr.mxu0 0.0
        %1354 = vmatpush1.msra.mxu0 0.0
        %1355 = vmatprep.subr.mxu0 0.0
        %1356 = vmatpush1.msra.mxu0 0.0
        %1357 = vmatprep.subr.mxu0 0.0
        %1358 = vmatpush1.msra.mxu0 0.0
        %1359 = vmatprep.subr.mxu0 0.0
        %1360 = vmatpush1.msra.mxu0 0.0
        %1361 = vmatprep.subr.mxu0 0.0
        %1362 = vmatpush1.msra.mxu0 0.0
        %1363 = vmatprep.subr.mxu0 0.0
        %1364 = vmatpush1.msra.mxu0 0.0
        %1365 = vmatprep.subr.mxu0 0.0
        %1366 = vmatpush1.msra.mxu0 0.0
        %1367 = vmatprep.subr.mxu0 0.0
        %1368 = vmatpush1.msra.mxu0 0.0
        %1369 = vmatprep.subr.mxu0 0.0
        %1370 = vmatpush1.msra.mxu0 0.0
        %1371 = vmatprep.subr.mxu0 0.0
        %1372 = vmatpush1.msra.mxu0 0.0
        %1373 = vmatprep.subr.mxu0 0.0
        %1374 = vmatpush1.msra.mxu0 0.0
        %1375 = vmatprep.subr.mxu0 0.0
        %1376 = vmatpush1.msra.mxu0 0.0
        %1377 = vmatprep.subr.mxu0 0.0
        %1378 = vmatpush1.msra.mxu0 0.0
        %1379 = vmatprep.subr.mxu0 0.0
        %1380 = vmatpush1.msra.mxu0 0.0
        %1381 = vmatprep.subr.mxu0 0.0
        %1382 = vmatpush1.msra.mxu0 0.0
        %1383 = vmatprep.subr.mxu0 0.0
        %1384 = vmatpush1.msra.mxu0 0.0
        %1385 = vmatprep.subr.mxu0 0.0
        %1386 = vmatpush1.msra.mxu0 0.0
        %1387 = vmatprep.subr.mxu0 0.0
        %1388 = vmatpush1.msra.mxu0 0.0
        %1389 = vmatprep.subr.mxu0 0.0
        %1390 = vmatpush1.msra.mxu0 0.0
        %1391 = vmatprep.subr.mxu0 0.0
        %1392 = vmatpush1.msra.mxu0 0.0
        %1393 = vmatprep.subr.mxu0 0.0
        %1394 = vmatpush1.msra.mxu0 0.0
        %1395 = vmatprep.subr.mxu0 0.0
        %1396 = vmatpush1.msra.mxu0 0.0
        %1397 = vmatprep.subr.mxu0 0.0
        %1398 = vmatpush1.msra.mxu0 0.0
        %1399 = vmatprep.subr.mxu0 0.0
        %1400 = vmatpush1.msra.mxu0 0.0
        %1401 = vmatprep.subr.mxu0 0.0
        %1402 = vmatpush1.msra.mxu0 0.0
        %1403 = vmatprep.subr.mxu0 0.0
        %1404 = vmatpush1.msra.mxu0 0.0
        %1405 = vmatprep.subr.mxu0 0.0
        %1406 = vmatpush1.msra.mxu0 0.0
        %1407 = vmatprep.subr.mxu0 0.0
        %1408 = vmatpush1.msra.mxu0 0.0
        %1409 = vmatprep.subr.mxu0 0.0
        %1410 = vmatpush1.msra.mxu0 0.0
        %1411 = vmatprep.mubr.f32.mxu0 0.0
        %1412 = vmatmul.mubr.f32.gmra.mrb[0].mxu0 %v1345
        %v1413 = vpop.f32.mrb[0].mxu0
        %v1414 = vadd.f32 0.0, %v1413
        %v1415 = vpop.f32.mrb[0].mxu0
        %1416 = vdwg.mxu0
        %1418 = vrot.lane.b32.xlu0 %v1414, 16
        %v1419 = vpop.permute.xlu0 %1418
        %vm1421 = vcmask 162944
        %1422 = vst.msk [vmem:[#allocation3] sm:$0xff] %vm1421, %v1419
        %1423 = vrot.lane.b32.xlu0 %v567, 108
        %v1424 = vpop.permute.xlu0 %1423
        %1425 = vrot.lane.b32.xlu0 %v567, 68
        %v1426 = vpop.permute.xlu0 %1425
        %v1427 = vsel %vm575, %v1424, 0
        %v1429 = vsel %vm575, %v1426, 0
        %1431 = vmatprep.subr.mxu0 0.0
        %1432 = vmatpush1.xpose.msra.mxu0 %v1429
        %1433 = vmatprep.subr.mxu0 0.0
        %1434 = vmatpush1.xpose.msra.mxu0 0.0
        %1435 = vmatprep.subr.mxu0 0.0
        %1436 = vmatpush1.xpose.msra.mxu0 0.0
        %1437 = vmatprep.subr.mxu0 0.0
        %1438 = vmatpush1.xpose.msra.mxu0 0.0
        %1439 = vmatprep.subr.mxu0 0.0
        %1440 = vmatpush1.xpose.msra.mxu0 0.0
        %1441 = vmatprep.subr.mxu0 0.0
        %1442 = vmatpush1.xpose.msra.mxu0 0.0
        %1443 = vmatprep.subr.mxu0 0.0
        %1444 = vmatpush1.xpose.msra.mxu0 0.0
        %1445 = vmatprep.subr.mxu0 0.0
        %1446 = vmatpush1.xpose.msra.mxu0 0.0
        %1447 = vmatprep.subr.mxu0 0.0
        %1448 = vmatpush1.xpose.msra.mxu0 0.0
        %1449 = vmatprep.subr.mxu0 0.0
        %1450 = vmatpush1.xpose.msra.mxu0 0.0
        %1451 = vmatprep.subr.mxu0 0.0
        %1452 = vmatpush1.xpose.msra.mxu0 0.0
        %1453 = vmatprep.subr.mxu0 0.0
        %1454 = vmatpush1.xpose.msra.mxu0 0.0
        %1455 = vmatprep.subr.mxu0 0.0
        %1456 = vmatpush1.xpose.msra.mxu0 0.0
        %1457 = vmatprep.subr.mxu0 0.0
        %1458 = vmatpush1.xpose.msra.mxu0 0.0
        %1459 = vmatprep.subr.mxu0 0.0
        %1460 = vmatpush1.xpose.msra.mxu0 0.0
        %1461 = vmatprep.subr.mxu0 0.0
        %1462 = vmatpush1.xpose.msra.mxu0 0.0
        %1463 = vmatprep.subr.mxu0 0.0
        %1464 = vmatpush1.xpose.msra.mxu0 0.0
        %1465 = vmatprep.subr.mxu0 0.0
        %1466 = vmatpush1.xpose.msra.mxu0 0.0
        %1467 = vmatprep.subr.mxu0 0.0
        %1468 = vmatpush1.xpose.msra.mxu0 0.0
        %1469 = vmatprep.subr.mxu0 0.0
        %1470 = vmatpush1.xpose.msra.mxu0 0.0
        %1471 = vmatprep.subr.mxu0 0.0
        %1472 = vmatpush1.xpose.msra.mxu0 0.0
        %1473 = vmatprep.subr.mxu0 0.0
        %1474 = vmatpush1.xpose.msra.mxu0 0.0
        %1475 = vmatprep.subr.mxu0 0.0
        %1476 = vmatpush1.xpose.msra.mxu0 0.0
        %1477 = vmatprep.subr.mxu0 0.0
        %1478 = vmatpush1.xpose.msra.mxu0 0.0
        %1479 = vmatprep.subr.mxu0 0.0
        %1480 = vmatpush1.xpose.msra.mxu0 0.0
        %1481 = vmatprep.subr.mxu0 0.0
        %1482 = vmatpush1.xpose.msra.mxu0 0.0
        %1483 = vmatprep.subr.mxu0 0.0
        %1484 = vmatpush1.xpose.msra.mxu0 0.0
        %1485 = vmatprep.subr.mxu0 0.0
        %1486 = vmatpush1.xpose.msra.mxu0 0.0
        %1487 = vmatprep.subr.mxu0 0.0
        %1488 = vmatpush1.xpose.msra.mxu0 0.0
        %1489 = vmatprep.subr.mxu0 0.0
        %1490 = vmatpush1.xpose.msra.mxu0 0.0
        %1491 = vmatprep.subr.mxu0 0.0
        %1492 = vmatpush1.xpose.msra.mxu0 0.0
        %1493 = vmatprep.subr.mxu0 0.0
        %1494 = vmatpush1.xpose.msra.mxu0 0.0
        %1495 = vmatprep.mubr.f32.mxu0 0.0
        %1496 = vmatmul.mubr.f32.gmra.mrb[0].mxu0 %v1427
        %v1497 = vpop.f32.mrb[0].mxu0
        %v1498 = vadd.f32 0.0, %v1497
        %v1499 = vpop.f32.mrb[0].mxu0
        %1500 = vdwg.mxu0
        %v1501 = vsel %vm650, %v1498, -inf
        %1502 = vmax.xlane.f32.xlu0 %v1501
        %v1503 = vpop.xlane.xlu0 %1502
        %v1504 = vsub.f32 %v1498, %v1503
        %v1505 = vmul.f32 %v1504, 1.442695
        %v1506 = vpow.pop %v1505
        %v1507 = vsel %vm650, %v1506, 0.0
        %1508 = vadd.xlane.f32.xlu0 %v1507
        %v1509 = vpop.xlane.xlu0 %1508
        %v1510 = vrcp.pop %v1509
        %v1511 = vmul.f32 %v1506, %v1510
        %1512 = vrot.lane.b32.xlu0 %v567, 28
        %v1513 = vpop.permute.xlu0 %1512
        %v1516 = vsel %vm650, %v1511, 0
        %1518 = vmatprep.subr.mxu0 0.0
        %1519 = vmatpush1.msra.mxu0 %v1513
        %1520 = vmatprep.subr.mxu0 0.0
        %1521 = vmatpush1.msra.mxu0 0.0
        %1522 = vmatprep.subr.mxu0 0.0
        %1523 = vmatpush1.msra.mxu0 0.0
        %1524 = vmatprep.subr.mxu0 0.0
        %1525 = vmatpush1.msra.mxu0 0.0
        %1526 = vmatprep.subr.mxu0 0.0
        %1527 = vmatpush1.msra.mxu0 0.0
        %1528 = vmatprep.subr.mxu0 0.0
        %1529 = vmatpush1.msra.mxu0 0.0
        %1530 = vmatprep.subr.mxu0 0.0
        %1531 = vmatpush1.msra.mxu0 0.0
        %1532 = vmatprep.subr.mxu0 0.0
        %1533 = vmatpush1.msra.mxu0 0.0
        %1534 = vmatprep.subr.mxu0 0.0
        %1535 = vmatpush1.msra.mxu0 0.0
        %1536 = vmatprep.subr.mxu0 0.0
        %1537 = vmatpush1.msra.mxu0 0.0
        %1538 = vmatprep.subr.mxu0 0.0
        %1539 = vmatpush1.msra.mxu0 0.0
        %1540 = vmatprep.subr.mxu0 0.0
        %1541 = vmatpush1.msra.mxu0 0.0
        %1542 = vmatprep.subr.mxu0 0.0
        %1543 = vmatpush1.msra.mxu0 0.0
        %1544 = vmatprep.subr.mxu0 0.0
        %1545 = vmatpush1.msra.mxu0 0.0
        %1546 = vmatprep.subr.mxu0 0.0
        %1547 = vmatpush1.msra.mxu0 0.0
        %1548 = vmatprep.subr.mxu0 0.0
        %1549 = vmatpush1.msra.mxu0 0.0
        %1550 = vmatprep.subr.mxu0 0.0
        %1551 = vmatpush1.msra.mxu0 0.0
        %1552 = vmatprep.subr.mxu0 0.0
        %1553 = vmatpush1.msra.mxu0 0.0
        %1554 = vmatprep.subr.mxu0 0.0
        %1555 = vmatpush1.msra.mxu0 0.0
        %1556 = vmatprep.subr.mxu0 0.0
        %1557 = vmatpush1.msra.mxu0 0.0
        %1558 = vmatprep.subr.mxu0 0.0
        %1559 = vmatpush1.msra.mxu0 0.0
        %1560 = vmatprep.subr.mxu0 0.0
        %1561 = vmatpush1.msra.mxu0 0.0
        %1562 = vmatprep.subr.mxu0 0.0
        %1563 = vmatpush1.msra.mxu0 0.0
        %1564 = vmatprep.subr.mxu0 0.0
        %1565 = vmatpush1.msra.mxu0 0.0
        %1566 = vmatprep.subr.mxu0 0.0
        %1567 = vmatpush1.msra.mxu0 0.0
        %1568 = vmatprep.subr.mxu0 0.0
        %1569 = vmatpush1.msra.mxu0 0.0
        %1570 = vmatprep.subr.mxu0 0.0
        %1571 = vmatpush1.msra.mxu0 0.0
        %1572 = vmatprep.subr.mxu0 0.0
        %1573 = vmatpush1.msra.mxu0 0.0
        %1574 = vmatprep.subr.mxu0 0.0
        %1575 = vmatpush1.msra.mxu0 0.0
        %1576 = vmatprep.subr.mxu0 0.0
        %1577 = vmatpush1.msra.mxu0 0.0
        %1578 = vmatprep.subr.mxu0 0.0
        %1579 = vmatpush1.msra.mxu0 0.0
        %1580 = vmatprep.subr.mxu0 0.0
        %1581 = vmatpush1.msra.mxu0 0.0
        %1582 = vmatprep.mubr.f32.mxu0 0.0
        %1583 = vmatmul.mubr.f32.gmra.mrb[0].mxu0 %v1516
        %v1584 = vpop.f32.mrb[0].mxu0
        %v1585 = vadd.f32 0.0, %v1584
        %v1586 = vpop.f32.mrb[0].mxu0
        %1587 = vdwg.mxu0
        %1589 = vrot.lane.b32.xlu0 %v1585, 20
        %v1590 = vpop.permute.xlu0 %1589
        %vm1592 = vcmask 195744
        %1593 = vst.msk [vmem:[#allocation3] sm:$0xff] %vm1592, %v1590
        %1594 = vrot.lane.b32.xlu0 %v567, 104
        %v1595 = vpop.permute.xlu0 %1594
        %1596 = vrot.lane.b32.xlu0 %v567, 64
        %v1597 = vpop.permute.xlu0 %1596
        %v1598 = vsel %vm575, %v1595, 0
        %v1600 = vsel %vm575, %v1597, 0
        %1602 = vmatprep.subr.mxu0 0.0
        %1603 = vmatpush1.xpose.msra.mxu0 %v1600
        %1604 = vmatprep.subr.mxu0 0.0
        %1605 = vmatpush1.xpose.msra.mxu0 0.0
        %1606 = vmatprep.subr.mxu0 0.0
        %1607 = vmatpush1.xpose.msra.mxu0 0.0
        %1608 = vmatprep.subr.mxu0 0.0
        %1609 = vmatpush1.xpose.msra.mxu0 0.0
        %1610 = vmatprep.subr.mxu0 0.0
        %1611 = vmatpush1.xpose.msra.mxu0 0.0
        %1612 = vmatprep.subr.mxu0 0.0
        %1613 = vmatpush1.xpose.msra.mxu0 0.0
        %1614 = vmatprep.subr.mxu0 0.0
        %1615 = vmatpush1.xpose.msra.mxu0 0.0
        %1616 = vmatprep.subr.mxu0 0.0
        %1617 = vmatpush1.xpose.msra.mxu0 0.0
        %1618 = vmatprep.subr.mxu0 0.0
        %1619 = vmatpush1.xpose.msra.mxu0 0.0
        %1620 = vmatprep.subr.mxu0 0.0
        %1621 = vmatpush1.xpose.msra.mxu0 0.0
        %1622 = vmatprep.subr.mxu0 0.0
        %1623 = vmatpush1.xpose.msra.mxu0 0.0
        %1624 = vmatprep.subr.mxu0 0.0
        %1625 = vmatpush1.xpose.msra.mxu0 0.0
        %1626 = vmatprep.subr.mxu0 0.0
        %1627 = vmatpush1.xpose.msra.mxu0 0.0
        %1628 = vmatprep.subr.mxu0 0.0
        %1629 = vmatpush1.xpose.msra.mxu0 0.0
        %1630 = vmatprep.subr.mxu0 0.0
        %1631 = vmatpush1.xpose.msra.mxu0 0.0
        %1632 = vmatprep.subr.mxu0 0.0
        %1633 = vmatpush1.xpose.msra.mxu0 0.0
        %1634 = vmatprep.subr.mxu0 0.0
        %1635 = vmatpush1.xpose.msra.mxu0 0.0
        %1636 = vmatprep.subr.mxu0 0.0
        %1637 = vmatpush1.xpose.msra.mxu0 0.0
        %1638 = vmatprep.subr.mxu0 0.0
        %1639 = vmatpush1.xpose.msra.mxu0 0.0
        %1640 = vmatprep.subr.mxu0 0.0
        %1641 = vmatpush1.xpose.msra.mxu0 0.0
        %1642 = vmatprep.subr.mxu0 0.0
        %1643 = vmatpush1.xpose.msra.mxu0 0.0
        %1644 = vmatprep.subr.mxu0 0.0
        %1645 = vmatpush1.xpose.msra.mxu0 0.0
        %1646 = vmatprep.subr.mxu0 0.0
        %1647 = vmatpush1.xpose.msra.mxu0 0.0
        %1648 = vmatprep.subr.mxu0 0.0
        %1649 = vmatpush1.xpose.msra.mxu0 0.0
        %1650 = vmatprep.subr.mxu0 0.0
        %1651 = vmatpush1.xpose.msra.mxu0 0.0
        %1652 = vmatprep.subr.mxu0 0.0
        %1653 = vmatpush1.xpose.msra.mxu0 0.0
        %1654 = vmatprep.subr.mxu0 0.0
        %1655 = vmatpush1.xpose.msra.mxu0 0.0
        %1656 = vmatprep.subr.mxu0 0.0
        %1657 = vmatpush1.xpose.msra.mxu0 0.0
        %1658 = vmatprep.subr.mxu0 0.0
        %1659 = vmatpush1.xpose.msra.mxu0 0.0
        %1660 = vmatprep.subr.mxu0 0.0
        %1661 = vmatpush1.xpose.msra.mxu0 0.0
        %1662 = vmatprep.subr.mxu0 0.0
        %1663 = vmatpush1.xpose.msra.mxu0 0.0
        %1664 = vmatprep.subr.mxu0 0.0
        %1665 = vmatpush1.xpose.msra.mxu0 0.0
        %1666 = vmatprep.mubr.f32.mxu0 0.0
        %1667 = vmatmul.mubr.f32.gmra.mrb[0].mxu0 %v1598
        %v1668 = vpop.f32.mrb[0].mxu0
        %v1669 = vadd.f32 0.0, %v1668
        %v1670 = vpop.f32.mrb[0].mxu0
        %1671 = vdwg.mxu0
        %v1672 = vsel %vm650, %v1669, -inf
        %1673 = vmax.xlane.f32.xlu0 %v1672
        %v1674 = vpop.xlane.xlu0 %1673
        %v1675 = vsub.f32 %v1669, %v1674
        %v1676 = vmul.f32 %v1675, 1.442695
        %v1677 = vpow.pop %v1676
        %v1678 = vsel %vm650, %v1677, 0.0
        %1679 = vadd.xlane.f32.xlu0 %v1678
        %v1680 = vpop.xlane.xlu0 %1679
        %v1681 = vrcp.pop %v1680
        %v1682 = vmul.f32 %v1677, %v1681
        %1683 = vrot.lane.b32.xlu0 %v567, 24
        %v1684 = vpop.permute.xlu0 %1683
        %v1687 = vsel %vm650, %v1682, 0
        %1689 = vmatprep.subr.mxu0 0.0
        %1690 = vmatpush1.msra.mxu0 %v1684
        %1691 = vmatprep.subr.mxu0 0.0
        %1692 = vmatpush1.msra.mxu0 0.0
        %1693 = vmatprep.subr.mxu0 0.0
        %1694 = vmatpush1.msra.mxu0 0.0
        %1695 = vmatprep.subr.mxu0 0.0
        %1696 = vmatpush1.msra.mxu0 0.0
        %1697 = vmatprep.subr.mxu0 0.0
        %1698 = vmatpush1.msra.mxu0 0.0
        %1699 = vmatprep.subr.mxu0 0.0
        %1700 = vmatpush1.msra.mxu0 0.0
        %1701 = vmatprep.subr.mxu0 0.0
        %1702 = vmatpush1.msra.mxu0 0.0
        %1703 = vmatprep.subr.mxu0 0.0
        %1704 = vmatpush1.msra.mxu0 0.0
        %1705 = vmatprep.subr.mxu0 0.0
        %1706 = vmatpush1.msra.mxu0 0.0
        %1707 = vmatprep.subr.mxu0 0.0
        %1708 = vmatpush1.msra.mxu0 0.0
        %1709 = vmatprep.subr.mxu0 0.0
        %1710 = vmatpush1.msra.mxu0 0.0
        %1711 = vmatprep.subr.mxu0 0.0
        %1712 = vmatpush1.msra.mxu0 0.0
        %1713 = vmatprep.subr.mxu0 0.0
        %1714 = vmatpush1.msra.mxu0 0.0
        %1715 = vmatprep.subr.mxu0 0.0
        %1716 = vmatpush1.msra.mxu0 0.0
        %1717 = vmatprep.subr.mxu0 0.0
        %1718 = vmatpush1.msra.mxu0 0.0
        %1719 = vmatprep.subr.mxu0 0.0
        %1720 = vmatpush1.msra.mxu0 0.0
        %1721 = vmatprep.subr.mxu0 0.0
        %1722 = vmatpush1.msra.mxu0 0.0
        %1723 = vmatprep.subr.mxu0 0.0
        %1724 = vmatpush1.msra.mxu0 0.0
        %1725 = vmatprep.subr.mxu0 0.0
        %1726 = vmatpush1.msra.mxu0 0.0
        %1727 = vmatprep.subr.mxu0 0.0
        %1728 = vmatpush1.msra.mxu0 0.0
        %1729 = vmatprep.subr.mxu0 0.0
        %1730 = vmatpush1.msra.mxu0 0.0
        %1731 = vmatprep.subr.mxu0 0.0
        %1732 = vmatpush1.msra.mxu0 0.0
        %1733 = vmatprep.subr.mxu0 0.0
        %1734 = vmatpush1.msra.mxu0 0.0
        %1735 = vmatprep.subr.mxu0 0.0
        %1736 = vmatpush1.msra.mxu0 0.0
        %1737 = vmatprep.subr.mxu0 0.0
        %1738 = vmatpush1.msra.mxu0 0.0
        %1739 = vmatprep.subr.mxu0 0.0
        %1740 = vmatpush1.msra.mxu0 0.0
        %1741 = vmatprep.subr.mxu0 0.0
        %1742 = vmatpush1.msra.mxu0 0.0
        %1743 = vmatprep.subr.mxu0 0.0
        %1744 = vmatpush1.msra.mxu0 0.0
        %1745 = vmatprep.subr.mxu0 0.0
        %1746 = vmatpush1.msra.mxu0 0.0
        %1747 = vmatprep.subr.mxu0 0.0
        %1748 = vmatpush1.msra.mxu0 0.0
        %1749 = vmatprep.subr.mxu0 0.0
        %1750 = vmatpush1.msra.mxu0 0.0
        %1751 = vmatprep.subr.mxu0 0.0
        %1752 = vmatpush1.msra.mxu0 0.0
        %1753 = vmatprep.mubr.f32.mxu0 0.0
        %1754 = vmatmul.mubr.f32.gmra.mrb[0].mxu0 %v1687
        %v1755 = vpop.f32.mrb[0].mxu0
        %v1756 = vadd.f32 0.0, %v1755
        %v1757 = vpop.f32.mrb[0].mxu0
        %1758 = vdwg.mxu0
        %1760 = vrot.lane.b32.xlu0 %v1756, 24
        %v1761 = vpop.permute.xlu0 %1760
        %vm1763 = vcmask 228544
        %1764 = vst.msk [vmem:[#allocation3] sm:$0xff] %vm1763, %v1761
        %1765 = vrot.lane.b32.xlu0 %v567, 100
        %v1766 = vpop.permute.xlu0 %1765
        %1767 = vrot.lane.b32.xlu0 %v567, 60
        %v1768 = vpop.permute.xlu0 %1767
        %v1769 = vsel %vm575, %v1766, 0
        %v1771 = vsel %vm575, %v1768, 0
        %1773 = vmatprep.subr.mxu0 0.0
        %1774 = vmatpush1.xpose.msra.mxu0 %v1771
        %1775 = vmatprep.subr.mxu0 0.0
        %1776 = vmatpush1.xpose.msra.mxu0 0.0
        %1777 = vmatprep.subr.mxu0 0.0
        %1778 = vmatpush1.xpose.msra.mxu0 0.0
        %1779 = vmatprep.subr.mxu0 0.0
        %1780 = vmatpush1.xpose.msra.mxu0 0.0
        %1781 = vmatprep.subr.mxu0 0.0
        %1782 = vmatpush1.xpose.msra.mxu0 0.0
        %1783 = vmatprep.subr.mxu0 0.0
        %1784 = vmatpush1.xpose.msra.mxu0 0.0
        %1785 = vmatprep.subr.mxu0 0.0
        %1786 = vmatpush1.xpose.msra.mxu0 0.0
        %1787 = vmatprep.subr.mxu0 0.0
        %1788 = vmatpush1.xpose.msra.mxu0 0.0
        %1789 = vmatprep.subr.mxu0 0.0
        %1790 = vmatpush1.xpose.msra.mxu0 0.0
        %1791 = vmatprep.subr.mxu0 0.0
        %1792 = vmatpush1.xpose.msra.mxu0 0.0
        %1793 = vmatprep.subr.mxu0 0.0
        %1794 = vmatpush1.xpose.msra.mxu0 0.0
        %1795 = vmatprep.subr.mxu0 0.0
        %1796 = vmatpush1.xpose.msra.mxu0 0.0
        %1797 = vmatprep.subr.mxu0 0.0
        %1798 = vmatpush1.xpose.msra.mxu0 0.0
        %1799 = vmatprep.subr.mxu0 0.0
        %1800 = vmatpush1.xpose.msra.mxu0 0.0
        %1801 = vmatprep.subr.mxu0 0.0
        %1802 = vmatpush1.xpose.msra.mxu0 0.0
        %1803 = vmatprep.subr.mxu0 0.0
        %1804 = vmatpush1.xpose.msra.mxu0 0.0
        %1805 = vmatprep.subr.mxu0 0.0
        %1806 = vmatpush1.xpose.msra.mxu0 0.0
        %1807 = vmatprep.subr.mxu0 0.0
        %1808 = vmatpush1.xpose.msra.mxu0 0.0
        %1809 = vmatprep.subr.mxu0 0.0
        %1810 = vmatpush1.xpose.msra.mxu0 0.0
        %1811 = vmatprep.subr.mxu0 0.0
        %1812 = vmatpush1.xpose.msra.mxu0 0.0
        %1813 = vmatprep.subr.mxu0 0.0
        %1814 = vmatpush1.xpose.msra.mxu0 0.0
        %1815 = vmatprep.subr.mxu0 0.0
        %1816 = vmatpush1.xpose.msra.mxu0 0.0
        %1817 = vmatprep.subr.mxu0 0.0
        %1818 = vmatpush1.xpose.msra.mxu0 0.0
        %1819 = vmatprep.subr.mxu0 0.0
        %1820 = vmatpush1.xpose.msra.mxu0 0.0
        %1821 = vmatprep.subr.mxu0 0.0
        %1822 = vmatpush1.xpose.msra.mxu0 0.0
        %1823 = vmatprep.subr.mxu0 0.0
        %1824 = vmatpush1.xpose.msra.mxu0 0.0
        %1825 = vmatprep.subr.mxu0 0.0
        %1826 = vmatpush1.xpose.msra.mxu0 0.0
        %1827 = vmatprep.subr.mxu0 0.0
        %1828 = vmatpush1.xpose.msra.mxu0 0.0
        %1829 = vmatprep.subr.mxu0 0.0
        %1830 = vmatpush1.xpose.msra.mxu0 0.0
        %1831 = vmatprep.subr.mxu0 0.0
        %1832 = vmatpush1.xpose.msra.mxu0 0.0
        %1833 = vmatprep.subr.mxu0 0.0
        %1834 = vmatpush1.xpose.msra.mxu0 0.0
        %1835 = vmatprep.subr.mxu0 0.0
        %1836 = vmatpush1.xpose.msra.mxu0 0.0
        %1837 = vmatprep.mubr.f32.mxu0 0.0
        %1838 = vmatmul.mubr.f32.gmra.mrb[0].mxu0 %v1769
        %v1839 = vpop.f32.mrb[0].mxu0
        %v1840 = vadd.f32 0.0, %v1839
        %v1841 = vpop.f32.mrb[0].mxu0
        %1842 = vdwg.mxu0
        %v1843 = vsel %vm650, %v1840, -inf
        %1844 = vmax.xlane.f32.xlu0 %v1843
        %v1845 = vpop.xlane.xlu0 %1844
        %v1846 = vsub.f32 %v1840, %v1845
        %v1847 = vmul.f32 %v1846, 1.442695
        %v1848 = vpow.pop %v1847
        %v1849 = vsel %vm650, %v1848, 0.0
        %1850 = vadd.xlane.f32.xlu0 %v1849
        %v1851 = vpop.xlane.xlu0 %1850
        %v1852 = vrcp.pop %v1851
        %v1853 = vmul.f32 %v1848, %v1852
        %1854 = vrot.lane.b32.xlu0 %v567, 20
        %v1855 = vpop.permute.xlu0 %1854
        %v1858 = vsel %vm650, %v1853, 0
        %1860 = vmatprep.subr.mxu0 0.0
        %1861 = vmatpush1.msra.mxu0 %v1855
        %1862 = vmatprep.subr.mxu0 0.0
        %1863 = vmatpush1.msra.mxu0 0.0
        %1864 = vmatprep.subr.mxu0 0.0
        %1865 = vmatpush1.msra.mxu0 0.0
        %1866 = vmatprep.subr.mxu0 0.0
        %1867 = vmatpush1.msra.mxu0 0.0
        %1868 = vmatprep.subr.mxu0 0.0
        %1869 = vmatpush1.msra.mxu0 0.0
        %1870 = vmatprep.subr.mxu0 0.0
        %1871 = vmatpush1.msra.mxu0 0.0
        %1872 = vmatprep.subr.mxu0 0.0
        %1873 = vmatpush1.msra.mxu0 0.0
        %1874 = vmatprep.subr.mxu0 0.0
        %1875 = vmatpush1.msra.mxu0 0.0
        %1876 = vmatprep.subr.mxu0 0.0
        %1877 = vmatpush1.msra.mxu0 0.0
        %1878 = vmatprep.subr.mxu0 0.0
        %1879 = vmatpush1.msra.mxu0 0.0
        %1880 = vmatprep.subr.mxu0 0.0
        %1881 = vmatpush1.msra.mxu0 0.0
        %1882 = vmatprep.subr.mxu0 0.0
        %1883 = vmatpush1.msra.mxu0 0.0
        %1884 = vmatprep.subr.mxu0 0.0
        %1885 = vmatpush1.msra.mxu0 0.0
        %1886 = vmatprep.subr.mxu0 0.0
        %1887 = vmatpush1.msra.mxu0 0.0
        %1888 = vmatprep.subr.mxu0 0.0
        %1889 = vmatpush1.msra.mxu0 0.0
        %1890 = vmatprep.subr.mxu0 0.0
        %1891 = vmatpush1.msra.mxu0 0.0
        %1892 = vmatprep.subr.mxu0 0.0
        %1893 = vmatpush1.msra.mxu0 0.0
        %1894 = vmatprep.subr.mxu0 0.0
        %1895 = vmatpush1.msra.mxu0 0.0
        %1896 = vmatprep.subr.mxu0 0.0
        %1897 = vmatpush1.msra.mxu0 0.0
        %1898 = vmatprep.subr.mxu0 0.0
        %1899 = vmatpush1.msra.mxu0 0.0
        %1900 = vmatprep.subr.mxu0 0.0
        %1901 = vmatpush1.msra.mxu0 0.0
        %1902 = vmatprep.subr.mxu0 0.0
        %1903 = vmatpush1.msra.mxu0 0.0
        %1904 = vmatprep.subr.mxu0 0.0
        %1905 = vmatpush1.msra.mxu0 0.0
        %1906 = vmatprep.subr.mxu0 0.0
        %1907 = vmatpush1.msra.mxu0 0.0
        %1908 = vmatprep.subr.mxu0 0.0
        %1909 = vmatpush1.msra.mxu0 0.0
        %1910 = vmatprep.subr.mxu0 0.0
        %1911 = vmatpush1.msra.mxu0 0.0
        %1912 = vmatprep.subr.mxu0 0.0
        %1913 = vmatpush1.msra.mxu0 0.0
        %1914 = vmatprep.subr.mxu0 0.0
        %1915 = vmatpush1.msra.mxu0 0.0
        %1916 = vmatprep.subr.mxu0 0.0
        %1917 = vmatpush1.msra.mxu0 0.0
        %1918 = vmatprep.subr.mxu0 0.0
        %1919 = vmatpush1.msra.mxu0 0.0
        %1920 = vmatprep.subr.mxu0 0.0
        %1921 = vmatpush1.msra.mxu0 0.0
        %1922 = vmatprep.subr.mxu0 0.0
        %1923 = vmatpush1.msra.mxu0 0.0
        %1924 = vmatprep.mubr.f32.mxu0 0.0
        %1925 = vmatmul.mubr.f32.gmra.mrb[0].mxu0 %v1858
        %v1926 = vpop.f32.mrb[0].mxu0
        %v1927 = vadd.f32 0.0, %v1926
        %v1928 = vpop.f32.mrb[0].mxu0
        %1929 = vdwg.mxu0
        %1931 = vrot.lane.b32.xlu0 %v1927, 28
        %v1932 = vpop.permute.xlu0 %1931
        %vm1934 = vcmask 261344
        %1935 = vst.msk [vmem:[#allocation3] sm:$0xff] %vm1934, %v1932
        %1936 = vrot.lane.b32.xlu0 %v567, 96
        %v1937 = vpop.permute.xlu0 %1936
        %1938 = vrot.lane.b32.xlu0 %v567, 56
        %v1939 = vpop.permute.xlu0 %1938
        %v1940 = vsel %vm575, %v1937, 0
        %v1942 = vsel %vm575, %v1939, 0
        %1944 = vmatprep.subr.mxu0 0.0
        %1945 = vmatpush1.xpose.msra.mxu0 %v1942
        %1946 = vmatprep.subr.mxu0 0.0
        %1947 = vmatpush1.xpose.msra.mxu0 0.0
        %1948 = vmatprep.subr.mxu0 0.0
        %1949 = vmatpush1.xpose.msra.mxu0 0.0
        %1950 = vmatprep.subr.mxu0 0.0
        %1951 = vmatpush1.xpose.msra.mxu0 0.0
        %1952 = vmatprep.subr.mxu0 0.0
        %1953 = vmatpush1.xpose.msra.mxu0 0.0
        %1954 = vmatprep.subr.mxu0 0.0
        %1955 = vmatpush1.xpose.msra.mxu0 0.0
        %1956 = vmatprep.subr.mxu0 0.0
        %1957 = vmatpush1.xpose.msra.mxu0 0.0
        %1958 = vmatprep.subr.mxu0 0.0
        %1959 = vmatpush1.xpose.msra.mxu0 0.0
        %1960 = vmatprep.subr.mxu0 0.0
        %1961 = vmatpush1.xpose.msra.mxu0 0.0
        %1962 = vmatprep.subr.mxu0 0.0
        %1963 = vmatpush1.xpose.msra.mxu0 0.0
        %1964 = vmatprep.subr.mxu0 0.0
        %1965 = vmatpush1.xpose.msra.mxu0 0.0
        %1966 = vmatprep.subr.mxu0 0.0
        %1967 = vmatpush1.xpose.msra.mxu0 0.0
        %1968 = vmatprep.subr.mxu0 0.0
        %1969 = vmatpush1.xpose.msra.mxu0 0.0
        %1970 = vmatprep.subr.mxu0 0.0
        %1971 = vmatpush1.xpose.msra.mxu0 0.0
        %1972 = vmatprep.subr.mxu0 0.0
        %1973 = vmatpush1.xpose.msra.mxu0 0.0
        %1974 = vmatprep.subr.mxu0 0.0
        %1975 = vmatpush1.xpose.msra.mxu0 0.0
        %1976 = vmatprep.subr.mxu0 0.0
        %1977 = vmatpush1.xpose.msra.mxu0 0.0
        %1978 = vmatprep.subr.mxu0 0.0
        %1979 = vmatpush1.xpose.msra.mxu0 0.0
        %1980 = vmatprep.subr.mxu0 0.0
        %1981 = vmatpush1.xpose.msra.mxu0 0.0
        %1982 = vmatprep.subr.mxu0 0.0
        %1983 = vmatpush1.xpose.msra.mxu0 0.0
        %1984 = vmatprep.subr.mxu0 0.0
        %1985 = vmatpush1.xpose.msra.mxu0 0.0
        %1986 = vmatprep.subr.mxu0 0.0
        %1987 = vmatpush1.xpose.msra.mxu0 0.0
        %1988 = vmatprep.subr.mxu0 0.0
        %1989 = vmatpush1.xpose.msra.mxu0 0.0
        %1990 = vmatprep.subr.mxu0 0.0
        %1991 = vmatpush1.xpose.msra.mxu0 0.0
        %1992 = vmatprep.subr.mxu0 0.0
        %1993 = vmatpush1.xpose.msra.mxu0 0.0
        %1994 = vmatprep.subr.mxu0 0.0
        %1995 = vmatpush1.xpose.msra.mxu0 0.0
        %1996 = vmatprep.subr.mxu0 0.0
        %1997 = vmatpush1.xpose.msra.mxu0 0.0
        %1998 = vmatprep.subr.mxu0 0.0
        %1999 = vmatpush1.xpose.msra.mxu0 0.0
        %2000 = vmatprep.subr.mxu0 0.0
        %2001 = vmatpush1.xpose.msra.mxu0 0.0
        %2002 = vmatprep.subr.mxu0 0.0
        %2003 = vmatpush1.xpose.msra.mxu0 0.0
        %2004 = vmatprep.subr.mxu0 0.0
        %2005 = vmatpush1.xpose.msra.mxu0 0.0
        %2006 = vmatprep.subr.mxu0 0.0
        %2007 = vmatpush1.xpose.msra.mxu0 0.0
        %2008 = vmatprep.mubr.f32.mxu0 0.0
        %2009 = vmatmul.mubr.f32.gmra.mrb[0].mxu0 %v1940
        %v2010 = vpop.f32.mrb[0].mxu0
        %v2011 = vadd.f32 0.0, %v2010
        %v2012 = vpop.f32.mrb[0].mxu0
        %2013 = vdwg.mxu0
        %v2014 = vsel %vm650, %v2011, -inf
        %2015 = vmax.xlane.f32.xlu0 %v2014
        %v2016 = vpop.xlane.xlu0 %2015
        %v2017 = vsub.f32 %v2011, %v2016
        %v2018 = vmul.f32 %v2017, 1.442695
        %v2019 = vpow.pop %v2018
        %v2020 = vsel %vm650, %v2019, 0.0
        %2021 = vadd.xlane.f32.xlu0 %v2020
        %v2022 = vpop.xlane.xlu0 %2021
        %v2023 = vrcp.pop %v2022
        %v2024 = vmul.f32 %v2019, %v2023
        %2025 = vrot.lane.b32.xlu0 %v567, 16
        %v2026 = vpop.permute.xlu0 %2025
        %v2029 = vsel %vm650, %v2024, 0
        %2031 = vmatprep.subr.mxu0 0.0
        %2032 = vmatpush1.msra.mxu0 %v2026
        %2033 = vmatprep.subr.mxu0 0.0
        %2034 = vmatpush1.msra.mxu0 0.0
        %2035 = vmatprep.subr.mxu0 0.0
        %2036 = vmatpush1.msra.mxu0 0.0
        %2037 = vmatprep.subr.mxu0 0.0
        %2038 = vmatpush1.msra.mxu0 0.0
        %2039 = vmatprep.subr.mxu0 0.0
        %2040 = vmatpush1.msra.mxu0 0.0
        %2041 = vmatprep.subr.mxu0 0.0
        %2042 = vmatpush1.msra.mxu0 0.0
        %2043 = vmatprep.subr.mxu0 0.0
        %2044 = vmatpush1.msra.mxu0 0.0
        %2045 = vmatprep.subr.mxu0 0.0
        %2046 = vmatpush1.msra.mxu0 0.0
        %2047 = vmatprep.subr.mxu0 0.0
        %2048 = vmatpush1.msra.mxu0 0.0
        %2049 = vmatprep.subr.mxu0 0.0
        %2050 = vmatpush1.msra.mxu0 0.0
        %2051 = vmatprep.subr.mxu0 0.0
        %2052 = vmatpush1.msra.mxu0 0.0
        %2053 = vmatprep.subr.mxu0 0.0
        %2054 = vmatpush1.msra.mxu0 0.0
        %2055 = vmatprep.subr.mxu0 0.0
        %2056 = vmatpush1.msra.mxu0 0.0
        %2057 = vmatprep.subr.mxu0 0.0
        %2058 = vmatpush1.msra.mxu0 0.0
        %2059 = vmatprep.subr.mxu0 0.0
        %2060 = vmatpush1.msra.mxu0 0.0
        %2061 = vmatprep.subr.mxu0 0.0
        %2062 = vmatpush1.msra.mxu0 0.0
        %2063 = vmatprep.subr.mxu0 0.0
        %2064 = vmatpush1.msra.mxu0 0.0
        %2065 = vmatprep.subr.mxu0 0.0
        %2066 = vmatpush1.msra.mxu0 0.0
        %2067 = vmatprep.subr.mxu0 0.0
        %2068 = vmatpush1.msra.mxu0 0.0
        %2069 = vmatprep.subr.mxu0 0.0
        %2070 = vmatpush1.msra.mxu0 0.0
        %2071 = vmatprep.subr.mxu0 0.0
        %2072 = vmatpush1.msra.mxu0 0.0
        %2073 = vmatprep.subr.mxu0 0.0
        %2074 = vmatpush1.msra.mxu0 0.0
        %2075 = vmatprep.subr.mxu0 0.0
        %2076 = vmatpush1.msra.mxu0 0.0
        %2077 = vmatprep.subr.mxu0 0.0
        %2078 = vmatpush1.msra.mxu0 0.0
        %2079 = vmatprep.subr.mxu0 0.0
        %2080 = vmatpush1.msra.mxu0 0.0
        %2081 = vmatprep.subr.mxu0 0.0
        %2082 = vmatpush1.msra.mxu0 0.0
        %2083 = vmatprep.subr.mxu0 0.0
        %2084 = vmatpush1.msra.mxu0 0.0
        %2085 = vmatprep.subr.mxu0 0.0
        %2086 = vmatpush1.msra.mxu0 0.0
        %2087 = vmatprep.subr.mxu0 0.0
        %2088 = vmatpush1.msra.mxu0 0.0
        %2089 = vmatprep.subr.mxu0 0.0
        %2090 = vmatpush1.msra.mxu0 0.0
        %2091 = vmatprep.subr.mxu0 0.0
        %2092 = vmatpush1.msra.mxu0 0.0
        %2093 = vmatprep.subr.mxu0 0.0
        %2094 = vmatpush1.msra.mxu0 0.0
        %2095 = vmatprep.mubr.f32.mxu0 0.0
        %2096 = vmatmul.mubr.f32.gmra.mrb[0].mxu0 %v2029
        %v2097 = vpop.f32.mrb[0].mxu0
        %v2098 = vadd.f32 0.0, %v2097
        %v2099 = vpop.f32.mrb[0].mxu0
        %2100 = vdwg.mxu0
        %2102 = vrot.lane.b32.xlu0 %v2098, 32
        %v2103 = vpop.permute.xlu0 %2102
        %vm2105 = vcmask 294144
        %2106 = vst.msk [vmem:[#allocation3] sm:$0xff] %vm2105, %v2103
        %2107 = vrot.lane.b32.xlu0 %v567, 92
        %v2108 = vpop.permute.xlu0 %2107
        %2109 = vrot.lane.b32.xlu0 %v567, 52
        %v2110 = vpop.permute.xlu0 %2109
        %v2111 = vsel %vm575, %v2108, 0
        %v2113 = vsel %vm575, %v2110, 0
        %2115 = vmatprep.subr.mxu0 0.0
        %2116 = vmatpush1.xpose.msra.mxu0 %v2113
        %2117 = vmatprep.subr.mxu0 0.0
        %2118 = vmatpush1.xpose.msra.mxu0 0.0
        %2119 = vmatprep.subr.mxu0 0.0
        %2120 = vmatpush1.xpose.msra.mxu0 0.0
        %2121 = vmatprep.subr.mxu0 0.0
        %2122 = vmatpush1.xpose.msra.mxu0 0.0
        %2123 = vmatprep.subr.mxu0 0.0
        %2124 = vmatpush1.xpose.msra.mxu0 0.0
        %2125 = vmatprep.subr.mxu0 0.0
        %2126 = vmatpush1.xpose.msra.mxu0 0.0
        %2127 = vmatprep.subr.mxu0 0.0
        %2128 = vmatpush1.xpose.msra.mxu0 0.0
        %2129 = vmatprep.subr.mxu0 0.0
        %2130 = vmatpush1.xpose.msra.mxu0 0.0
        %2131 = vmatprep.subr.mxu0 0.0
        %2132 = vmatpush1.xpose.msra.mxu0 0.0
        %2133 = vmatprep.subr.mxu0 0.0
        %2134 = vmatpush1.xpose.msra.mxu0 0.0
        %2135 = vmatprep.subr.mxu0 0.0
        %2136 = vmatpush1.xpose.msra.mxu0 0.0
        %2137 = vmatprep.subr.mxu0 0.0
        %2138 = vmatpush1.xpose.msra.mxu0 0.0
        %2139 = vmatprep.subr.mxu0 0.0
        %2140 = vmatpush1.xpose.msra.mxu0 0.0
        %2141 = vmatprep.subr.mxu0 0.0
        %2142 = vmatpush1.xpose.msra.mxu0 0.0
        %2143 = vmatprep.subr.mxu0 0.0
        %2144 = vmatpush1.xpose.msra.mxu0 0.0
        %2145 = vmatprep.subr.mxu0 0.0
        %2146 = vmatpush1.xpose.msra.mxu0 0.0
        %2147 = vmatprep.subr.mxu0 0.0
        %2148 = vmatpush1.xpose.msra.mxu0 0.0
        %2149 = vmatprep.subr.mxu0 0.0
        %2150 = vmatpush1.xpose.msra.mxu0 0.0
        %2151 = vmatprep.subr.mxu0 0.0
        %2152 = vmatpush1.xpose.msra.mxu0 0.0
        %2153 = vmatprep.subr.mxu0 0.0
        %2154 = vmatpush1.xpose.msra.mxu0 0.0
        %2155 = vmatprep.subr.mxu0 0.0
        %2156 = vmatpush1.xpose.msra.mxu0 0.0
        %2157 = vmatprep.subr.mxu0 0.0
        %2158 = vmatpush1.xpose.msra.mxu0 0.0
        %2159 = vmatprep.subr.mxu0 0.0
        %2160 = vmatpush1.xpose.msra.mxu0 0.0
        %2161 = vmatprep.subr.mxu0 0.0
        %2162 = vmatpush1.xpose.msra.mxu0 0.0
        %2163 = vmatprep.subr.mxu0 0.0
        %2164 = vmatpush1.xpose.msra.mxu0 0.0
        %2165 = vmatprep.subr.mxu0 0.0
        %2166 = vmatpush1.xpose.msra.mxu0 0.0
        %2167 = vmatprep.subr.mxu0 0.0
        %2168 = vmatpush1.xpose.msra.mxu0 0.0
        %2169 = vmatprep.subr.mxu0 0.0
        %2170 = vmatpush1.xpose.msra.mxu0 0.0
        %2171 = vmatprep.subr.mxu0 0.0
        %2172 = vmatpush1.xpose.msra.mxu0 0.0
        %2173 = vmatprep.subr.mxu0 0.0
        %2174 = vmatpush1.xpose.msra.mxu0 0.0
        %2175 = vmatprep.subr.mxu0 0.0
        %2176 = vmatpush1.xpose.msra.mxu0 0.0
        %2177 = vmatprep.subr.mxu0 0.0
        %2178 = vmatpush1.xpose.msra.mxu0 0.0
        %2179 = vmatprep.mubr.f32.mxu0 0.0
        %2180 = vmatmul.mubr.f32.gmra.mrb[0].mxu0 %v2111
        %v2181 = vpop.f32.mrb[0].mxu0
        %v2182 = vadd.f32 0.0, %v2181
        %v2183 = vpop.f32.mrb[0].mxu0
        %2184 = vdwg.mxu0
        %v2185 = vsel %vm650, %v2182, -inf
        %2186 = vmax.xlane.f32.xlu0 %v2185
        %v2187 = vpop.xlane.xlu0 %2186
        %v2188 = vsub.f32 %v2182, %v2187
        %v2189 = vmul.f32 %v2188, 1.442695
        %v2190 = vpow.pop %v2189
        %v2191 = vsel %vm650, %v2190, 0.0
        %2192 = vadd.xlane.f32.xlu0 %v2191
        %v2193 = vpop.xlane.xlu0 %2192
        %v2194 = vrcp.pop %v2193
        %v2195 = vmul.f32 %v2190, %v2194
        %2196 = vrot.lane.b32.xlu0 %v567, 12
        %v2197 = vpop.permute.xlu0 %2196
        %v2200 = vsel %vm650, %v2195, 0
        %2202 = vmatprep.subr.mxu0 0.0
        %2203 = vmatpush1.msra.mxu0 %v2197
        %2204 = vmatprep.subr.mxu0 0.0
        %2205 = vmatpush1.msra.mxu0 0.0
        %2206 = vmatprep.subr.mxu0 0.0
        %2207 = vmatpush1.msra.mxu0 0.0
        %2208 = vmatprep.subr.mxu0 0.0
        %2209 = vmatpush1.msra.mxu0 0.0
        %2210 = vmatprep.subr.mxu0 0.0
        %2211 = vmatpush1.msra.mxu0 0.0
        %2212 = vmatprep.subr.mxu0 0.0
        %2213 = vmatpush1.msra.mxu0 0.0
        %2214 = vmatprep.subr.mxu0 0.0
        %2215 = vmatpush1.msra.mxu0 0.0
        %2216 = vmatprep.subr.mxu0 0.0
        %2217 = vmatpush1.msra.mxu0 0.0
        %2218 = vmatprep.subr.mxu0 0.0
        %2219 = vmatpush1.msra.mxu0 0.0
        %2220 = vmatprep.subr.mxu0 0.0
        %2221 = vmatpush1.msra.mxu0 0.0
        %2222 = vmatprep.subr.mxu0 0.0
        %2223 = vmatpush1.msra.mxu0 0.0
        %2224 = vmatprep.subr.mxu0 0.0
        %2225 = vmatpush1.msra.mxu0 0.0
        %2226 = vmatprep.subr.mxu0 0.0
        %2227 = vmatpush1.msra.mxu0 0.0
        %2228 = vmatprep.subr.mxu0 0.0
        %2229 = vmatpush1.msra.mxu0 0.0
        %2230 = vmatprep.subr.mxu0 0.0
        %2231 = vmatpush1.msra.mxu0 0.0
        %2232 = vmatprep.subr.mxu0 0.0
        %2233 = vmatpush1.msra.mxu0 0.0
        %2234 = vmatprep.subr.mxu0 0.0
        %2235 = vmatpush1.msra.mxu0 0.0
        %2236 = vmatprep.subr.mxu0 0.0
        %2237 = vmatpush1.msra.mxu0 0.0
        %2238 = vmatprep.subr.mxu0 0.0
        %2239 = vmatpush1.msra.mxu0 0.0
        %2240 = vmatprep.subr.mxu0 0.0
        %2241 = vmatpush1.msra.mxu0 0.0
        %2242 = vmatprep.subr.mxu0 0.0
        %2243 = vmatpush1.msra.mxu0 0.0
        %2244 = vmatprep.subr.mxu0 0.0
        %2245 = vmatpush1.msra.mxu0 0.0
        %2246 = vmatprep.subr.mxu0 0.0
        %2247 = vmatpush1.msra.mxu0 0.0
        %2248 = vmatprep.subr.mxu0 0.0
        %2249 = vmatpush1.msra.mxu0 0.0
        %2250 = vmatprep.subr.mxu0 0.0
        %2251 = vmatpush1.msra.mxu0 0.0
        %2252 = vmatprep.subr.mxu0 0.0
        %2253 = vmatpush1.msra.mxu0 0.0
        %2254 = vmatprep.subr.mxu0 0.0
        %2255 = vmatpush1.msra.mxu0 0.0
        %2256 = vmatprep.subr.mxu0 0.0
        %2257 = vmatpush1.msra.mxu0 0.0
        %2258 = vmatprep.subr.mxu0 0.0
        %2259 = vmatpush1.msra.mxu0 0.0
        %2260 = vmatprep.subr.mxu0 0.0
        %2261 = vmatpush1.msra.mxu0 0.0
        %2262 = vmatprep.subr.mxu0 0.0
        %2263 = vmatpush1.msra.mxu0 0.0
        %2264 = vmatprep.subr.mxu0 0.0
        %2265 = vmatpush1.msra.mxu0 0.0
        %2266 = vmatprep.mubr.f32.mxu0 0.0
        %2267 = vmatmul.mubr.f32.gmra.mrb[0].mxu0 %v2200
        %v2268 = vpop.f32.mrb[0].mxu0
        %v2269 = vadd.f32 0.0, %v2268
        %v2270 = vpop.f32.mrb[0].mxu0
        %2271 = vdwg.mxu0
        %2273 = vrot.lane.b32.xlu0 %v2269, 36
        %v2274 = vpop.permute.xlu0 %2273
        %vm2276 = vcmask 326944
        %2277 = vst.msk [vmem:[#allocation3] sm:$0xff] %vm2276, %v2274
        %v2278 = vld [vmem:[#allocation3] sm:$0xff]
        %v2279 = vpack.c.bf16 %v2278, %v2278
        %v2280 = vld [vmem:[%s477] sm:$0xf]
        %v2281 = vld [vmem:[%s477 + $0x4] sm:$0xf]
        %v2282 = vld [vmem:[%s477 + $0x8] sm:$0xf]
        %v2283 = vld [vmem:[%s477 + $0xc] sm:$0xf]
        %v2284 = vld [vmem:[%s477 + $0x10] sm:$0xf]
        %v2285 = vlaneseq
        %v2286 = vshrl.u32 %v2285, 7
        %v2287 = vsub.s32 2, %v2286
        %v2288 = vrot.slane %v498, %v2287
        %v2294 = vunpack.c.l.b16 %v2280
        %v2295 = vunpack.c.l.b16 %v2281
        %v2296 = vunpack.c.l.b16 %v2282
        %v2297 = vunpack.c.l.b16 %v2283
        %v2298 = vunpack.c.l.b16 %v2284
        %v2299 = vpack.c.b16 %v2295, %v2294
        %v2300 = vpack.c.b16 %v2297, %v2296
        %v2301 = vpack.c.b16 %v2298, %v2298
        %v2305 = vsel %vm524, %v2279, 0
        %v2308 = vsel %vm528, %v2301, 0
        %2310 = vmatprep.subr.bf16.mxu0 0
        %2311 = vmatpush1.bf16.msra.mxu0 %v2299
        %2312 = vmatprep.subr.bf16.mxu0 0
        %2313 = vmatpush1.bf16.msra.mxu0 %v2300
        %2314 = vmatprep.subr.bf16.mxu0 0
        %2315 = vmatpush1.bf16.msra.mxu0 %v2308
        %2316 = vmatprep.subr.bf16.mxu0 0
        %2317 = vmatpush1.bf16.msra.mxu0 0
        %2318 = vmatprep.subr.bf16.mxu0 0
        %2319 = vmatpush1.bf16.msra.mxu0 0
        %2320 = vmatprep.subr.bf16.mxu0 0
        %2321 = vmatpush1.bf16.msra.mxu0 0
        %2322 = vmatprep.subr.bf16.mxu0 0
        %2323 = vmatpush1.bf16.msra.mxu0 0
        %2324 = vmatprep.subr.bf16.mxu0 0
        %2325 = vmatpush1.bf16.msra.mxu0 0
        %2326 = vmatprep.subr.bf16.mxu0 0
        %2327 = vmatpush1.bf16.msra.mxu0 0
        %2328 = vmatprep.subr.bf16.mxu0 0
        %2329 = vmatpush1.bf16.msra.mxu0 0
        %2330 = vmatprep.subr.bf16.mxu0 0
        %2331 = vmatpush1.bf16.msra.mxu0 0
        %2332 = vmatprep.subr.bf16.mxu0 0
        %2333 = vmatpush1.bf16.msra.mxu0 0
        %2334 = vmatprep.subr.bf16.mxu0 0
        %2335 = vmatpush1.bf16.msra.mxu0 0
        %2336 = vmatprep.subr.bf16.mxu0 0
        %2337 = vmatpush1.bf16.msra.mxu0 0
        %2338 = vmatprep.subr.bf16.mxu0 0
        %2339 = vmatpush1.bf16.msra.mxu0 0
        %2340 = vmatprep.subr.bf16.mxu0 0
        %2341 = vmatpush1.bf16.msra.mxu0 0
        %2342 = vmatprep.mubr.bf16.mxu0 0
        %2343 = vmatmul.mubr.bf16.gmra.mrb[0].mxu0 %v2305
        %v2344 = vpop.f32.mrb[0].mxu0
        %v2345 = vadd.f32 %v2288, %v2344
        %v2346 = vpop.f32.mrb[0].mxu0
        %v2347 = vpop.f32.mrb[0].mxu0
        %v2348 = vpop.f32.mrb[0].mxu0
        %2349 = vdwg.mxu0
        %v2350 = vadd.f32 %v497, %v2345
        %v2351 = vsel %vm524, %v2350, 0.0
        %2352 = vadd.xlane.f32.xlu0 %v2351
        %v2353 = vpop.xlane.xlu0 %2352
        %v2354 = vrcp.pop 40.0
        %v2355 = vmul.f32 %v2353, %v2354
        %v2356 = vsub.f32 %v2350, %v2355
        %v2357 = vmul.f32 %v2356, %v2356
        %v2358 = vsel %vm524, %v2357, 0.0
        %2359 = vadd.xlane.f32.xlu0 %v2358
        %v2360 = vpop.xlane.xlu0 %2359
        %v2361 = vmul.f32 %v2360, %v2354
        %v2362 = vadd.f32 %v2361, 1e-05
        %v2363 = vrsqrt.pop %v2362
        %v2364 = vmul.f32 %v2356, %v2363
        %v2365 = vlaneseq
        %v2366 = vshrl.u32 %v2365, 7
        %v2367 = vsub.s32 3, %v2366
        %v2368 = vrot.slane %v498, %v2367
        %v2369 = vmul.f32 %v2364, %v2368
        %v2370 = vlaneseq
        %v2371 = vshrl.u32 %v2370, 7
        %v2372 = vsub.s32 4, %v2371
        %v2373 = vrot.slane %v498, %v2372
        %v2374 = vadd.f32 %v2369, %v2373
        %v2375 = vpack.c.bf16 %v2374, %v2374
        %v2376 = vld [vmem:[%s409] sm:$0xf]
        %v2377 = vld [vmem:[%s409 + $0x4] sm:$0xf]
        %v2378 = vld [vmem:[%s409 + $0x8] sm:$0xf]
        %v2379 = vld [vmem:[%s409 + $0xc] sm:$0xf]
        %v2380 = vld [vmem:[%s409 + $0x10] sm:$0xf]
        %v2381 = vlaneseq
        %v2382 = vshrl.u32 %v2381, 7
        %v2383 = vsub.s32 1, %v2382
        %v2384 = vrot.slane %v498, %v2383
        %v2390 = vunpack.c.l.b16 %v2376
        %v2391 = vunpack.c.l.b16 %v2377
        %v2392 = vunpack.c.l.b16 %v2378
        %v2393 = vunpack.c.l.b16 %v2379
        %v2394 = vunpack.c.l.b16 %v2380
        %v2395 = vpack.c.b16 %v2391, %v2390
        %v2396 = vpack.c.b16 %v2393, %v2392
        %v2397 = vpack.c.b16 %v2394, %v2394
        %v2401 = vsel %vm524, %v2375, 0
        %v2404 = vsel %vm528, %v2397, 0
        %2406 = vmatprep.subr.bf16.mxu0 0
        %2407 = vmatpush1.bf16.msra.mxu0 %v2395
        %2408 = vmatprep.subr.bf16.mxu0 0
        %2409 = vmatpush1.bf16.msra.mxu0 %v2396
        %2410 = vmatprep.subr.bf16.mxu0 0
        %2411 = vmatpush1.bf16.msra.mxu0 %v2404
        %2412 = vmatprep.subr.bf16.mxu0 0
        %2413 = vmatpush1.bf16.msra.mxu0 0
        %2414 = vmatprep.subr.bf16.mxu0 0
        %2415 = vmatpush1.bf16.msra.mxu0 0
        %2416 = vmatprep.subr.bf16.mxu0 0
        %2417 = vmatpush1.bf16.msra.mxu0 0
        %2418 = vmatprep.subr.bf16.mxu0 0
        %2419 = vmatpush1.bf16.msra.mxu0 0
        %2420 = vmatprep.subr.bf16.mxu0 0
        %2421 = vmatpush1.bf16.msra.mxu0 0
        %2422 = vmatprep.subr.bf16.mxu0 0
        %2423 = vmatpush1.bf16.msra.mxu0 0
        %2424 = vmatprep.subr.bf16.mxu0 0
        %2425 = vmatpush1.bf16.msra.mxu0 0
        %2426 = vmatprep.subr.bf16.mxu0 0
        %2427 = vmatpush1.bf16.msra.mxu0 0
        %2428 = vmatprep.subr.bf16.mxu0 0
        %2429 = vmatpush1.bf16.msra.mxu0 0
        %2430 = vmatprep.subr.bf16.mxu0 0
        %2431 = vmatpush1.bf16.msra.mxu0 0
        %2432 = vmatprep.subr.bf16.mxu0 0
        %2433 = vmatpush1.bf16.msra.mxu0 0
        %2434 = vmatprep.subr.bf16.mxu0 0
        %2435 = vmatpush1.bf16.msra.mxu0 0
        %2436 = vmatprep.subr.bf16.mxu0 0
        %2437 = vmatpush1.bf16.msra.mxu0 0
        %2438 = vmatprep.mubr.bf16.mxu0 0
        %2439 = vmatmul.mubr.bf16.gmra.mrb[0].mxu0 %v2401
        %v2440 = vpop.f32.mrb[0].mxu0
        %v2441 = vadd.f32 %v2384, %v2440
        %v2442 = vpop.f32.mrb[0].mxu0
        %v2443 = vpop.f32.mrb[0].mxu0
        %v2444 = vpop.f32.mrb[0].mxu0
        %2445 = vdwg.mxu0
        %v2446 = vmax.f32 %v2441, 0.0
        %v2447 = vpack.c.bf16 %v2446, %v2446
        %v2448 = vld [vmem:[%s482] sm:$0xf]
        %v2449 = vld [vmem:[%s482 + $0x4] sm:$0xf]
        %v2450 = vld [vmem:[%s482 + $0x8] sm:$0xf]
        %v2451 = vld [vmem:[%s482 + $0xc] sm:$0xf]
        %v2452 = vld [vmem:[%s482 + $0x10] sm:$0xf]
        %v2453 = vld [vmem:[%s482 + $0x14] sm:$0xf]
        %v2454 = vld [vmem:[%s482 + $0x18] sm:$0xf]
        %v2455 = vld [vmem:[%s482 + $0x1c] sm:$0xf]
        %v2456 = vlaneseq
        %v2457 = vshrl.u32 %v2456, 7
        %v2458 = vsub.s32 5, %v2457
        %v2459 = vrot.slane %v498, %v2458
        %v2468 = vunpack.c.l.b16 %v2448
        %v2469 = vunpack.c.l.b16 %v2449
        %v2470 = vunpack.c.l.b16 %v2450
        %v2471 = vunpack.c.l.b16 %v2451
        %v2472 = vunpack.c.l.b16 %v2452
        %v2473 = vunpack.c.l.b16 %v2453
        %v2474 = vunpack.c.l.b16 %v2454
        %v2475 = vunpack.c.l.b16 %v2455
        %v2476 = vpack.c.b16 %v2469, %v2468
        %v2477 = vpack.c.b16 %v2471, %v2470
        %v2478 = vpack.c.b16 %v2473, %v2472
        %v2479 = vpack.c.b16 %v2475, %v2474
        %vm2484 = vcmask 523264
        %v2486 = vsel %vm2484, %v2447, 0
        %2488 = vmatprep.subr.bf16.mxu0 0
        %2489 = vmatpush1.bf16.msra.mxu0 %v2476
        %2490 = vmatprep.subr.bf16.mxu0 0
        %2491 = vmatpush1.bf16.msra.mxu0 %v2477
        %2492 = vmatprep.subr.bf16.mxu0 0
        %2493 = vmatpush1.bf16.msra.mxu0 %v2478
        %2494 = vmatprep.subr.bf16.mxu0 0
        %2495 = vmatpush1.bf16.msra.mxu0 %v2479
        %2496 = vmatprep.subr.bf16.mxu0 0
        %2497 = vmatpush1.bf16.msra.mxu0 0
        %2498 = vmatprep.subr.bf16.mxu0 0
        %2499 = vmatpush1.bf16.msra.mxu0 0
        %2500 = vmatprep.subr.bf16.mxu0 0
        %2501 = vmatpush1.bf16.msra.mxu0 0
        %2502 = vmatprep.subr.bf16.mxu0 0
        %2503 = vmatpush1.bf16.msra.mxu0 0
        %2504 = vmatprep.subr.bf16.mxu0 0
        %2505 = vmatpush1.bf16.msra.mxu0 0
        %2506 = vmatprep.subr.bf16.mxu0 0
        %2507 = vmatpush1.bf16.msra.mxu0 0
        %2508 = vmatprep.subr.bf16.mxu0 0
        %2509 = vmatpush1.bf16.msra.mxu0 0
        %2510 = vmatprep.subr.bf16.mxu0 0
        %2511 = vmatpush1.bf16.msra.mxu0 0
        %2512 = vmatprep.subr.bf16.mxu0 0
        %2513 = vmatpush1.bf16.msra.mxu0 0
        %2514 = vmatprep.subr.bf16.mxu0 0
        %2515 = vmatpush1.bf16.msra.mxu0 0
        %2516 = vmatprep.subr.bf16.mxu0 0
        %2517 = vmatpush1.bf16.msra.mxu0 0
        %2518 = vmatprep.subr.bf16.mxu0 0
        %2519 = vmatpush1.bf16.msra.mxu0 0
        %2520 = vmatprep.mubr.bf16.mxu0 0
        %2521 = vmatmul.mubr.bf16.gmra.mrb[0].mxu0 %v2486
        %v2522 = vpop.f32.mrb[0].mxu0
        %v2523 = vadd.f32 %v2459, %v2522
        %v2524 = vpop.f32.mrb[0].mxu0
        %v2525 = vpop.f32.mrb[0].mxu0
        %v2526 = vpop.f32.mrb[0].mxu0
        %2527 = vdwg.mxu0
        %v2528 = vadd.f32 %v2374, %v2523
        %v2529 = vsel %vm524, %v2528, 0.0
        %2530 = vadd.xlane.f32.xlu0 %v2529
        %v2531 = vpop.xlane.xlu0 %2530
        %v2532 = vmul.f32 %v2531, %v2354
        %v2533 = vsub.f32 %v2528, %v2532
        %v2534 = vmul.f32 %v2533, %v2533
        %v2535 = vsel %vm524, %v2534, 0.0
        %2536 = vadd.xlane.f32.xlu0 %v2535
        %v2537 = vpop.xlane.xlu0 %2536
        %v2538 = vmul.f32 %v2537, %v2354
        %v2539 = vadd.f32 %v2538, 1e-05
        %v2540 = vrsqrt.pop %v2539
        %v2541 = vmul.f32 %v2533, %v2540
        %v2542 = vlaneseq
        %v2543 = vshrl.u32 %v2542, 7
        %v2544 = vsub.s32 6, %v2543
        %v2545 = vrot.slane %v498, %v2544
        %v2546 = vmul.f32 %v2541, %v2545
        %v2547 = vlaneseq
        %v2548 = vshrl.u32 %v2547, 7
        %v2549 = vsub.s32 7, %v2548
        %v2550 = vrot.slane %v498, %v2549
        %v2551 = vadd.f32 %v2546, %v2550
        %2552 = vst.msk [vmem:[#allocation2] sm:$0xff] %vm524, %v2551
        %p2553 = scmp.eq.s32.totalorder %s32, 5
        // Predicated region
        $region73: #{tpu_custom_call.1} parent=55 // pred_check
          %p2554 = pneg %p2553
        $region74: #{tpu_custom_call.1} parent=55 // pred_check_branch
          %2556 = sbr.rel (%p2554) target = $region76
        $region75: #{tpu_custom_call.1} parent=55 // pred_region
          %v2557 = vpack.c.bf16 %v2551, %v2551
          %v2558 = vld [vmem:[%s7] sm:$0xf]
          %v2559 = vld [vmem:[%s7 + $0x4] sm:$0xf]
          %v2560 = vld [vmem:[%s7 + $0x8] sm:$0xf]
          %v2561 = vld [vmem:[%s7 + $0xc] sm:$0xf]
          %v2562 = vld [vmem:[%s7 + $0x10] sm:$0xf]
          %v2563 = vld [vmem:[%s8] sm:$0x1]
          %v2565 = vlaneseq
          %v2566 = vshrl.u32 %v2565, 7
          %v2567 = vsub.s32 0, %v2566
          %v2568 = vrot.slane %v2563, %v2567
          %v2575 = vunpack.c.l.b16 %v2558
          %v2576 = vunpack.c.l.b16 %v2559
          %v2577 = vunpack.c.l.b16 %v2560
          %v2578 = vunpack.c.l.b16 %v2561
          %v2579 = vunpack.c.l.b16 %v2562
          %v2580 = vpack.c.b16 %v2576, %v2575
          %v2581 = vpack.c.b16 %v2578, %v2577
          %v2582 = vpack.c.b16 %v2579, %v2579
          %v2586 = vsel %vm524, %v2557, 0
          %v2589 = vsel %vm528, %v2582, 0
          %2591 = vmatprep.subr.bf16.mxu0 0
          %2592 = vmatpush1.bf16.msra.mxu0 %v2580
          %2593 = vmatprep.subr.bf16.mxu0 0
          %2594 = vmatpush1.bf16.msra.mxu0 %v2581
          %2595 = vmatprep.subr.bf16.mxu0 0
          %2596 = vmatpush1.bf16.msra.mxu0 %v2589
          %2597 = vmatprep.subr.bf16.mxu0 0
          %2598 = vmatpush1.bf16.msra.mxu0 0
          %2599 = vmatprep.subr.bf16.mxu0 0
          %2600 = vmatpush1.bf16.msra.mxu0 0
          %2601 = vmatprep.subr.bf16.mxu0 0
          %2602 = vmatpush1.bf16.msra.mxu0 0
          %2603 = vmatprep.subr.bf16.mxu0 0
          %2604 = vmatpush1.bf16.msra.mxu0 0
          %2605 = vmatprep.subr.bf16.mxu0 0
          %2606 = vmatpush1.bf16.msra.mxu0 0
          %2607 = vmatprep.subr.bf16.mxu0 0
          %2608 = vmatpush1.bf16.msra.mxu0 0
          %2609 = vmatprep.subr.bf16.mxu0 0
          %2610 = vmatpush1.bf16.msra.mxu0 0
          %2611 = vmatprep.subr.bf16.mxu0 0
          %2612 = vmatpush1.bf16.msra.mxu0 0
          %2613 = vmatprep.subr.bf16.mxu0 0
          %2614 = vmatpush1.bf16.msra.mxu0 0
          %2615 = vmatprep.subr.bf16.mxu0 0
          %2616 = vmatpush1.bf16.msra.mxu0 0
          %2617 = vmatprep.subr.bf16.mxu0 0
          %2618 = vmatpush1.bf16.msra.mxu0 0
          %2619 = vmatprep.subr.bf16.mxu0 0
          %2620 = vmatpush1.bf16.msra.mxu0 0
          %2621 = vmatprep.subr.bf16.mxu0 0
          %2622 = vmatpush1.bf16.msra.mxu0 0
          %2623 = vmatprep.mubr.bf16.mxu0 0
          %2624 = vmatmul.mubr.bf16.gmra.mrb[0].mxu0 %v2586
          %v2625 = vpop.f32.mrb[0].mxu0
          %v2626 = vadd.f32 %v2568, %v2625
          %v2627 = vpop.f32.mrb[0].mxu0
          %v2628 = vpop.f32.mrb[0].mxu0
          %v2629 = vpop.f32.mrb[0].mxu0
          %2630 = vdwg.mxu0
          %2631 = vst [vmem:[%s467] sm:$0xff] %v2626
        $region76: #{tpu_custom_call.1} parent=55 // pred_fallthru
          _
        %s2632 = sand.u32 %s266, 1
        %s2633 = scalar_lea.sflag [#allocation6], %s2632
        %s2634 = sand.u32 %s266, 1
        %s2635 = smul.addr %s2634, 8
        %s2636 = scalar_lea.vmem [#allocation10], %s2635
        // Predicated region
        $region77: #{tpu_custom_call.1} parent=55 // pred_check
          %p2637 = pneg %p276
        $region78: #{tpu_custom_call.1} parent=55 // pred_check_branch
          %2639 = sbr.rel (%p2637) target = $region80
        $region79: #{tpu_custom_call.1} parent=55 // pred_region
          %s2641 = ssub.s32 128, 128
          %2642 = vsyncadd %s2633, %s2641
          %s2643 = smul.addr %s31, 128
          %s2644 = scalar_lea.hbm %s9, %s2643
          %s2646 = sshll.u32 %s2636, 4
          %s2647 = int_to_ptr.vmem [resolvable:$true] %s2646
          %2649 = dma.vmem_to_hbm [thread:$0]  %s2647, 128, %s2644, %s2633
        $region80: #{tpu_custom_call.1} parent=55 // pred_fallthru
          _
      $region56: #{tpu_custom_call.1} parent=5 // pred_fallthru
        _
      %p2650 = scmp.le.s32.totalorder 2, %s22
      // Predicated region
      $region81: #{tpu_custom_call.1} parent=5 // pred_check
        %p2651 = pneg %p2650
      $region82: #{tpu_custom_call.1} parent=5 // pred_check_branch
        %2653 = sbr.rel (%p2651) target = $region84
      $region83: #{tpu_custom_call.1} parent=5 // pred_region
        %s2654 = ssub.s32 %s22, 2
        // Predicated region
        $region85: #{tpu_custom_call.1} parent=83 // pred_check
          %p2655 = pneg %p282
        $region86: #{tpu_custom_call.1} parent=83 // pred_check_branch
          %2657 = sbr.rel (%p2655) target = $region88
        $region87: #{tpu_custom_call.1} parent=83 // pred_region
          %s2658 = sand.u32 %s267, 1
          %s2659 = scalar_lea.sflag [#allocation6], %s2658
          %s2660 = sand.u32 %s267, 1
          %s2661 = smul.addr %s2660, 8
          %s2662 = scalar_lea.vmem [#allocation10], %s2661
          %2663 = dma.done %s2659, 128
        $region88: #{tpu_custom_call.1} parent=83 // pred_fallthru
          _
      $region84: #{tpu_custom_call.1} parent=5 // pred_fallthru
        _
    $region6: #{tpu_custom_call.1} parent=1 // loop_footer
      %s26 = sadd.s32 1, %s22
    $region7: #{tpu_custom_call.1} parent=1 // loop_footer_branch
      %21 = sbr.rel target = $region3
    $region8: #{tpu_custom_call.1} parent=1 // loop_exit
      _
    %2664 = vsyncpa [#allocation5], 1
    %s2665 = scalar_lea.sflag [#allocation5], 1
    %2666 = vsyncpa %s2665, 1
    %2667 = vsyncpa [#allocation8], 1
    %2668 = vsyncpa [#allocation6], 1
    %s2669 = scalar_lea.sflag [#allocation6], 1
    %2670 = vsyncpa %s2669, 1

</llo_original>
